<compile_context>
chip_gen: v7x
topology: tpu7x:2x2x1
jax: 0.10.0
libtpu: 0.0.40
codegen_flags: <defaults>
</compile_context>

<pallas_src>
import functools
import math

import jax
import jax.numpy as jnp
from jax.experimental import pallas as pl
from jax.experimental.pallas import tpu as pltpu

# dtype fed to the MXU (weights / matmul inputs).  Accumulation is always f32.
# Set to jnp.float32 for closer bitwise parity with a PyTorch f32 reference.
MXU_DTYPE = jnp.bfloat16


def _erf_f32(x):
    # erf from ops guaranteed to lower on Mosaic (exp/mul/add/where).
    # Abramowitz & Stegun 7.1.26, max abs error ~1.5e-7 -> exact-erf nn.GELU()
    # is reproduced to float32 precision.
    a1, a2, a3, a4, a5 = (0.254829592, -0.284496736, 1.421413741,
                          -1.453152027, 1.061405429)
    pc = 0.3275911
    sgn = jnp.where(x >= 0.0, 1.0, -1.0)
    ax = jnp.abs(x)
    t = 1.0 / (1.0 + pc * ax)
    poly = ((((a5 * t + a4) * t + a3) * t + a2) * t + a1) * t
    return sgn * (1.0 - poly * jnp.exp(-ax * ax))


def _dot(a, b):
    """MXU matmul: bf16 operands, f32 accumulation."""
    return jnp.dot(a.astype(MXU_DTYPE), b.astype(MXU_DTYPE),
                   preferred_element_type=jnp.float32)


def _dot_f32(a, b):
    return jnp.dot(a.astype(jnp.float32), b.astype(jnp.float32),
                   preferred_element_type=jnp.float32)


def _bottleneck_cra_kernel(*refs, scale, add):
    """Fused Bottleneck_CRA forward for one batch element (token-minor layout).

    Per-batch refs:
      patches_ref : (1, 9*C1, N)   im2col of the zero-padded NCHW input (bf16)
      xres_ref    : (1, C1,  N)    residual tokens (only when add=True, f32)
    Shared refs (weights pre-transposed to channel-first, constants 0/1):
      wc (C,9C1)  bc (C,1)  pm (N,N2)  wsr (C,C)  bsr (C,1)  lng/lnb (C,1)
      wq/wk (nh,C)  wv (C,C)  wp (C,C)  bp (C,1)
      e (nh,M)  et (M,nh)  r (M,N2)  rt (N2,M)  mv (C,M)  hs (C,nh)
    Output:
      o_ref       : (1, C, N)      == NCHW output flattened (lane-dense store)
    """
    if add:
        (patches_ref, xres_ref, wc_ref, bc_ref, pm_ref, wsr_ref, bsr_ref,
         lng_ref, lnb_ref, wq_ref, wk_ref, wv_ref, wp_ref, bp_ref,
         e_ref, et_ref, r_ref, rt_ref, mv_ref, hs_ref, o_ref) = refs
    else:
        (patches_ref, wc_ref, bc_ref, pm_ref, wsr_ref, bsr_ref,
         lng_ref, lnb_ref, wq_ref, wk_ref, wv_ref, wp_ref, bp_ref,
         e_ref, et_ref, r_ref, rt_ref, mv_ref, hs_ref, o_ref) = refs
        xres_ref = None

    # ---- cv1: 3x3 conv (single im2col matmul) + folded BN + SiLU ---------
    yT = _dot(wc_ref[...], patches_ref[0]) + bc_ref[...]        # (C, N) f32
    yT = yT * jax.nn.sigmoid(yT)                                # SiLU
    yTm = yT.astype(MXU_DTYPE)

    # ---- cv2: ChannelReductionAttention ----------------------------------
    # 2x2 average pool == one matmul with a constant 0/0.25 pooling matrix.
    pooledT = _dot(yTm, pm_ref[...])                            # (C, N2)
    # sr: 1x1 conv == per-token linear (with bias)
    xT = _dot(wsr_ref[...], pooledT) + bsr_ref[...]             # (C, N2)
    # LayerNorm over channels (axis 0 in token-minor layout), eps = 1e-5
    mu = jnp.mean(xT, axis=0, keepdims=True)
    xc = xT - mu
    var = jnp.mean(xc * xc, axis=0, keepdims=True)
    xT = xc * jax.lax.rsqrt(var + 1e-5)
    xT = xT * lng_ref[...] + lnb_ref[...]
    # exact (erf-form) GELU, matching nn.GELU() default
    xT = 0.5 * xT * (1.0 + _erf_f32(xT * (1.0 / math.sqrt(2.0))))
    xTm = xT.astype(MXU_DTYPE)

    qT = _dot(wq_ref[...], yTm)                                 # (nh, N)
    kT = _dot(wk_ref[...], xTm)                                 # (nh, N2)
    vT = _dot(wv_ref[...], xTm)                                 # (C,  N2)

    # All heads at once as one (M, N) slab, M = nh*N2, row m <-> (head m//N2,
    # key m%N2):  logits[m, n] = scale * k[m//N2, m%N2] * q[m//N2, n].
    q_exp = _dot(et_ref[...], qT)                               # (M, N)
    k_exp = _dot(et_ref[...], kT)                               # (M, N2)
    k_col = jnp.sum(k_exp * r_ref[...], axis=1, keepdims=True)  # (M, 1)

    # Stabilizer (constant per (head, query), >= max_j logits) -> softmax is
    # mathematically unchanged, no overflow possible.
    kabs = jnp.max(jnp.abs(kT), axis=1, keepdims=True)          # (nh, 1)
    mT = scale * jnp.abs(qT) * kabs                             # (nh, N)
    m_exp = _dot(et_ref[...], mT)                               # (M, N)

    p = jnp.exp(scale * k_col * q_exp - m_exp)                  # (M, N) f32
    pm = p.astype(MXU_DTYPE)
    s = _dot(e_ref[...], pm)                                    # (nh, N)  per-head denominators
    rinv = pl.reciprocal(s, approx=True)                        # (nh, N)  (approx=False for exact divide)

    # ctx[c, n] = sum_j attn[head(c), n, j] * v[j, c]  via one block-structured
    # matmul:  Vblk[c, m] = v[m%N2, c] * (m//N2 == head(c)).
    v_blk = mv_ref[...] * _dot(vT, rt_ref[...])                 # (C, M)
    ctx_un = _dot(v_blk, pm)                                    # (C, N)
    ctxT = ctx_un * _dot_f32(hs_ref[...], rinv)                 # normalize per head

    outT = _dot(wp_ref[...], ctxT) + bp_ref[...]                # (C, N) proj (+bias)
    if add:
        outT = outT + xres_ref[0].astype(jnp.float32)           # fused residual
    o_ref[0] = outT.astype(o_ref.dtype)


def _full_spec(shape):
    nd = len(shape)
    return pl.BlockSpec(shape, lambda b, _nd=nd: (0,) * _nd)


def init_params(key, c1, c2, *, shortcut=True, e=0.5, num_heads=8, pool_ratio=2):
    c_ = int(c2 * e)
    assert c_ % num_heads == 0, f"dim {c_} should be divided by num_heads {num_heads}"
    head_dim = c_ // num_heads
    ks = jax.random.split(key, 8)
    std = 0.02
    return dict(
        c1=c1, c2=c2, c_=c_, num_heads=num_heads, pool_ratio=pool_ratio,
        scale=head_dim ** (-0.5), add=bool(shortcut and c1 == c2),
        # cv1 (Conv2d 3x3 HWIO, no bias) + BatchNorm2d (fresh eval stats)
        conv_w=jax.random.normal(ks[0], (3, 3, c1, c_), jnp.float32)
        * math.sqrt(2.0 / (9 * c_)),
        bn_gamma=jnp.ones((c_,), jnp.float32),
        bn_beta=jnp.zeros((c_,), jnp.float32),
        bn_mean=jnp.zeros((c_,), jnp.float32),
        bn_var=jnp.ones((c_,), jnp.float32),
        # ChannelReductionAttention (weights stored (in, out); wrapper transposes)
        wq=jax.random.normal(ks[1], (c_, num_heads), jnp.float32) * std,
        wk=jax.random.normal(ks[2], (c_, num_heads), jnp.float32) * std,
        wv=jax.random.normal(ks[3], (c_, c_), jnp.float32) * std,
        w_sr=jax.random.normal(ks[4], (c_, c_), jnp.float32) * math.sqrt(2.0 / c_),
        b_sr=jnp.zeros((c_,), jnp.float32),
        ln_g=jnp.ones((c_,), jnp.float32),
        ln_b=jnp.zeros((c_,), jnp.float32),
        w_proj=jax.random.normal(ks[5], (c_, c_), jnp.float32) * std,
        b_proj=jnp.zeros((c_,), jnp.float32),
    )


def bottleneck_cra(x_nchw, p):
    """Forward of Bottleneck_CRA.  x_nchw: (B, c1, H, W) float32 (NCHW)."""
    B, C1, H, W = x_nchw.shape
    C, nh = p["c_"], p["num_heads"]
    hd = C // nh
    r = p["pool_ratio"]
    assert H % r == 0 and W % r == 0
    N, N2 = H * W, (H // r) * (W // r)
    M = nh * N2
    add = p["add"]
    if add:
        assert C == C1, "residual path requires c_ == c1 (e.g. e=1.0 with c1==c2)"
    eps = 1e-5
    f32 = jnp.float32
    x_nchw = x_nchw.astype(f32)

    # ---- fold eval-mode BatchNorm into the conv weight / bias -------------
    bn_scale = p["bn_gamma"] / jnp.sqrt(p["bn_var"] + eps)
    bn_bias = p["bn_beta"] - p["bn_mean"] * bn_scale
    w_fold = p["conv_w"].reshape(9 * C1, C) * bn_scale[None, :]
    wcT = w_fold.T.astype(MXU_DTYPE)                              # (C, 9*C1)
    bcb = bn_bias.reshape(C, 1).astype(f32)

    # ---- im2col in the native NCHW / token-minor layout (no transposes) ---
    xp = jnp.pad(x_nchw, ((0, 0), (0, 0), (1, 1), (1, 1)))
    taps = [xp[:, :, dy:dy + H, dx:dx + W] for dy in range(3) for dx in range(3)]
    patches = jnp.stack(taps, axis=1).reshape(B, 9 * C1, N).astype(MXU_DTYPE)

    # ---- constant structure matrices (folded by XLA at trace time) --------
    tok = jnp.arange(N)
    pool_id = (tok // W // r) * (W // r) + (tok % W) // r
    pmT = ((pool_id[:, None] == jnp.arange(N2)[None, :]).astype(f32)
           * (1.0 / (r * r))).astype(MXU_DTYPE)                   # (N, N2)
    seg = jnp.arange(M) // N2                                     # head of row m
    pos = jnp.arange(M) % N2                                      # key   of row m
    e_mat = (seg[None, :] == jnp.arange(nh)[:, None]).astype(MXU_DTYPE)   # (nh, M)
    et_mat = (seg[:, None] == jnp.arange(nh)[None, :]).astype(MXU_DTYPE)  # (M, nh)
    r_mat = (pos[:, None] == jnp.arange(N2)[None, :]).astype(f32)         # (M, N2)
    rt_mat = (pos[None, :] == jnp.arange(N2)[:, None]).astype(MXU_DTYPE)  # (N2, M)
    ch_head = jnp.arange(C) // hd
    mv_mat = (seg[None, :] == ch_head[:, None]).astype(f32)               # (C, M)
    hs_mat = (jnp.arange(nh)[None, :] == ch_head[:, None]).astype(f32)    # (C, nh)

    # ---- weights pre-transposed to channel-first orientation --------------
    wsrT = p["w_sr"].T.astype(MXU_DTYPE)
    wqT = p["wq"].T.astype(MXU_DTYPE)
    wkT = p["wk"].T.astype(MXU_DTYPE)
    wvT = p["wv"].T.astype(MXU_DTYPE)
    wpT = p["w_proj"].T.astype(MXU_DTYPE)
    bsr = p["b_sr"].reshape(C, 1).astype(f32)
    lng = p["ln_g"].reshape(C, 1).astype(f32)
    lnb = p["ln_b"].reshape(C, 1).astype(f32)
    bp = p["b_proj"].reshape(C, 1).astype(f32)

    xres = x_nchw.reshape(B, C1, N)                               # residual tokens

    batch_in = [patches] + ([xres] if add else [])
    batch_specs = [pl.BlockSpec((1, 9 * C1, N), lambda b: (b, 0, 0))]
    if add:
        batch_specs.append(pl.BlockSpec((1, C1, N), lambda b: (b, 0, 0)))

    const_in = [wcT, bcb, pmT, wsrT, bsr, lng, lnb, wqT, wkT, wvT, wpT, bp,
                e_mat, et_mat, r_mat, rt_mat, mv_mat, hs_mat]
    const_specs = [_full_spec(a.shape) for a in const_in]

    kernel = functools.partial(_bottleneck_cra_kernel,
                               scale=float(p["scale"]), add=add)

    out_tok = pl.pallas_call(
        kernel,
        grid=(B,),
        in_specs=batch_specs + const_specs,
        out_specs=pl.BlockSpec((1, C, N), lambda b: (b, 0, 0)),   # lane-dense (last dim N)
        out_shape=jax.ShapeDtypeStruct((B, C, N), jnp.float32),
        compiler_params=pltpu.CompilerParams(dimension_semantics=("parallel",)),
    )(*batch_in, *const_in)

    return out_tok.reshape(B, C, H, W)                            # already NCHW


# ---------------- pure-JAX reference (for the in-script self check) ---------
def bottleneck_cra_reference(x, p):
    B, C1, H, W = x.shape
    C, nh = p["c_"], p["num_heads"]
    hd = C // nh
    r = p["pool_ratio"]
    eps = 1e-5
    y = jax.lax.conv_general_dilated(
        x, p["conv_w"], (1, 1), "SAME",
        dimension_numbers=("NCHW", "HWIO", "NCHW"))
    sc = p["bn_gamma"] / jnp.sqrt(p["bn_var"] + eps)
    y = y * sc[None, :, None, None] + (p["bn_beta"] - p["bn_mean"] * sc)[None, :, None, None]
    y = y * jax.nn.sigmoid(y)
    N = H * W
    tok = y.reshape(B, C, N).transpose(0, 2, 1)
    q = tok @ p["wq"]
    pooled = y.reshape(B, C, H // r, r, W // r, r).mean(axis=(3, 5))
    x_ = pooled.reshape(B, C, -1).transpose(0, 2, 1) @ p["w_sr"] + p["b_sr"]
    mu = x_.mean(-1, keepdims=True)
    var = ((x_ - mu) ** 2).mean(-1, keepdims=True)
    x_ = (x_ - mu) / jnp.sqrt(var + 1e-5) * p["ln_g"] + p["ln_b"]
    x_ = 0.5 * x_ * (1.0 + jax.scipy.special.erf(x_ / jnp.sqrt(2.0)))
    k = x_ @ p["wk"]
    v = x_ @ p["wv"]
    N2 = x_.shape[1]
    logits = jnp.einsum("bnh,bmh->bhnm", q, k) * p["scale"]
    attn = jax.nn.softmax(logits, axis=-1)
    vh = v.reshape(B, N2, nh, hd).transpose(0, 2, 1, 3)
    ctx = jnp.einsum("bhnm,bhmd->bhnd", attn, vh)
    ctx = ctx.transpose(0, 2, 1, 3).reshape(B, N, C)
    out = ctx @ p["w_proj"] + p["b_proj"]
    out = out.transpose(0, 2, 1).reshape(B, C, H, W)
    return x + out if p["add"] else out


if __name__ == "__main__":
    key = jax.random.PRNGKey(0)
    B, H, W = 2, 16, 16

    # Config A: residual path.  NOTE: with the module default e=0.5 the
    # reference `x + cv2(cv1(x))` would be shape-mismatched for c1 == c2, so
    # the shortcut is only numerically valid with e=1.0 (c_ == c1), head_dim=1.
    c1 = c2 = 8
    params_a = init_params(key, c1, c2, shortcut=True, e=1.0, num_heads=8)
    x_a = jax.random.normal(jax.random.fold_in(key, 1), (B, c1, H, W), jnp.float32)
    out_a = bottleneck_cra(x_a, params_a)
    jax.block_until_ready(out_a)
    assert out_a.shape == (B, c1, H, W)
    err_a = float(jnp.max(jnp.abs(out_a - bottleneck_cra_reference(x_a, params_a))))
    assert err_a < 3e-2, f"config A mismatch: max abs err {err_a}"

    # Config B: module defaults (e=0.5) with c1 != c2 -> add=False, head_dim=2.
    c1b, c2b = 8, 32
    params_b = init_params(key, c1b, c2b, shortcut=True, e=0.5, num_heads=8)
    x_b = jax.random.normal(jax.random.fold_in(key, 2), (B, c1b, H, W), jnp.float32)
    out_b = bottleneck_cra(x_b, params_b)
    jax.block_until_ready(out_b)
    assert out_b.shape == (B, params_b["c_"], H, W)
    err_b = float(jnp.max(jnp.abs(out_b - bottleneck_cra_reference(x_b, params_b))))
    assert err_b < 3e-2, f"config B mismatch: max abs err {err_b}"

    print("KERNEL_OK")
</pallas_src>

<mosaic_0001>
module attributes {stable_mosaic.version = 11 : i64} {
  func.func @_bottleneck_cra_kernel(%arg0: i32, %arg1: memref<1x72x256xbf16, #tpu.memory_space<vmem>>, %arg2: memref<1x8x256xf32, #tpu.memory_space<vmem>>, %arg3: memref<8x72xbf16, #tpu.memory_space<vmem>>, %arg4: memref<8x1xf32, #tpu.memory_space<vmem>>, %arg5: memref<256x64xbf16, #tpu.memory_space<vmem>>, %arg6: memref<8x8xbf16, #tpu.memory_space<vmem>>, %arg7: memref<8x1xf32, #tpu.memory_space<vmem>>, %arg8: memref<8x1xf32, #tpu.memory_space<vmem>>, %arg9: memref<8x1xf32, #tpu.memory_space<vmem>>, %arg10: memref<8x8xbf16, #tpu.memory_space<vmem>>, %arg11: memref<8x8xbf16, #tpu.memory_space<vmem>>, %arg12: memref<8x8xbf16, #tpu.memory_space<vmem>>, %arg13: memref<8x8xbf16, #tpu.memory_space<vmem>>, %arg14: memref<8x1xf32, #tpu.memory_space<vmem>>, %arg15: memref<8x512xbf16, #tpu.memory_space<vmem>>, %arg16: memref<512x8xbf16, #tpu.memory_space<vmem>>, %arg17: memref<512x64xf32, #tpu.memory_space<vmem>>, %arg18: memref<64x512xbf16, #tpu.memory_space<vmem>>, %arg19: memref<8x512xf32, #tpu.memory_space<vmem>>, %arg20: memref<8x8xf32, #tpu.memory_space<vmem>>, %arg21: memref<1x8x256xf32, #tpu.memory_space<vmem>>) attributes {dimension_semantics = [#tpu.dimension_semantics<parallel>], iteration_bounds = array<i64: 2>, scalar_prefetch = 0 : i64, scratch_operands = 0 : i64, tpu.core_type = #tpu.core_type<tc>, window_params = [{transform_indices = @transform_0, window_bounds = array<i64: 1, 72, 256>}, {transform_indices = @transform_1, window_bounds = array<i64: 1, 8, 256>}, {pipeline_mode = #tpu.pipeline_mode<synchronous>, transform_indices = @transform_2, window_bounds = array<i64: 8, 72>}, {pipeline_mode = #tpu.pipeline_mode<synchronous>, transform_indices = @transform_3, window_bounds = array<i64: 8, 1>}, {pipeline_mode = #tpu.pipeline_mode<synchronous>, transform_indices = @transform_4, window_bounds = array<i64: 256, 64>}, {pipeline_mode = #tpu.pipeline_mode<synchronous>, transform_indices = @transform_5, window_bounds = array<i64: 8, 8>}, {pipeline_mode = #tpu.pipeline_mode<synchronous>, transform_indices = @transform_6, window_bounds = array<i64: 8, 1>}, {pipeline_mode = #tpu.pipeline_mode<synchronous>, transform_indices = @transform_7, window_bounds = array<i64: 8, 1>}, {pipeline_mode = #tpu.pipeline_mode<synchronous>, transform_indices = @transform_8, window_bounds = array<i64: 8, 1>}, {pipeline_mode = #tpu.pipeline_mode<synchronous>, transform_indices = @transform_9, window_bounds = array<i64: 8, 8>}, {pipeline_mode = #tpu.pipeline_mode<synchronous>, transform_indices = @transform_10, window_bounds = array<i64: 8, 8>}, {pipeline_mode = #tpu.pipeline_mode<synchronous>, transform_indices = @transform_11, window_bounds = array<i64: 8, 8>}, {pipeline_mode = #tpu.pipeline_mode<synchronous>, transform_indices = @transform_12, window_bounds = array<i64: 8, 8>}, {pipeline_mode = #tpu.pipeline_mode<synchronous>, transform_indices = @transform_13, window_bounds = array<i64: 8, 1>}, {pipeline_mode = #tpu.pipeline_mode<synchronous>, transform_indices = @transform_14, window_bounds = array<i64: 8, 512>}, {pipeline_mode = #tpu.pipeline_mode<synchronous>, transform_indices = @transform_15, window_bounds = array<i64: 512, 8>}, {pipeline_mode = #tpu.pipeline_mode<synchronous>, transform_indices = @transform_16, window_bounds = array<i64: 512, 64>}, {pipeline_mode = #tpu.pipeline_mode<synchronous>, transform_indices = @transform_17, window_bounds = array<i64: 64, 512>}, {pipeline_mode = #tpu.pipeline_mode<synchronous>, transform_indices = @transform_18, window_bounds = array<i64: 8, 512>}, {pipeline_mode = #tpu.pipeline_mode<synchronous>, transform_indices = @transform_19, window_bounds = array<i64: 8, 8>}, {transform_indices = @transform_20, window_bounds = array<i64: 1, 8, 256>}]} {
    %c0 = arith.constant 0 : index
    %c0_0 = arith.constant 0 : index
    %0 = vector.load %arg3[%c0, %c0_0] : memref<8x72xbf16, #tpu.memory_space<vmem>>, vector<8x72xbf16>
    %c0_1 = arith.constant 0 : index
    %c0_2 = arith.constant 0 : index
    %c0_3 = arith.constant 0 : index
    %1 = vector.load %arg1[%c0_1, %c0_2, %c0_3] : memref<1x72x256xbf16, #tpu.memory_space<vmem>>, vector<1x72x256xbf16>
    %2 = vector.shape_cast %1 : vector<1x72x256xbf16> to vector<72x256xbf16>
    %cst = arith.constant dense<0.000000e+00> : vector<8x256xf32>
    %3 = tpu.matmul %0, %2, %cst {dimension_numbers = #tpu.dot_dimension_numbers<[1], [0], [0], [1], [0, 0, 1, 1], [], []>} : vector<8x72xbf16>, vector<72x256xbf16>, vector<8x256xf32> -> vector<8x256xf32>
    %c0_4 = arith.constant 0 : index
    %c0_5 = arith.constant 0 : index
    %4 = vector.load %arg4[%c0_4, %c0_5] : memref<8x1xf32, #tpu.memory_space<vmem>>, vector<8x1xf32>
    %5 = vector.broadcast %4 : vector<8x1xf32> to vector<8x256xf32>
    %6 = arith.addf %3, %5 : vector<8x256xf32>
    %7 = arith.negf %6 : vector<8x256xf32>
    %8 = math.exp %7 : vector<8x256xf32>
    %cst_6 = arith.constant 1.000000e+00 : f32
    %9 = vector.broadcast %cst_6 : f32 to vector<8x256xf32>
    %10 = arith.addf %9, %8 : vector<8x256xf32>
    %11 = arith.divf %9, %10 : vector<8x256xf32>
    %12 = arith.mulf %6, %11 : vector<8x256xf32>
    %13 = arith.truncf %12 : vector<8x256xf32> to vector<8x256xbf16>
    %c0_7 = arith.constant 0 : index
    %c0_8 = arith.constant 0 : index
    %14 = vector.load %arg5[%c0_7, %c0_8] : memref<256x64xbf16, #tpu.memory_space<vmem>>, vector<256x64xbf16>
    %cst_9 = arith.constant dense<0.000000e+00> : vector<8x64xf32>
    %15 = tpu.matmul %13, %14, %cst_9 {dimension_numbers = #tpu.dot_dimension_numbers<[1], [0], [0], [1], [0, 0, 1, 1], [], []>} : vector<8x256xbf16>, vector<256x64xbf16>, vector<8x64xf32> -> vector<8x64xf32>
    %c0_10 = arith.constant 0 : index
    %c0_11 = arith.constant 0 : index
    %16 = vector.load %arg6[%c0_10, %c0_11] : memref<8x8xbf16, #tpu.memory_space<vmem>>, vector<8x8xbf16>
    %17 = arith.truncf %15 : vector<8x64xf32> to vector<8x64xbf16>
    %cst_12 = arith.constant dense<0.000000e+00> : vector<8x64xf32>
    %18 = tpu.matmul %16, %17, %cst_12 {dimension_numbers = #tpu.dot_dimension_numbers<[1], [0], [0], [1], [0, 0, 1, 1], [], []>} : vector<8x8xbf16>, vector<8x64xbf16>, vector<8x64xf32> -> vector<8x64xf32>
    %c0_13 = arith.constant 0 : index
    %c0_14 = arith.constant 0 : index
    %19 = vector.load %arg7[%c0_13, %c0_14] : memref<8x1xf32, #tpu.memory_space<vmem>>, vector<8x1xf32>
    %20 = vector.broadcast %19 : vector<8x1xf32> to vector<8x64xf32>
    %21 = arith.addf %18, %20 : vector<8x64xf32>
    %cst_15 = arith.constant dense<0.000000e+00> : vector<64xf32>
    %22 = vector.multi_reduction <add>, %21, %cst_15 [0] : vector<8x64xf32> to vector<64xf32>
    %23 = vector.shape_cast %22 : vector<64xf32> to vector<1x64xf32>
    %cst_16 = arith.constant 8.000000e+00 : f32
    %24 = vector.broadcast %cst_16 : f32 to vector<1x64xf32>
    %25 = arith.divf %23, %24 : vector<1x64xf32>
    %26 = vector.broadcast %25 : vector<1x64xf32> to vector<8x64xf32>
    %27 = arith.subf %21, %26 : vector<8x64xf32>
    %28 = arith.mulf %27, %27 : vector<8x64xf32>
    %cst_17 = arith.constant dense<0.000000e+00> : vector<64xf32>
    %29 = vector.multi_reduction <add>, %28, %cst_17 [0] : vector<8x64xf32> to vector<64xf32>
    %30 = vector.shape_cast %29 : vector<64xf32> to vector<1x64xf32>
    %cst_18 = arith.constant 8.000000e+00 : f32
    %31 = vector.broadcast %cst_18 : f32 to vector<1x64xf32>
    %32 = arith.divf %30, %31 : vector<1x64xf32>
    %cst_19 = arith.constant 9.99999974E-6 : f32
    %33 = vector.broadcast %cst_19 : f32 to vector<1x64xf32>
    %34 = arith.addf %32, %33 : vector<1x64xf32>
    %35 = math.rsqrt %34 : vector<1x64xf32>
    %36 = vector.broadcast %35 : vector<1x64xf32> to vector<8x64xf32>
    %37 = arith.mulf %27, %36 : vector<8x64xf32>
    %c0_20 = arith.constant 0 : index
    %c0_21 = arith.constant 0 : index
    %38 = vector.load %arg8[%c0_20, %c0_21] : memref<8x1xf32, #tpu.memory_space<vmem>>, vector<8x1xf32>
    %39 = vector.broadcast %38 : vector<8x1xf32> to vector<8x64xf32>
    %40 = arith.mulf %37, %39 : vector<8x64xf32>
    %c0_22 = arith.constant 0 : index
    %c0_23 = arith.constant 0 : index
    %41 = vector.load %arg9[%c0_22, %c0_23] : memref<8x1xf32, #tpu.memory_space<vmem>>, vector<8x1xf32>
    %42 = vector.broadcast %41 : vector<8x1xf32> to vector<8x64xf32>
    %43 = arith.addf %40, %42 : vector<8x64xf32>
    %cst_24 = arith.constant 5.000000e-01 : f32
    %44 = vector.broadcast %cst_24 : f32 to vector<8x64xf32>
    %45 = arith.mulf %44, %43 : vector<8x64xf32>
    %cst_25 = arith.constant 0.707106769 : f32
    %46 = vector.broadcast %cst_25 : f32 to vector<8x64xf32>
    %47 = arith.mulf %43, %46 : vector<8x64xf32>
    %cst_26 = arith.constant 0.000000e+00 : f32
    %48 = vector.broadcast %cst_26 : f32 to vector<8x64xf32>
    %49 = arith.cmpf oge, %47, %48 : vector<8x64xf32>
    %cst_27 = arith.constant 1.000000e+00 : f32
    %cst_28 = arith.constant -1.000000e+00 : f32
    %50 = vector.broadcast %cst_27 : f32 to vector<8x64xf32>
    %51 = vector.broadcast %cst_28 : f32 to vector<8x64xf32>
    %52 = arith.select %49, %50, %51 : vector<8x64xi1>, vector<8x64xf32>
    %53 = math.absf %47 : vector<8x64xf32>
    %cst_29 = arith.constant 0.327591091 : f32
    %54 = vector.broadcast %cst_29 : f32 to vector<8x64xf32>
    %55 = arith.mulf %54, %53 : vector<8x64xf32>
    %cst_30 = arith.constant 1.000000e+00 : f32
    %56 = vector.broadcast %cst_30 : f32 to vector<8x64xf32>
    %57 = arith.addf %56, %55 : vector<8x64xf32>
    %cst_31 = arith.constant 1.000000e+00 : f32
    %58 = vector.broadcast %cst_31 : f32 to vector<8x64xf32>
    %59 = arith.divf %58, %57 : vector<8x64xf32>
    %cst_32 = arith.constant 1.06140542 : f32
    %60 = vector.broadcast %cst_32 : f32 to vector<8x64xf32>
    %61 = arith.mulf %60, %59 : vector<8x64xf32>
    %cst_33 = arith.constant -1.45315206 : f32
    %62 = vector.broadcast %cst_33 : f32 to vector<8x64xf32>
    %63 = arith.addf %61, %62 : vector<8x64xf32>
    %64 = arith.mulf %63, %59 : vector<8x64xf32>
    %cst_34 = arith.constant 1.42141378 : f32
    %65 = vector.broadcast %cst_34 : f32 to vector<8x64xf32>
    %66 = arith.addf %64, %65 : vector<8x64xf32>
    %67 = arith.mulf %66, %59 : vector<8x64xf32>
    %cst_35 = arith.constant -0.284496725 : f32
    %68 = vector.broadcast %cst_35 : f32 to vector<8x64xf32>
    %69 = arith.addf %67, %68 : vector<8x64xf32>
    %70 = arith.mulf %69, %59 : vector<8x64xf32>
    %cst_36 = arith.constant 0.254829586 : f32
    %71 = vector.broadcast %cst_36 : f32 to vector<8x64xf32>
    %72 = arith.addf %70, %71 : vector<8x64xf32>
    %73 = arith.mulf %72, %59 : vector<8x64xf32>
    %cst_37 = arith.constant 0.000000e+00 : f32
    %74 = vector.broadcast %cst_37 : f32 to vector<8x64xf32>
    %75 = arith.subf %74, %53 : vector<8x64xf32>
    %76 = arith.mulf %75, %53 : vector<8x64xf32>
    %77 = math.exp %76 : vector<8x64xf32>
    %78 = arith.mulf %73, %77 : vector<8x64xf32>
    %cst_38 = arith.constant 1.000000e+00 : f32
    %79 = vector.broadcast %cst_38 : f32 to vector<8x64xf32>
    %80 = arith.subf %79, %78 : vector<8x64xf32>
    %81 = arith.mulf %52, %80 : vector<8x64xf32>
    %cst_39 = arith.constant 1.000000e+00 : f32
    %82 = vector.broadcast %cst_39 : f32 to vector<8x64xf32>
    %83 = arith.addf %82, %81 : vector<8x64xf32>
    %84 = arith.mulf %45, %83 : vector<8x64xf32>
    %85 = arith.truncf %84 : vector<8x64xf32> to vector<8x64xbf16>
    %c0_40 = arith.constant 0 : index
    %c0_41 = arith.constant 0 : index
    %86 = vector.load %arg10[%c0_40, %c0_41] : memref<8x8xbf16, #tpu.memory_space<vmem>>, vector<8x8xbf16>
    %cst_42 = arith.constant dense<0.000000e+00> : vector<8x256xf32>
    %87 = tpu.matmul %86, %13, %cst_42 {dimension_numbers = #tpu.dot_dimension_numbers<[1], [0], [0], [1], [0, 0, 1, 1], [], []>} : vector<8x8xbf16>, vector<8x256xbf16>, vector<8x256xf32> -> vector<8x256xf32>
    %c0_43 = arith.constant 0 : index
    %c0_44 = arith.constant 0 : index
    %88 = vector.load %arg11[%c0_43, %c0_44] : memref<8x8xbf16, #tpu.memory_space<vmem>>, vector<8x8xbf16>
    %cst_45 = arith.constant dense<0.000000e+00> : vector<8x64xf32>
    %89 = tpu.matmul %88, %85, %cst_45 {dimension_numbers = #tpu.dot_dimension_numbers<[1], [0], [0], [1], [0, 0, 1, 1], [], []>} : vector<8x8xbf16>, vector<8x64xbf16>, vector<8x64xf32> -> vector<8x64xf32>
    %c0_46 = arith.constant 0 : index
    %c0_47 = arith.constant 0 : index
    %90 = vector.load %arg12[%c0_46, %c0_47] : memref<8x8xbf16, #tpu.memory_space<vmem>>, vector<8x8xbf16>
    %cst_48 = arith.constant dense<0.000000e+00> : vector<8x64xf32>
    %91 = tpu.matmul %90, %85, %cst_48 {dimension_numbers = #tpu.dot_dimension_numbers<[1], [0], [0], [1], [0, 0, 1, 1], [], []>} : vector<8x8xbf16>, vector<8x64xbf16>, vector<8x64xf32> -> vector<8x64xf32>
    %c0_49 = arith.constant 0 : index
    %c0_50 = arith.constant 0 : index
    %92 = vector.load %arg16[%c0_49, %c0_50] : memref<512x8xbf16, #tpu.memory_space<vmem>>, vector<512x8xbf16>
    %93 = arith.truncf %87 : vector<8x256xf32> to vector<8x256xbf16>
    %cst_51 = arith.constant dense<0.000000e+00> : vector<512x256xf32>
    %94 = tpu.matmul %92, %93, %cst_51 {dimension_numbers = #tpu.dot_dimension_numbers<[1], [0], [0], [1], [0, 0, 1, 1], [], []>} : vector<512x8xbf16>, vector<8x256xbf16>, vector<512x256xf32> -> vector<512x256xf32>
    %c0_52 = arith.constant 0 : index
    %c0_53 = arith.constant 0 : index
    %95 = vector.load %arg16[%c0_52, %c0_53] : memref<512x8xbf16, #tpu.memory_space<vmem>>, vector<512x8xbf16>
    %96 = arith.truncf %89 : vector<8x64xf32> to vector<8x64xbf16>
    %cst_54 = arith.constant dense<0.000000e+00> : vector<512x64xf32>
    %97 = tpu.matmul %95, %96, %cst_54 {dimension_numbers = #tpu.dot_dimension_numbers<[1], [0], [0], [1], [0, 0, 1, 1], [], []>} : vector<512x8xbf16>, vector<8x64xbf16>, vector<512x64xf32> -> vector<512x64xf32>
    %c0_55 = arith.constant 0 : index
    %c0_56 = arith.constant 0 : index
    %98 = vector.load %arg17[%c0_55, %c0_56] : memref<512x64xf32, #tpu.memory_space<vmem>>, vector<512x64xf32>
    %99 = arith.mulf %97, %98 : vector<512x64xf32>
    %cst_57 = arith.constant dense<0.000000e+00> : vector<512xf32>
    %100 = vector.multi_reduction <add>, %99, %cst_57 [1] : vector<512x64xf32> to vector<512xf32>
    %101 = vector.shape_cast %100 : vector<512xf32> to vector<512x1xf32>
    %102 = math.absf %89 : vector<8x64xf32>
    %cst_58 = arith.constant dense<0xFF800000> : vector<8xf32>
    %103 = vector.multi_reduction <maximumf>, %102, %cst_58 [1] : vector<8x64xf32> to vector<8xf32>
    %104 = vector.shape_cast %103 : vector<8xf32> to vector<8x1xf32>
    %105 = math.absf %87 : vector<8x256xf32>
    %cst_59 = arith.constant 1.000000e+00 : f32
    %106 = vector.broadcast %cst_59 : f32 to vector<8x256xf32>
    %107 = arith.mulf %106, %105 : vector<8x256xf32>
    %108 = vector.broadcast %104 : vector<8x1xf32> to vector<8x256xf32>
    %109 = arith.mulf %107, %108 : vector<8x256xf32>
    %c0_60 = arith.constant 0 : index
    %c0_61 = arith.constant 0 : index
    %110 = vector.load %arg16[%c0_60, %c0_61] : memref<512x8xbf16, #tpu.memory_space<vmem>>, vector<512x8xbf16>
    %111 = arith.truncf %109 : vector<8x256xf32> to vector<8x256xbf16>
    %cst_62 = arith.constant dense<0.000000e+00> : vector<512x256xf32>
    %112 = tpu.matmul %110, %111, %cst_62 {dimension_numbers = #tpu.dot_dimension_numbers<[1], [0], [0], [1], [0, 0, 1, 1], [], []>} : vector<512x8xbf16>, vector<8x256xbf16>, vector<512x256xf32> -> vector<512x256xf32>
    %cst_63 = arith.constant 1.000000e+00 : f32
    %113 = vector.broadcast %cst_63 : f32 to vector<512x1xf32>
    %114 = arith.mulf %113, %101 : vector<512x1xf32>
    %115 = vector.broadcast %114 : vector<512x1xf32> to vector<512x256xf32>
    %116 = arith.mulf %115, %94 : vector<512x256xf32>
    %117 = arith.subf %116, %112 : vector<512x256xf32>
    %118 = math.exp %117 : vector<512x256xf32>
    %119 = arith.truncf %118 : vector<512x256xf32> to vector<512x256xbf16>
    %c0_64 = arith.constant 0 : index
    %c0_65 = arith.constant 0 : index
    %120 = vector.load %arg15[%c0_64, %c0_65] : memref<8x512xbf16, #tpu.memory_space<vmem>>, vector<8x512xbf16>
    %cst_66 = arith.constant dense<0.000000e+00> : vector<8x256xf32>
    %121 = tpu.matmul %120, %119, %cst_66 {dimension_numbers = #tpu.dot_dimension_numbers<[1], [0], [0], [1], [0, 0, 1, 1], [], []>} : vector<8x512xbf16>, vector<512x256xbf16>, vector<8x256xf32> -> vector<8x256xf32>
    %122 = tpu.reciprocal %121 {approx = true} : vector<8x256xf32> -> vector<8x256xf32>
    %c0_67 = arith.constant 0 : index
    %c0_68 = arith.constant 0 : index
    %123 = vector.load %arg19[%c0_67, %c0_68] : memref<8x512xf32, #tpu.memory_space<vmem>>, vector<8x512xf32>
    %c0_69 = arith.constant 0 : index
    %c0_70 = arith.constant 0 : index
    %124 = vector.load %arg18[%c0_69, %c0_70] : memref<64x512xbf16, #tpu.memory_space<vmem>>, vector<64x512xbf16>
    %125 = arith.truncf %91 : vector<8x64xf32> to vector<8x64xbf16>
    %cst_71 = arith.constant dense<0.000000e+00> : vector<8x512xf32>
    %126 = tpu.matmul %125, %124, %cst_71 {dimension_numbers = #tpu.dot_dimension_numbers<[1], [0], [0], [1], [0, 0, 1, 1], [], []>} : vector<8x64xbf16>, vector<64x512xbf16>, vector<8x512xf32> -> vector<8x512xf32>
    %127 = arith.mulf %123, %126 : vector<8x512xf32>
    %128 = arith.truncf %127 : vector<8x512xf32> to vector<8x512xbf16>
    %cst_72 = arith.constant dense<0.000000e+00> : vector<8x256xf32>
    %129 = tpu.matmul %128, %119, %cst_72 {dimension_numbers = #tpu.dot_dimension_numbers<[1], [0], [0], [1], [0, 0, 1, 1], [], []>} : vector<8x512xbf16>, vector<512x256xbf16>, vector<8x256xf32> -> vector<8x256xf32>
    %c0_73 = arith.constant 0 : index
    %c0_74 = arith.constant 0 : index
    %130 = vector.load %arg20[%c0_73, %c0_74] : memref<8x8xf32, #tpu.memory_space<vmem>>, vector<8x8xf32>
    %cst_75 = arith.constant dense<0.000000e+00> : vector<8x256xf32>
    %131 = tpu.matmul %130, %122, %cst_75 {dimension_numbers = #tpu.dot_dimension_numbers<[1], [0], [0], [1], [0, 0, 1, 1], [], []>} : vector<8x8xf32>, vector<8x256xf32>, vector<8x256xf32> -> vector<8x256xf32>
    %132 = arith.mulf %129, %131 : vector<8x256xf32>
    %c0_76 = arith.constant 0 : index
    %c0_77 = arith.constant 0 : index
    %133 = vector.load %arg13[%c0_76, %c0_77] : memref<8x8xbf16, #tpu.memory_space<vmem>>, vector<8x8xbf16>
    %134 = arith.truncf %132 : vector<8x256xf32> to vector<8x256xbf16>
    %cst_78 = arith.constant dense<0.000000e+00> : vector<8x256xf32>
    %135 = tpu.matmul %133, %134, %cst_78 {dimension_numbers = #tpu.dot_dimension_numbers<[1], [0], [0], [1], [0, 0, 1, 1], [], []>} : vector<8x8xbf16>, vector<8x256xbf16>, vector<8x256xf32> -> vector<8x256xf32>
    %c0_79 = arith.constant 0 : index
    %c0_80 = arith.constant 0 : index
    %136 = vector.load %arg14[%c0_79, %c0_80] : memref<8x1xf32, #tpu.memory_space<vmem>>, vector<8x1xf32>
    %137 = vector.broadcast %136 : vector<8x1xf32> to vector<8x256xf32>
    %138 = arith.addf %135, %137 : vector<8x256xf32>
    %c0_81 = arith.constant 0 : index
    %c0_82 = arith.constant 0 : index
    %c0_83 = arith.constant 0 : index
    %139 = vector.load %arg2[%c0_81, %c0_82, %c0_83] : memref<1x8x256xf32, #tpu.memory_space<vmem>>, vector<1x8x256xf32>
    %140 = vector.shape_cast %139 : vector<1x8x256xf32> to vector<8x256xf32>
    %141 = arith.addf %138, %140 : vector<8x256xf32>
    %c0_84 = arith.constant 0 : index
    %c0_85 = arith.constant 0 : index
    %c0_86 = arith.constant 0 : index
    %142 = vector.load %arg21[%c0_84, %c0_85, %c0_86] : memref<1x8x256xf32, #tpu.memory_space<vmem>>, vector<1x8x256xf32>
    %143 = vector.shape_cast %142 : vector<1x8x256xf32> to vector<8x256xf32>
    %144 = vector.shape_cast %141 : vector<8x256xf32> to vector<1x8x256xf32>
    tpu.vector_store %arg21[%c0_84, %c0_85, %c0_86], %144 {strides = array<i32>} : memref<1x8x256xf32, #tpu.memory_space<vmem>>, vector<1x8x256xf32>,
    return
  }
  func.func @transform_0(%arg0: i32) -> (i32, i32, i32) {
    %c0_i32 = arith.constant 0 : i32
    %c0_i32_0 = arith.constant 0 : i32
    %c0_i32_1 = arith.constant 0 : i32
    return %arg0, %c0_i32, %c0_i32_0 : i32, i32, i32
  }
  func.func @transform_1(%arg0: i32) -> (i32, i32, i32) {
    %c0_i32 = arith.constant 0 : i32
    %c0_i32_0 = arith.constant 0 : i32
    %c0_i32_1 = arith.constant 0 : i32
    return %arg0, %c0_i32, %c0_i32_0 : i32, i32, i32
  }
  func.func @transform_2(%arg0: i32) -> (i32, i32) {
    %c0_i32 = arith.constant 0 : i32
    %c0_i32_0 = arith.constant 0 : i32
    %c0_i32_1 = arith.constant 0 : i32
    return %c0_i32, %c0_i32_0 : i32, i32
  }
  func.func @transform_3(%arg0: i32) -> (i32, i32) {
    %c0_i32 = arith.constant 0 : i32
    %c0_i32_0 = arith.constant 0 : i32
    %c0_i32_1 = arith.constant 0 : i32
    return %c0_i32, %c0_i32_0 : i32, i32
  }
  func.func @transform_4(%arg0: i32) -> (i32, i32) {
    %c0_i32 = arith.constant 0 : i32
    %c0_i32_0 = arith.constant 0 : i32
    %c0_i32_1 = arith.constant 0 : i32
    return %c0_i32, %c0_i32_0 : i32, i32
  }
  func.func @transform_5(%arg0: i32) -> (i32, i32) {
    %c0_i32 = arith.constant 0 : i32
    %c0_i32_0 = arith.constant 0 : i32
    %c0_i32_1 = arith.constant 0 : i32
    return %c0_i32, %c0_i32_0 : i32, i32
  }
  func.func @transform_6(%arg0: i32) -> (i32, i32) {
    %c0_i32 = arith.constant 0 : i32
    %c0_i32_0 = arith.constant 0 : i32
    %c0_i32_1 = arith.constant 0 : i32
    return %c0_i32, %c0_i32_0 : i32, i32
  }
  func.func @transform_7(%arg0: i32) -> (i32, i32) {
    %c0_i32 = arith.constant 0 : i32
    %c0_i32_0 = arith.constant 0 : i32
    %c0_i32_1 = arith.constant 0 : i32
    return %c0_i32, %c0_i32_0 : i32, i32
  }
  func.func @transform_8(%arg0: i32) -> (i32, i32) {
    %c0_i32 = arith.constant 0 : i32
    %c0_i32_0 = arith.constant 0 : i32
    %c0_i32_1 = arith.constant 0 : i32
    return %c0_i32, %c0_i32_0 : i32, i32
  }
  func.func @transform_9(%arg0: i32) -> (i32, i32) {
    %c0_i32 = arith.constant 0 : i32
    %c0_i32_0 = arith.constant 0 : i32
    %c0_i32_1 = arith.constant 0 : i32
    return %c0_i32, %c0_i32_0 : i32, i32
  }
  func.func @transform_10(%arg0: i32) -> (i32, i32) {
    %c0_i32 = arith.constant 0 : i32
    %c0_i32_0 = arith.constant 0 : i32
    %c0_i32_1 = arith.constant 0 : i32
    return %c0_i32, %c0_i32_0 : i32, i32
  }
  func.func @transform_11(%arg0: i32) -> (i32, i32) {
    %c0_i32 = arith.constant 0 : i32
    %c0_i32_0 = arith.constant 0 : i32
    %c0_i32_1 = arith.constant 0 : i32
    return %c0_i32, %c0_i32_0 : i32, i32
  }
  func.func @transform_12(%arg0: i32) -> (i32, i32) {
    %c0_i32 = arith.constant 0 : i32
    %c0_i32_0 = arith.constant 0 : i32
    %c0_i32_1 = arith.constant 0 : i32
    return %c0_i32, %c0_i32_0 : i32, i32
  }
  func.func @transform_13(%arg0: i32) -> (i32, i32) {
    %c0_i32 = arith.constant 0 : i32
    %c0_i32_0 = arith.constant 0 : i32
    %c0_i32_1 = arith.constant 0 : i32
    return %c0_i32, %c0_i32_0 : i32, i32
  }
  func.func @transform_14(%arg0: i32) -> (i32, i32) {
    %c0_i32 = arith.constant 0 : i32
    %c0_i32_0 = arith.constant 0 : i32
    %c0_i32_1 = arith.constant 0 : i32
    return %c0_i32, %c0_i32_0 : i32, i32
  }
  func.func @transform_15(%arg0: i32) -> (i32, i32) {
    %c0_i32 = arith.constant 0 : i32
    %c0_i32_0 = arith.constant 0 : i32
    %c0_i32_1 = arith.constant 0 : i32
    return %c0_i32, %c0_i32_0 : i32, i32
  }
  func.func @transform_16(%arg0: i32) -> (i32, i32) {
    %c0_i32 = arith.constant 0 : i32
    %c0_i32_0 = arith.constant 0 : i32
    %c0_i32_1 = arith.constant 0 : i32
    return %c0_i32, %c0_i32_0 : i32, i32
  }
  func.func @transform_17(%arg0: i32) -> (i32, i32) {
    %c0_i32 = arith.constant 0 : i32
    %c0_i32_0 = arith.constant 0 : i32
    %c0_i32_1 = arith.constant 0 : i32
    return %c0_i32, %c0_i32_0 : i32, i32
  }
  func.func @transform_18(%arg0: i32) -> (i32, i32) {
    %c0_i32 = arith.constant 0 : i32
    %c0_i32_0 = arith.constant 0 : i32
    %c0_i32_1 = arith.constant 0 : i32
    return %c0_i32, %c0_i32_0 : i32, i32
  }
  func.func @transform_19(%arg0: i32) -> (i32, i32) {
    %c0_i32 = arith.constant 0 : i32
    %c0_i32_0 = arith.constant 0 : i32
    %c0_i32_1 = arith.constant 0 : i32
    return %c0_i32, %c0_i32_0 : i32, i32
  }
  func.func @transform_20(%arg0: i32) -> (i32, i32, i32) {
    %c0_i32 = arith.constant 0 : i32
    %c0_i32_0 = arith.constant 0 : i32
    %c0_i32_1 = arith.constant 0 : i32
    return %arg0, %c0_i32, %c0_i32_0 : i32, i32, i32
  }
}

</mosaic_0001>

<llo_original>
// kernel: tpu_custom_call.1
$region0: #{tpu_custom_call.1}
  #allocation0 [shape = 'u32[]', space=smem, size = 0x4, offset = 0x4, fixed_abs, tag = 'smem constant byte address 0x4 - core index']
  #allocation1 [shape = 'u32[144,128]{1,0:T(1,128)}', space=vmem, size = 0x12000, scoped, tag = 'internal scratch']
  %s0 = inlined_call_operand.vmem [shape: bf16[2,72,256], index: 0, kind: input, shape index: {}]
  %s1 = inlined_call_operand.vmem [shape: f32[2,8,256], index: 1, kind: input, shape index: {}]
  %s2 = inlined_call_operand.vmem [shape: bf16[8,72], index: 2, kind: input, shape index: {}]
  %s3 = inlined_call_operand.vmem [shape: f32[8,1], index: 3, kind: input, shape index: {}]
  %s4 = inlined_call_operand.vmem [shape: bf16[256,64], index: 4, kind: input, shape index: {}]
  %s5 = inlined_call_operand.vmem [shape: bf16[8,8], index: 5, kind: input, shape index: {}]
  %s6 = inlined_call_operand.vmem [shape: f32[8,1], index: 6, kind: input, shape index: {}]
  %s7 = inlined_call_operand.vmem [shape: f32[8,1], index: 7, kind: input, shape index: {}]
  %s8 = inlined_call_operand.vmem [shape: f32[8,1], index: 8, kind: input, shape index: {}]
  %s9 = inlined_call_operand.vmem [shape: bf16[8,8], index: 9, kind: input, shape index: {}]
  %s10 = inlined_call_operand.vmem [shape: bf16[8,8], index: 10, kind: input, shape index: {}]
  %s11 = inlined_call_operand.vmem [shape: bf16[8,8], index: 11, kind: input, shape index: {}]
  %s12 = inlined_call_operand.vmem [shape: bf16[8,8], index: 12, kind: input, shape index: {}]
  %s13 = inlined_call_operand.vmem [shape: f32[8,1], index: 13, kind: input, shape index: {}]
  %s14 = inlined_call_operand.vmem [shape: bf16[8,512], index: 14, kind: input, shape index: {}]
  %s15 = inlined_call_operand.vmem [shape: bf16[512,8], index: 15, kind: input, shape index: {}]
  %s16 = inlined_call_operand.vmem [shape: f32[512,64], index: 16, kind: input, shape index: {}]
  %s17 = inlined_call_operand.vmem [shape: bf16[64,512], index: 17, kind: input, shape index: {}]
  %s18 = inlined_call_operand.vmem [shape: f32[8,512], index: 18, kind: input, shape index: {}]
  %s19 = inlined_call_operand.vmem [shape: f32[8,8], index: 19, kind: input, shape index: {}]
  %s20 = inlined_call_operand.hbm [shape: f32[2,8,256], index: 20, kind: output, shape index: {}]
  %s21 = sld [smem:[#allocation0]]
  $region113: #{tpu_custom_call.1} parent=0
    _
  %s23 = ssub.s32 1, %s21
  %s24 = scalar_select 0, %s23, %s21
  $region1: #{tpu_custom_call.1} parent=0
    #allocation2 [shape = 'u8[16384]{0}', space=vmem, size = 0x4000, scoped, tag = 'output window, operand 0']
    #allocation3 [shape = 's32[2]{0}', space=sflag, size = 0x8, scoped, tag = 'scoped memory for tpu_custom_call.1']
    %25 = vsyncpa [#allocation3], 0
    %s26 = scalar_lea.sflag [#allocation3], 1
    %27 = vsyncpa %s26, 0
    loop: start=0, step=1, limit=4
    $region2: #{tpu_custom_call.1} parent=1 // loop_pre_header
      _
    $region3: #{tpu_custom_call.1} parent=1 // loop_header
      %s29 = sphi 0, %s33
      %p30 = scmp.ge.s32.totalorder %s29, 4
      %s39 = sphi 0, %s41
      %s42 = sphi 0, %s39
      %s43 = sphi 0, %s42
      %s59 = sphi 0, %s43
      %s65 = sphi 0, %s67
      %s68 = sphi 0, %s65
      %s69 = sphi 0, %s68
      %s85 = sphi 0, %s69
      %s89 = sphi 0, %s89
      %s91 = sphi 0, %s89
      %s92 = sphi 0, %s91
      %s106 = sphi 0, %s92
      %s110 = sphi 0, %s110
      %s112 = sphi 0, %s110
      %s113 = sphi 0, %s112
      %s127 = sphi 0, %s113
      %s131 = sphi 0, %s131
      %s133 = sphi 0, %s131
      %s134 = sphi 0, %s133
      %s148 = sphi 0, %s134
      %s152 = sphi 0, %s152
      %s154 = sphi 0, %s152
      %s155 = sphi 0, %s154
      %s169 = sphi 0, %s155
      %s173 = sphi 0, %s173
      %s175 = sphi 0, %s173
      %s176 = sphi 0, %s175
      %s190 = sphi 0, %s176
      %s194 = sphi 0, %s194
      %s196 = sphi 0, %s194
      %s197 = sphi 0, %s196
      %s211 = sphi 0, %s197
      %s215 = sphi 0, %s215
      %s217 = sphi 0, %s215
      %s218 = sphi 0, %s217
      %s232 = sphi 0, %s218
      %s236 = sphi 0, %s236
      %s238 = sphi 0, %s236
      %s239 = sphi 0, %s238
      %s253 = sphi 0, %s239
      %s257 = sphi 0, %s257
      %s259 = sphi 0, %s257
      %s260 = sphi 0, %s259
      %s274 = sphi 0, %s260
      %s278 = sphi 0, %s278
      %s280 = sphi 0, %s278
      %s281 = sphi 0, %s280
      %s295 = sphi 0, %s281
      %s299 = sphi 0, %s299
      %s301 = sphi 0, %s299
      %s302 = sphi 0, %s301
      %s316 = sphi 0, %s302
      %s320 = sphi 0, %s320
      %s322 = sphi 0, %s320
      %s323 = sphi 0, %s322
      %s337 = sphi 0, %s323
      %s341 = sphi 0, %s341
      %s343 = sphi 0, %s341
      %s344 = sphi 0, %s343
      %s358 = sphi 0, %s344
      %s362 = sphi 0, %s362
      %s364 = sphi 0, %s362
      %s365 = sphi 0, %s364
      %s379 = sphi 0, %s365
      %s383 = sphi 0, %s383
      %s385 = sphi 0, %s383
      %s386 = sphi 0, %s385
      %s400 = sphi 0, %s386
      %s404 = sphi 0, %s404
      %s406 = sphi 0, %s404
      %s407 = sphi 0, %s406
      %s421 = sphi 0, %s407
      %s425 = sphi 0, %s425
      %s427 = sphi 0, %s425
      %s428 = sphi 0, %s427
      %s442 = sphi 0, %s428
      %s446 = sphi 0, %s446
      %s448 = sphi 0, %s446
      %s449 = sphi 0, %s448
      %s463 = sphi 0, %s449
      %s469 = sphi 0, %s471
      %s472 = sphi 0, %s469
      %s473 = sphi 0, %s472
      %s489 = sphi 0, %s473
    $region4: #{tpu_custom_call.1} parent=1 // loop_header_branch
      %32 = sbr.rel (%p30) target = $region8
    $region5: #{tpu_custom_call.1} parent=1 // loop_body
      %s34 = ssub.s32 %s29, 1
      %s35 = ssub.s32 %s29, 2
      %s36 = sadd.s32 %s29, 1
      %s37 = ssub.s32 %s29, %s36
      %p38 = scmp.eq.s32.totalorder %s37, 0
      %s40 = sadd.s32 %s39, 1
      %s41 = scalar_select %p38, %s39, %s40
      %p44 = pneg %p38
      %p45 = scmp.eq.s32.totalorder %s29, 1
      %p46 = por %p44, %p45
      %p47 = scmp.ne.s32.totalorder %s39, %s42
      %p48 = scmp.eq.s32.totalorder %s29, 0
      %p49 = por %p47, %p48
      %p50 = scmp.ne.s32.totalorder %s39, %s42
      %p51 = scmp.eq.s32.totalorder %s34, 1
      %p52 = por %p50, %p51
      %p53 = scmp.ne.s32.totalorder %s42, %s43
      %p54 = scmp.eq.s32.totalorder %s34, 0
      %p55 = por %p53, %p54
      %p56 = scmp.ne.s32.totalorder %s42, %s43
      %p57 = scmp.eq.s32.totalorder %s35, 1
      %p58 = por %p56, %p57
      %p60 = scmp.ne.s32.totalorder %s43, %s59
      %p61 = scmp.eq.s32.totalorder %s35, 0
      %p62 = por %p60, %p61
      %s63 = ssub.s32 %s29, %s36
      %p64 = scmp.eq.s32.totalorder %s63, 0
      %s66 = sadd.s32 %s65, 1
      %s67 = scalar_select %p64, %s65, %s66
      %p70 = pneg %p64
      %p71 = scmp.eq.s32.totalorder %s29, 1
      %p72 = por %p70, %p71
      %p73 = scmp.ne.s32.totalorder %s65, %s68
      %p74 = scmp.eq.s32.totalorder %s29, 0
      %p75 = por %p73, %p74
      %p76 = scmp.ne.s32.totalorder %s65, %s68
      %p77 = scmp.eq.s32.totalorder %s34, 1
      %p78 = por %p76, %p77
      %p79 = scmp.ne.s32.totalorder %s68, %s69
      %p80 = scmp.eq.s32.totalorder %s34, 0
      %p81 = por %p79, %p80
      %p82 = scmp.ne.s32.totalorder %s68, %s69
      %p83 = scmp.eq.s32.totalorder %s35, 1
      %p84 = por %p82, %p83
      %p86 = scmp.ne.s32.totalorder %s69, %s85
      %p87 = scmp.eq.s32.totalorder %s35, 0
      %p88 = por %p86, %p87
      %s90 = sadd.s32 %s89, 1
      %p93 = scmp.eq.s32.totalorder %s29, 1
      %p94 = scmp.ne.s32.totalorder %s89, %s91
      %p95 = scmp.eq.s32.totalorder %s29, 0
      %p96 = por %p94, %p95
      %p97 = scmp.ne.s32.totalorder %s89, %s91
      %p98 = scmp.eq.s32.totalorder %s34, 1
      %p99 = por %p97, %p98
      %p100 = scmp.ne.s32.totalorder %s91, %s92
      %p101 = scmp.eq.s32.totalorder %s34, 0
      %p102 = por %p100, %p101
      %p103 = scmp.ne.s32.totalorder %s91, %s92
      %p104 = scmp.eq.s32.totalorder %s35, 1
      %p105 = por %p103, %p104
      %p107 = scmp.ne.s32.totalorder %s92, %s106
      %p108 = scmp.eq.s32.totalorder %s35, 0
      %p109 = por %p107, %p108
      %s111 = sadd.s32 %s110, 1
      %p114 = scmp.eq.s32.totalorder %s29, 1
      %p115 = scmp.ne.s32.totalorder %s110, %s112
      %p116 = scmp.eq.s32.totalorder %s29, 0
      %p117 = por %p115, %p116
      %p118 = scmp.ne.s32.totalorder %s110, %s112
      %p119 = scmp.eq.s32.totalorder %s34, 1
      %p120 = por %p118, %p119
      %p121 = scmp.ne.s32.totalorder %s112, %s113
      %p122 = scmp.eq.s32.totalorder %s34, 0
      %p123 = por %p121, %p122
      %p124 = scmp.ne.s32.totalorder %s112, %s113
      %p125 = scmp.eq.s32.totalorder %s35, 1
      %p126 = por %p124, %p125
      %p128 = scmp.ne.s32.totalorder %s113, %s127
      %p129 = scmp.eq.s32.totalorder %s35, 0
      %p130 = por %p128, %p129
      %s132 = sadd.s32 %s131, 1
      %p135 = scmp.eq.s32.totalorder %s29, 1
      %p136 = scmp.ne.s32.totalorder %s131, %s133
      %p137 = scmp.eq.s32.totalorder %s29, 0
      %p138 = por %p136, %p137
      %p139 = scmp.ne.s32.totalorder %s131, %s133
      %p140 = scmp.eq.s32.totalorder %s34, 1
      %p141 = por %p139, %p140
      %p142 = scmp.ne.s32.totalorder %s133, %s134
      %p143 = scmp.eq.s32.totalorder %s34, 0
      %p144 = por %p142, %p143
      %p145 = scmp.ne.s32.totalorder %s133, %s134
      %p146 = scmp.eq.s32.totalorder %s35, 1
      %p147 = por %p145, %p146
      %p149 = scmp.ne.s32.totalorder %s134, %s148
      %p150 = scmp.eq.s32.totalorder %s35, 0
      %p151 = por %p149, %p150
      %s153 = sadd.s32 %s152, 1
      %p156 = scmp.eq.s32.totalorder %s29, 1
      %p157 = scmp.ne.s32.totalorder %s152, %s154
      %p158 = scmp.eq.s32.totalorder %s29, 0
      %p159 = por %p157, %p158
      %p160 = scmp.ne.s32.totalorder %s152, %s154
      %p161 = scmp.eq.s32.totalorder %s34, 1
      %p162 = por %p160, %p161
      %p163 = scmp.ne.s32.totalorder %s154, %s155
      %p164 = scmp.eq.s32.totalorder %s34, 0
      %p165 = por %p163, %p164
      %p166 = scmp.ne.s32.totalorder %s154, %s155
      %p167 = scmp.eq.s32.totalorder %s35, 1
      %p168 = por %p166, %p167
      %p170 = scmp.ne.s32.totalorder %s155, %s169
      %p171 = scmp.eq.s32.totalorder %s35, 0
      %p172 = por %p170, %p171
      %s174 = sadd.s32 %s173, 1
      %p177 = scmp.eq.s32.totalorder %s29, 1
      %p178 = scmp.ne.s32.totalorder %s173, %s175
      %p179 = scmp.eq.s32.totalorder %s29, 0
      %p180 = por %p178, %p179
      %p181 = scmp.ne.s32.totalorder %s173, %s175
      %p182 = scmp.eq.s32.totalorder %s34, 1
      %p183 = por %p181, %p182
      %p184 = scmp.ne.s32.totalorder %s175, %s176
      %p185 = scmp.eq.s32.totalorder %s34, 0
      %p186 = por %p184, %p185
      %p187 = scmp.ne.s32.totalorder %s175, %s176
      %p188 = scmp.eq.s32.totalorder %s35, 1
      %p189 = por %p187, %p188
      %p191 = scmp.ne.s32.totalorder %s176, %s190
      %p192 = scmp.eq.s32.totalorder %s35, 0
      %p193 = por %p191, %p192
      %s195 = sadd.s32 %s194, 1
      %p198 = scmp.eq.s32.totalorder %s29, 1
      %p199 = scmp.ne.s32.totalorder %s194, %s196
      %p200 = scmp.eq.s32.totalorder %s29, 0
      %p201 = por %p199, %p200
      %p202 = scmp.ne.s32.totalorder %s194, %s196
      %p203 = scmp.eq.s32.totalorder %s34, 1
      %p204 = por %p202, %p203
      %p205 = scmp.ne.s32.totalorder %s196, %s197
      %p206 = scmp.eq.s32.totalorder %s34, 0
      %p207 = por %p205, %p206
      %p208 = scmp.ne.s32.totalorder %s196, %s197
      %p209 = scmp.eq.s32.totalorder %s35, 1
      %p210 = por %p208, %p209
      %p212 = scmp.ne.s32.totalorder %s197, %s211
      %p213 = scmp.eq.s32.totalorder %s35, 0
      %p214 = por %p212, %p213
      %s216 = sadd.s32 %s215, 1
      %p219 = scmp.eq.s32.totalorder %s29, 1
      %p220 = scmp.ne.s32.totalorder %s215, %s217
      %p221 = scmp.eq.s32.totalorder %s29, 0
      %p222 = por %p220, %p221
      %p223 = scmp.ne.s32.totalorder %s215, %s217
      %p224 = scmp.eq.s32.totalorder %s34, 1
      %p225 = por %p223, %p224
      %p226 = scmp.ne.s32.totalorder %s217, %s218
      %p227 = scmp.eq.s32.totalorder %s34, 0
      %p228 = por %p226, %p227
      %p229 = scmp.ne.s32.totalorder %s217, %s218
      %p230 = scmp.eq.s32.totalorder %s35, 1
      %p231 = por %p229, %p230
      %p233 = scmp.ne.s32.totalorder %s218, %s232
      %p234 = scmp.eq.s32.totalorder %s35, 0
      %p235 = por %p233, %p234
      %s237 = sadd.s32 %s236, 1
      %p240 = scmp.eq.s32.totalorder %s29, 1
      %p241 = scmp.ne.s32.totalorder %s236, %s238
      %p242 = scmp.eq.s32.totalorder %s29, 0
      %p243 = por %p241, %p242
      %p244 = scmp.ne.s32.totalorder %s236, %s238
      %p245 = scmp.eq.s32.totalorder %s34, 1
      %p246 = por %p244, %p245
      %p247 = scmp.ne.s32.totalorder %s238, %s239
      %p248 = scmp.eq.s32.totalorder %s34, 0
      %p249 = por %p247, %p248
      %p250 = scmp.ne.s32.totalorder %s238, %s239
      %p251 = scmp.eq.s32.totalorder %s35, 1
      %p252 = por %p250, %p251
      %p254 = scmp.ne.s32.totalorder %s239, %s253
      %p255 = scmp.eq.s32.totalorder %s35, 0
      %p256 = por %p254, %p255
      %s258 = sadd.s32 %s257, 1
      %p261 = scmp.eq.s32.totalorder %s29, 1
      %p262 = scmp.ne.s32.totalorder %s257, %s259
      %p263 = scmp.eq.s32.totalorder %s29, 0
      %p264 = por %p262, %p263
      %p265 = scmp.ne.s32.totalorder %s257, %s259
      %p266 = scmp.eq.s32.totalorder %s34, 1
      %p267 = por %p265, %p266
      %p268 = scmp.ne.s32.totalorder %s259, %s260
      %p269 = scmp.eq.s32.totalorder %s34, 0
      %p270 = por %p268, %p269
      %p271 = scmp.ne.s32.totalorder %s259, %s260
      %p272 = scmp.eq.s32.totalorder %s35, 1
      %p273 = por %p271, %p272
      %p275 = scmp.ne.s32.totalorder %s260, %s274
      %p276 = scmp.eq.s32.totalorder %s35, 0
      %p277 = por %p275, %p276
      %s279 = sadd.s32 %s278, 1
      %p282 = scmp.eq.s32.totalorder %s29, 1
      %p283 = scmp.ne.s32.totalorder %s278, %s280
      %p284 = scmp.eq.s32.totalorder %s29, 0
      %p285 = por %p283, %p284
      %p286 = scmp.ne.s32.totalorder %s278, %s280
      %p287 = scmp.eq.s32.totalorder %s34, 1
      %p288 = por %p286, %p287
      %p289 = scmp.ne.s32.totalorder %s280, %s281
      %p290 = scmp.eq.s32.totalorder %s34, 0
      %p291 = por %p289, %p290
      %p292 = scmp.ne.s32.totalorder %s280, %s281
      %p293 = scmp.eq.s32.totalorder %s35, 1
      %p294 = por %p292, %p293
      %p296 = scmp.ne.s32.totalorder %s281, %s295
      %p297 = scmp.eq.s32.totalorder %s35, 0
      %p298 = por %p296, %p297
      %s300 = sadd.s32 %s299, 1
      %p303 = scmp.eq.s32.totalorder %s29, 1
      %p304 = scmp.ne.s32.totalorder %s299, %s301
      %p305 = scmp.eq.s32.totalorder %s29, 0
      %p306 = por %p304, %p305
      %p307 = scmp.ne.s32.totalorder %s299, %s301
      %p308 = scmp.eq.s32.totalorder %s34, 1
      %p309 = por %p307, %p308
      %p310 = scmp.ne.s32.totalorder %s301, %s302
      %p311 = scmp.eq.s32.totalorder %s34, 0
      %p312 = por %p310, %p311
      %p313 = scmp.ne.s32.totalorder %s301, %s302
      %p314 = scmp.eq.s32.totalorder %s35, 1
      %p315 = por %p313, %p314
      %p317 = scmp.ne.s32.totalorder %s302, %s316
      %p318 = scmp.eq.s32.totalorder %s35, 0
      %p319 = por %p317, %p318
      %s321 = sadd.s32 %s320, 1
      %p324 = scmp.eq.s32.totalorder %s29, 1
      %p325 = scmp.ne.s32.totalorder %s320, %s322
      %p326 = scmp.eq.s32.totalorder %s29, 0
      %p327 = por %p325, %p326
      %p328 = scmp.ne.s32.totalorder %s320, %s322
      %p329 = scmp.eq.s32.totalorder %s34, 1
      %p330 = por %p328, %p329
      %p331 = scmp.ne.s32.totalorder %s322, %s323
      %p332 = scmp.eq.s32.totalorder %s34, 0
      %p333 = por %p331, %p332
      %p334 = scmp.ne.s32.totalorder %s322, %s323
      %p335 = scmp.eq.s32.totalorder %s35, 1
      %p336 = por %p334, %p335
      %p338 = scmp.ne.s32.totalorder %s323, %s337
      %p339 = scmp.eq.s32.totalorder %s35, 0
      %p340 = por %p338, %p339
      %s342 = sadd.s32 %s341, 1
      %p345 = scmp.eq.s32.totalorder %s29, 1
      %p346 = scmp.ne.s32.totalorder %s341, %s343
      %p347 = scmp.eq.s32.totalorder %s29, 0
      %p348 = por %p346, %p347
      %p349 = scmp.ne.s32.totalorder %s341, %s343
      %p350 = scmp.eq.s32.totalorder %s34, 1
      %p351 = por %p349, %p350
      %p352 = scmp.ne.s32.totalorder %s343, %s344
      %p353 = scmp.eq.s32.totalorder %s34, 0
      %p354 = por %p352, %p353
      %p355 = scmp.ne.s32.totalorder %s343, %s344
      %p356 = scmp.eq.s32.totalorder %s35, 1
      %p357 = por %p355, %p356
      %p359 = scmp.ne.s32.totalorder %s344, %s358
      %p360 = scmp.eq.s32.totalorder %s35, 0
      %p361 = por %p359, %p360
      %s363 = sadd.s32 %s362, 1
      %p366 = scmp.eq.s32.totalorder %s29, 1
      %p367 = scmp.ne.s32.totalorder %s362, %s364
      %p368 = scmp.eq.s32.totalorder %s29, 0
      %p369 = por %p367, %p368
      %p370 = scmp.ne.s32.totalorder %s362, %s364
      %p371 = scmp.eq.s32.totalorder %s34, 1
      %p372 = por %p370, %p371
      %p373 = scmp.ne.s32.totalorder %s364, %s365
      %p374 = scmp.eq.s32.totalorder %s34, 0
      %p375 = por %p373, %p374
      %p376 = scmp.ne.s32.totalorder %s364, %s365
      %p377 = scmp.eq.s32.totalorder %s35, 1
      %p378 = por %p376, %p377
      %p380 = scmp.ne.s32.totalorder %s365, %s379
      %p381 = scmp.eq.s32.totalorder %s35, 0
      %p382 = por %p380, %p381
      %s384 = sadd.s32 %s383, 1
      %p387 = scmp.eq.s32.totalorder %s29, 1
      %p388 = scmp.ne.s32.totalorder %s383, %s385
      %p389 = scmp.eq.s32.totalorder %s29, 0
      %p390 = por %p388, %p389
      %p391 = scmp.ne.s32.totalorder %s383, %s385
      %p392 = scmp.eq.s32.totalorder %s34, 1
      %p393 = por %p391, %p392
      %p394 = scmp.ne.s32.totalorder %s385, %s386
      %p395 = scmp.eq.s32.totalorder %s34, 0
      %p396 = por %p394, %p395
      %p397 = scmp.ne.s32.totalorder %s385, %s386
      %p398 = scmp.eq.s32.totalorder %s35, 1
      %p399 = por %p397, %p398
      %p401 = scmp.ne.s32.totalorder %s386, %s400
      %p402 = scmp.eq.s32.totalorder %s35, 0
      %p403 = por %p401, %p402
      %s405 = sadd.s32 %s404, 1
      %p408 = scmp.eq.s32.totalorder %s29, 1
      %p409 = scmp.ne.s32.totalorder %s404, %s406
      %p410 = scmp.eq.s32.totalorder %s29, 0
      %p411 = por %p409, %p410
      %p412 = scmp.ne.s32.totalorder %s404, %s406
      %p413 = scmp.eq.s32.totalorder %s34, 1
      %p414 = por %p412, %p413
      %p415 = scmp.ne.s32.totalorder %s406, %s407
      %p416 = scmp.eq.s32.totalorder %s34, 0
      %p417 = por %p415, %p416
      %p418 = scmp.ne.s32.totalorder %s406, %s407
      %p419 = scmp.eq.s32.totalorder %s35, 1
      %p420 = por %p418, %p419
      %p422 = scmp.ne.s32.totalorder %s407, %s421
      %p423 = scmp.eq.s32.totalorder %s35, 0
      %p424 = por %p422, %p423
      %s426 = sadd.s32 %s425, 1
      %p429 = scmp.eq.s32.totalorder %s29, 1
      %p430 = scmp.ne.s32.totalorder %s425, %s427
      %p431 = scmp.eq.s32.totalorder %s29, 0
      %p432 = por %p430, %p431
      %p433 = scmp.ne.s32.totalorder %s425, %s427
      %p434 = scmp.eq.s32.totalorder %s34, 1
      %p435 = por %p433, %p434
      %p436 = scmp.ne.s32.totalorder %s427, %s428
      %p437 = scmp.eq.s32.totalorder %s34, 0
      %p438 = por %p436, %p437
      %p439 = scmp.ne.s32.totalorder %s427, %s428
      %p440 = scmp.eq.s32.totalorder %s35, 1
      %p441 = por %p439, %p440
      %p443 = scmp.ne.s32.totalorder %s428, %s442
      %p444 = scmp.eq.s32.totalorder %s35, 0
      %p445 = por %p443, %p444
      %s447 = sadd.s32 %s446, 1
      %p450 = scmp.eq.s32.totalorder %s29, 1
      %p451 = scmp.ne.s32.totalorder %s446, %s448
      %p452 = scmp.eq.s32.totalorder %s29, 0
      %p453 = por %p451, %p452
      %p454 = scmp.ne.s32.totalorder %s446, %s448
      %p455 = scmp.eq.s32.totalorder %s34, 1
      %p456 = por %p454, %p455
      %p457 = scmp.ne.s32.totalorder %s448, %s449
      %p458 = scmp.eq.s32.totalorder %s34, 0
      %p459 = por %p457, %p458
      %p460 = scmp.ne.s32.totalorder %s448, %s449
      %p461 = scmp.eq.s32.totalorder %s35, 1
      %p462 = por %p460, %p461
      %p464 = scmp.ne.s32.totalorder %s449, %s463
      %p465 = scmp.eq.s32.totalorder %s35, 0
      %p466 = por %p464, %p465
      %s467 = ssub.s32 %s29, %s36
      %p468 = scmp.eq.s32.totalorder %s467, 0
      %s470 = sadd.s32 %s469, 1
      %s471 = scalar_select %p468, %s469, %s470
      %p474 = pneg %p468
      %p475 = scmp.eq.s32.totalorder %s29, 1
      %p476 = por %p474, %p475
      %p477 = scmp.ne.s32.totalorder %s469, %s472
      %p478 = scmp.eq.s32.totalorder %s29, 0
      %p479 = por %p477, %p478
      %p480 = scmp.ne.s32.totalorder %s469, %s472
      %p481 = scmp.eq.s32.totalorder %s34, 1
      %p482 = por %p480, %p481
      %p483 = scmp.ne.s32.totalorder %s472, %s473
      %p484 = scmp.eq.s32.totalorder %s34, 0
      %p485 = por %p483, %p484
      %p486 = scmp.ne.s32.totalorder %s472, %s473
      %p487 = scmp.eq.s32.totalorder %s35, 1
      %p488 = por %p486, %p487
      %p490 = scmp.ne.s32.totalorder %s473, %s489
      %p491 = scmp.eq.s32.totalorder %s35, 0
      %p492 = por %p490, %p491
      %p493 = scmp.le.s32.totalorder 1, %s29
      %p494 = scmp.lt.s32.totalorder %s29, 3
      %p495 = pnand %p493, %p494
      %p496 = pneg %p495
      // Predicated region
      $region9: #{tpu_custom_call.1} parent=5 // pred_check
        _
      $region10: #{tpu_custom_call.1} parent=5 // pred_check_branch
        %498 = sbr.rel (%p495) target = $region12
      $region11: #{tpu_custom_call.1} parent=5 // pred_region
        %s499 = ssub.s32 %s29, 1
        // Predicated region
        $region13: #{tpu_custom_call.1} parent=11 // pred_check
          %p500 = pneg %p102
        $region14: #{tpu_custom_call.1} parent=11 // pred_check_branch
          %502 = sbr.rel (%p500) target = $region16
        $region15: #{tpu_custom_call.1} parent=11 // pred_region
          _
        $region16: #{tpu_custom_call.1} parent=11 // pred_fallthru
          _
        // Predicated region
        $region17: #{tpu_custom_call.1} parent=11 // pred_check
          %p503 = pneg %p123
        $region18: #{tpu_custom_call.1} parent=11 // pred_check_branch
          %505 = sbr.rel (%p503) target = $region20
        $region19: #{tpu_custom_call.1} parent=11 // pred_region
          _
        $region20: #{tpu_custom_call.1} parent=11 // pred_fallthru
          _
        // Predicated region
        $region21: #{tpu_custom_call.1} parent=11 // pred_check
          %p506 = pneg %p144
        $region22: #{tpu_custom_call.1} parent=11 // pred_check_branch
          %508 = sbr.rel (%p506) target = $region24
        $region23: #{tpu_custom_call.1} parent=11 // pred_region
          _
        $region24: #{tpu_custom_call.1} parent=11 // pred_fallthru
          _
        // Predicated region
        $region25: #{tpu_custom_call.1} parent=11 // pred_check
          %p509 = pneg %p165
        $region26: #{tpu_custom_call.1} parent=11 // pred_check_branch
          %511 = sbr.rel (%p509) target = $region28
        $region27: #{tpu_custom_call.1} parent=11 // pred_region
          _
        $region28: #{tpu_custom_call.1} parent=11 // pred_fallthru
          _
        // Predicated region
        $region29: #{tpu_custom_call.1} parent=11 // pred_check
          %p512 = pneg %p186
        $region30: #{tpu_custom_call.1} parent=11 // pred_check_branch
          %514 = sbr.rel (%p512) target = $region32
        $region31: #{tpu_custom_call.1} parent=11 // pred_region
          _
        $region32: #{tpu_custom_call.1} parent=11 // pred_fallthru
          _
        // Predicated region
        $region33: #{tpu_custom_call.1} parent=11 // pred_check
          %p515 = pneg %p207
        $region34: #{tpu_custom_call.1} parent=11 // pred_check_branch
          %517 = sbr.rel (%p515) target = $region36
        $region35: #{tpu_custom_call.1} parent=11 // pred_region
          _
        $region36: #{tpu_custom_call.1} parent=11 // pred_fallthru
          _
        // Predicated region
        $region37: #{tpu_custom_call.1} parent=11 // pred_check
          %p518 = pneg %p228
        $region38: #{tpu_custom_call.1} parent=11 // pred_check_branch
          %520 = sbr.rel (%p518) target = $region40
        $region39: #{tpu_custom_call.1} parent=11 // pred_region
          _
        $region40: #{tpu_custom_call.1} parent=11 // pred_fallthru
          _
        // Predicated region
        $region41: #{tpu_custom_call.1} parent=11 // pred_check
          %p521 = pneg %p249
        $region42: #{tpu_custom_call.1} parent=11 // pred_check_branch
          %523 = sbr.rel (%p521) target = $region44
        $region43: #{tpu_custom_call.1} parent=11 // pred_region
          _
        $region44: #{tpu_custom_call.1} parent=11 // pred_fallthru
          _
        // Predicated region
        $region45: #{tpu_custom_call.1} parent=11 // pred_check
          %p524 = pneg %p270
        $region46: #{tpu_custom_call.1} parent=11 // pred_check_branch
          %526 = sbr.rel (%p524) target = $region48
        $region47: #{tpu_custom_call.1} parent=11 // pred_region
          _
        $region48: #{tpu_custom_call.1} parent=11 // pred_fallthru
          _
        // Predicated region
        $region49: #{tpu_custom_call.1} parent=11 // pred_check
          %p527 = pneg %p291
        $region50: #{tpu_custom_call.1} parent=11 // pred_check_branch
          %529 = sbr.rel (%p527) target = $region52
        $region51: #{tpu_custom_call.1} parent=11 // pred_region
          _
        $region52: #{tpu_custom_call.1} parent=11 // pred_fallthru
          _
        // Predicated region
        $region53: #{tpu_custom_call.1} parent=11 // pred_check
          %p530 = pneg %p312
        $region54: #{tpu_custom_call.1} parent=11 // pred_check_branch
          %532 = sbr.rel (%p530) target = $region56
        $region55: #{tpu_custom_call.1} parent=11 // pred_region
          _
        $region56: #{tpu_custom_call.1} parent=11 // pred_fallthru
          _
        // Predicated region
        $region57: #{tpu_custom_call.1} parent=11 // pred_check
          %p533 = pneg %p333
        $region58: #{tpu_custom_call.1} parent=11 // pred_check_branch
          %535 = sbr.rel (%p533) target = $region60
        $region59: #{tpu_custom_call.1} parent=11 // pred_region
          _
        $region60: #{tpu_custom_call.1} parent=11 // pred_fallthru
          _
        // Predicated region
        $region61: #{tpu_custom_call.1} parent=11 // pred_check
          %p536 = pneg %p354
        $region62: #{tpu_custom_call.1} parent=11 // pred_check_branch
          %538 = sbr.rel (%p536) target = $region64
        $region63: #{tpu_custom_call.1} parent=11 // pred_region
          _
        $region64: #{tpu_custom_call.1} parent=11 // pred_fallthru
          _
        // Predicated region
        $region65: #{tpu_custom_call.1} parent=11 // pred_check
          %p539 = pneg %p375
        $region66: #{tpu_custom_call.1} parent=11 // pred_check_branch
          %541 = sbr.rel (%p539) target = $region68
        $region67: #{tpu_custom_call.1} parent=11 // pred_region
          _
        $region68: #{tpu_custom_call.1} parent=11 // pred_fallthru
          _
        // Predicated region
        $region69: #{tpu_custom_call.1} parent=11 // pred_check
          %p542 = pneg %p396
        $region70: #{tpu_custom_call.1} parent=11 // pred_check_branch
          %544 = sbr.rel (%p542) target = $region72
        $region71: #{tpu_custom_call.1} parent=11 // pred_region
          _
        $region72: #{tpu_custom_call.1} parent=11 // pred_fallthru
          _
        // Predicated region
        $region73: #{tpu_custom_call.1} parent=11 // pred_check
          %p545 = pneg %p417
        $region74: #{tpu_custom_call.1} parent=11 // pred_check_branch
          %547 = sbr.rel (%p545) target = $region76
        $region75: #{tpu_custom_call.1} parent=11 // pred_region
          _
        $region76: #{tpu_custom_call.1} parent=11 // pred_fallthru
          _
        // Predicated region
        $region77: #{tpu_custom_call.1} parent=11 // pred_check
          %p548 = pneg %p438
        $region78: #{tpu_custom_call.1} parent=11 // pred_check_branch
          %550 = sbr.rel (%p548) target = $region80
        $region79: #{tpu_custom_call.1} parent=11 // pred_region
          _
        $region80: #{tpu_custom_call.1} parent=11 // pred_fallthru
          _
        // Predicated region
        $region81: #{tpu_custom_call.1} parent=11 // pred_check
          %p551 = pneg %p459
        $region82: #{tpu_custom_call.1} parent=11 // pred_check_branch
          %553 = sbr.rel (%p551) target = $region84
        $region83: #{tpu_custom_call.1} parent=11 // pred_region
          _
        $region84: #{tpu_custom_call.1} parent=11 // pred_fallthru
          _
      $region12: #{tpu_custom_call.1} parent=5 // pred_fallthru
        _
      %p554 = scmp.lt.s32.totalorder %s29, 2
      // Predicated region
      $region85: #{tpu_custom_call.1} parent=5 // pred_check
        %p555 = pneg %p554
      $region86: #{tpu_custom_call.1} parent=5 // pred_check_branch
        %557 = sbr.rel (%p555) target = $region88
      $region87: #{tpu_custom_call.1} parent=5 // pred_region
        // Predicated region
        $region89: #{tpu_custom_call.1} parent=87 // pred_check
          %p558 = pneg %p49
        $region90: #{tpu_custom_call.1} parent=87 // pred_check_branch
          %560 = sbr.rel (%p558) target = $region92
        $region91: #{tpu_custom_call.1} parent=87 // pred_region
          %p561 = scmp.lt.s32.totalorder %s29, 1
          %s562 = scalar_select %p561, %s29, 1
          %s563 = smul.addr %s562, 18
          %s564 = smul.addr %s563, 4
          %s565 = scalar_lea.vmem %s0, %s564
        $region92: #{tpu_custom_call.1} parent=87 // pred_fallthru
          _
        // Predicated region
        $region93: #{tpu_custom_call.1} parent=87 // pred_check
          %p566 = pneg %p75
        $region94: #{tpu_custom_call.1} parent=87 // pred_check_branch
          %568 = sbr.rel (%p566) target = $region96
        $region95: #{tpu_custom_call.1} parent=87 // pred_region
          %p569 = scmp.lt.s32.totalorder %s29, 1
          %s570 = scalar_select %p569, %s29, 1
          %s571 = smul.addr %s570, 2
          %s572 = smul.addr %s571, 8
          %s573 = scalar_lea.vmem %s1, %s572
        $region96: #{tpu_custom_call.1} parent=87 // pred_fallthru
          _
      $region88: #{tpu_custom_call.1} parent=5 // pred_fallthru
        _
      %p574 = scmp.le.s32.totalorder 1, %s29
      %p575 = scmp.lt.s32.totalorder %s29, 3
      %p576 = pnand %p574, %p575
      %p577 = pneg %p576
      // Predicated region
      $region97: #{tpu_custom_call.1} parent=5 // pred_check
        _
      $region98: #{tpu_custom_call.1} parent=5 // pred_check_branch
        %579 = sbr.rel (%p576) target = $region100
      $region99: #{tpu_custom_call.1} parent=5 // pred_region
        %s580 = ssub.s32 %s29, 1
        %p581 = scmp.lt.s32.totalorder %s34, 1
        %s582 = scalar_select %p581, %s34, 1
        %s583 = smul.addr %s582, 18
        %s584 = smul.addr %s583, 4
        %s585 = scalar_lea.vmem %s0, %s584
        %p586 = pneg %p55
        %p587 = pneg %p52
        %p588 = scmp.lt.s32.totalorder %s34, 1
        %s589 = scalar_select %p588, %s34, 1
        %s590 = smul.addr %s589, 2
        %s591 = smul.addr %s590, 8
        %s592 = scalar_lea.vmem %s1, %s591
        %p593 = pneg %p81
        %p594 = pneg %p78
        %p595 = pneg %p102
        %p596 = pneg %p99
        %p597 = pneg %p123
        %p598 = pneg %p120
        %p599 = pneg %p144
        %p600 = pneg %p141
        %p601 = pneg %p165
        %p602 = pneg %p162
        %p603 = pneg %p186
        %p604 = pneg %p183
        %p605 = pneg %p207
        %p606 = pneg %p204
        %p607 = pneg %p228
        %p608 = pneg %p225
        %p609 = pneg %p249
        %p610 = pneg %p246
        %p611 = pneg %p270
        %p612 = pneg %p267
        %p613 = pneg %p291
        %p614 = pneg %p288
        %p615 = pneg %p312
        %p616 = pneg %p309
        %p617 = pneg %p333
        %p618 = pneg %p330
        %p619 = pneg %p354
        %p620 = pneg %p351
        %p621 = pneg %p375
        %p622 = pneg %p372
        %p623 = pneg %p396
        %p624 = pneg %p393
        %p625 = pneg %p417
        %p626 = pneg %p414
        %p627 = pneg %p438
        %p628 = pneg %p435
        %p629 = pneg %p459
        %p630 = pneg %p456
        %p631 = pneg %p485
        %p632 = pneg %p482
        %s633 = sand.u32 %s472, 1
        %s634 = scalar_lea.sflag [#allocation3], %s633
        %s635 = sand.u32 %s472, 1
        %s636 = smul.addr %s635, 16
        %s637 = scalar_lea.vmem [#allocation2], %s636
        %p638 = scmp.lt.s32.totalorder %s34, 1
        %s639 = scalar_select %p638, %s34, 1
        %s640 = smul.addr %s639, 18
        %s641 = smul.addr %s640, 4
        %s642 = scalar_lea.vmem %s0, %s641
        %p643 = scmp.lt.s32.totalorder %s34, 1
        %s644 = scalar_select %p643, %s34, 1
        %s645 = smul.addr %s644, 2
        %s646 = smul.addr %s645, 8
        %s647 = scalar_lea.vmem %s1, %s646
        %v649 = vld [vmem:[%s2] sm:$0xf]
        %v650 = vld [vmem:[%s642] sm:$0xff]
        %v651 = vld [vmem:[%s642 + $0x8] sm:$0xff]
        %v652 = vld [vmem:[%s642 + $0x10] sm:$0xff]
        %v653 = vld [vmem:[%s642 + $0x18] sm:$0xff]
        %v654 = vld [vmem:[%s642 + $0x20] sm:$0xff]
        %v655 = vld [vmem:[%s642 + $0x28] sm:$0xff]
        %v656 = vld [vmem:[%s642 + $0x30] sm:$0xff]
        %v657 = vld [vmem:[%s642 + $0x38] sm:$0xff]
        %v658 = vld [vmem:[%s642 + $0x40] sm:$0xff]
        %v659 = vld [vmem:[%s3] sm:$0xff]
        %661 = vset.pattern.permute.xlu0 0
        %662 = vperm.xlu0 %661, %v659
        %v663 = vpop.permute.xlu0 %662
        %v674 = vunpack.c.l.b16 %v650
        %v675 = vunpack.c.h.b16 %v650
        %v676 = vunpack.c.l.b16 %v651
        %v677 = vunpack.c.h.b16 %v651
        %v678 = vunpack.c.l.b16 %v652
        %v679 = vunpack.c.h.b16 %v652
        %v680 = vunpack.c.l.b16 %v653
        %v681 = vunpack.c.h.b16 %v653
        %v682 = vunpack.c.l.b16 %v654
        %v683 = vunpack.c.h.b16 %v654
        %v684 = vunpack.c.l.b16 %v655
        %v685 = vunpack.c.h.b16 %v655
        %v686 = vunpack.c.l.b16 %v656
        %v687 = vunpack.c.h.b16 %v656
        %v688 = vunpack.c.l.b16 %v657
        %v689 = vunpack.c.h.b16 %v657
        %v690 = vunpack.c.l.b16 %v658
        %v691 = vunpack.c.h.b16 %v658
        %v692 = vpack.c.b16 %v676, %v674
        %v693 = vpack.c.b16 %v677, %v675
        %v694 = vpack.c.b16 %v680, %v678
        %v695 = vpack.c.b16 %v681, %v679
        %v696 = vpack.c.b16 %v684, %v682
        %v697 = vpack.c.b16 %v685, %v683
        %v698 = vpack.c.b16 %v688, %v686
        %v699 = vpack.c.b16 %v689, %v687
        %v700 = vpack.c.b16 %v690, %v690
        %v701 = vpack.c.b16 %v691, %v691
        %vm710 = vcmask 588800
        %v712 = vsel %vm710, %v649, 0
        %vm714 = vcmask 1043456
        %v716 = vsel %vm714, %v700, 0
        %v719 = vsel %vm714, %v701, 0
        %721 = vmatprep.subr.bf16.mxu0 %v693
        %722 = vmatpush1.bf16.msra.mxu0 %v692
        %723 = vmatprep.subr.bf16.mxu0 %v695
        %724 = vmatpush1.bf16.msra.mxu0 %v694
        %725 = vmatprep.subr.bf16.mxu0 %v697
        %726 = vmatpush1.bf16.msra.mxu0 %v696
        %727 = vmatprep.subr.bf16.mxu0 %v699
        %728 = vmatpush1.bf16.msra.mxu0 %v698
        %729 = vmatprep.subr.bf16.mxu0 %v719
        %730 = vmatpush1.bf16.msra.mxu0 %v716
        %731 = vmatprep.subr.bf16.mxu0 0
        %732 = vmatpush1.bf16.msra.mxu0 0
        %733 = vmatprep.subr.bf16.mxu0 0
        %734 = vmatpush1.bf16.msra.mxu0 0
        %735 = vmatprep.subr.bf16.mxu0 0
        %736 = vmatpush1.bf16.msra.mxu0 0
        %737 = vmatprep.subr.bf16.mxu0 0
        %738 = vmatpush1.bf16.msra.mxu0 0
        %739 = vmatprep.subr.bf16.mxu0 0
        %740 = vmatpush1.bf16.msra.mxu0 0
        %741 = vmatprep.subr.bf16.mxu0 0
        %742 = vmatpush1.bf16.msra.mxu0 0
        %743 = vmatprep.subr.bf16.mxu0 0
        %744 = vmatpush1.bf16.msra.mxu0 0
        %745 = vmatprep.subr.bf16.mxu0 0
        %746 = vmatpush1.bf16.msra.mxu0 0
        %747 = vmatprep.subr.bf16.mxu0 0
        %748 = vmatpush1.bf16.msra.mxu0 0
        %749 = vmatprep.subr.bf16.mxu0 0
        %750 = vmatpush1.bf16.msra.mxu0 0
        %751 = vmatprep.subr.bf16.mxu0 0
        %752 = vmatpush1.bf16.msra.mxu0 0
        %753 = vmatprep.mubr.bf16.mxu0 0
        %754 = vmatmul.mubr.bf16.gmra.mrb[0].mxu0 %v712
        %v755 = vpop.f32.mrb[0].mxu0
        %v756 = vadd.f32 %v663, %v755
        %v757 = vpop.f32.mrb[0].mxu0
        %v758 = vadd.f32 %v663, %v757
        %v759 = vpop.f32.mrb[0].mxu0
        %v760 = vpop.f32.mrb[0].mxu0
        %761 = vdwg.mxu0
        %v762 = vxor.u32 %v756, 2147483648
        %v763 = vxor.u32 %v758, 2147483648
        %v764 = vmul.f32 %v762, 1.442695
        %v765 = vpow.pop %v764
        %v766 = vmul.f32 %v763, 1.442695
        %v767 = vpow.pop %v766
        %v768 = vadd.f32 %v765, 1.0
        %v769 = vadd.f32 %v767, 1.0
        %v770 = vrcp.pop %v768
        %v771 = vmul.f32 1.0, %v770
        %v772 = vrcp.pop %v769
        %v773 = vmul.f32 1.0, %v772
        %v774 = vmul.f32 %v756, %v771
        %v775 = vmul.f32 %v758, %v773
        %v776 = vpack.c.bf16 %v774, %v774
        %v777 = vpack.c.bf16 %v775, %v775
        %v778 = vld [vmem:[%s4] sm:$0xf]
        %v779 = vld [vmem:[%s4 + $0x4] sm:$0xf]
        %v780 = vld [vmem:[%s4 + $0x8] sm:$0xf]
        %v781 = vld [vmem:[%s4 + $0xc] sm:$0xf]
        %v782 = vld [vmem:[%s4 + $0x10] sm:$0xf]
        %v783 = vld [vmem:[%s4 + $0x14] sm:$0xf]
        %v784 = vld [vmem:[%s4 + $0x18] sm:$0xf]
        %v785 = vld [vmem:[%s4 + $0x1c] sm:$0xf]
        %v786 = vld [vmem:[%s4 + $0x20] sm:$0xf]
        %v787 = vld [vmem:[%s4 + $0x24] sm:$0xf]
        %v788 = vld [vmem:[%s4 + $0x28] sm:$0xf]
        %v789 = vld [vmem:[%s4 + $0x2c] sm:$0xf]
        %v790 = vld [vmem:[%s4 + $0x30] sm:$0xf]
        %v791 = vld [vmem:[%s4 + $0x34] sm:$0xf]
        %v792 = vld [vmem:[%s4 + $0x38] sm:$0xf]
        %v793 = vld [vmem:[%s4 + $0x3c] sm:$0xf]
        %v794 = vld [vmem:[%s4 + $0x40] sm:$0xf]
        %v795 = vld [vmem:[%s4 + $0x44] sm:$0xf]
        %v796 = vld [vmem:[%s4 + $0x48] sm:$0xf]
        %v797 = vld [vmem:[%s4 + $0x4c] sm:$0xf]
        %v798 = vld [vmem:[%s4 + $0x50] sm:$0xf]
        %v799 = vld [vmem:[%s4 + $0x54] sm:$0xf]
        %v800 = vld [vmem:[%s4 + $0x58] sm:$0xf]
        %v801 = vld [vmem:[%s4 + $0x5c] sm:$0xf]
        %v802 = vld [vmem:[%s4 + $0x60] sm:$0xf]
        %v803 = vld [vmem:[%s4 + $0x64] sm:$0xf]
        %v804 = vld [vmem:[%s4 + $0x68] sm:$0xf]
        %v805 = vld [vmem:[%s4 + $0x6c] sm:$0xf]
        %v806 = vld [vmem:[%s4 + $0x70] sm:$0xf]
        %v807 = vld [vmem:[%s4 + $0x74] sm:$0xf]
        %v808 = vld [vmem:[%s4 + $0x78] sm:$0xf]
        %v809 = vld [vmem:[%s4 + $0x7c] sm:$0xf]
        %v842 = vunpack.c.l.b16 %v778
        %v843 = vunpack.c.l.b16 %v779
        %v844 = vunpack.c.l.b16 %v780
        %v845 = vunpack.c.l.b16 %v781
        %v846 = vunpack.c.l.b16 %v782
        %v847 = vunpack.c.l.b16 %v783
        %v848 = vunpack.c.l.b16 %v784
        %v849 = vunpack.c.l.b16 %v785
        %v850 = vunpack.c.l.b16 %v786
        %v851 = vunpack.c.l.b16 %v787
        %v852 = vunpack.c.l.b16 %v788
        %v853 = vunpack.c.l.b16 %v789
        %v854 = vunpack.c.l.b16 %v790
        %v855 = vunpack.c.l.b16 %v791
        %v856 = vunpack.c.l.b16 %v792
        %v857 = vunpack.c.l.b16 %v793
        %v858 = vunpack.c.l.b16 %v794
        %v859 = vunpack.c.l.b16 %v795
        %v860 = vunpack.c.l.b16 %v796
        %v861 = vunpack.c.l.b16 %v797
        %v862 = vunpack.c.l.b16 %v798
        %v863 = vunpack.c.l.b16 %v799
        %v864 = vunpack.c.l.b16 %v800
        %v865 = vunpack.c.l.b16 %v801
        %v866 = vunpack.c.l.b16 %v802
        %v867 = vunpack.c.l.b16 %v803
        %v868 = vunpack.c.l.b16 %v804
        %v869 = vunpack.c.l.b16 %v805
        %v870 = vunpack.c.l.b16 %v806
        %v871 = vunpack.c.l.b16 %v807
        %v872 = vunpack.c.l.b16 %v808
        %v873 = vunpack.c.l.b16 %v809
        %v874 = vpack.c.b16 %v843, %v842
        %v875 = vpack.c.b16 %v845, %v844
        %v876 = vpack.c.b16 %v847, %v846
        %v877 = vpack.c.b16 %v849, %v848
        %v878 = vpack.c.b16 %v851, %v850
        %v879 = vpack.c.b16 %v853, %v852
        %v880 = vpack.c.b16 %v855, %v854
        %v881 = vpack.c.b16 %v857, %v856
        %v882 = vpack.c.b16 %v859, %v858
        %v883 = vpack.c.b16 %v861, %v860
        %v884 = vpack.c.b16 %v863, %v862
        %v885 = vpack.c.b16 %v865, %v864
        %v886 = vpack.c.b16 %v867, %v866
        %v887 = vpack.c.b16 %v869, %v868
        %v888 = vpack.c.b16 %v871, %v870
        %v889 = vpack.c.b16 %v873, %v872
        %906 = vmatprep.subr.bf16.mxu0 0
        %907 = vmatpush1.bf16.msra.mxu0 %v874
        %908 = vmatprep.subr.bf16.mxu0 0
        %909 = vmatpush1.bf16.msra.mxu0 %v875
        %910 = vmatprep.subr.bf16.mxu0 0
        %911 = vmatpush1.bf16.msra.mxu0 %v876
        %912 = vmatprep.subr.bf16.mxu0 0
        %913 = vmatpush1.bf16.msra.mxu0 %v877
        %914 = vmatprep.subr.bf16.mxu0 0
        %915 = vmatpush1.bf16.msra.mxu0 %v878
        %916 = vmatprep.subr.bf16.mxu0 0
        %917 = vmatpush1.bf16.msra.mxu0 %v879
        %918 = vmatprep.subr.bf16.mxu0 0
        %919 = vmatpush1.bf16.msra.mxu0 %v880
        %920 = vmatprep.subr.bf16.mxu0 0
        %921 = vmatpush1.bf16.msra.mxu0 %v881
        %922 = vmatprep.subr.bf16.mxu0 0
        %923 = vmatpush1.bf16.msra.mxu0 %v882
        %924 = vmatprep.subr.bf16.mxu0 0
        %925 = vmatpush1.bf16.msra.mxu0 %v883
        %926 = vmatprep.subr.bf16.mxu0 0
        %927 = vmatpush1.bf16.msra.mxu0 %v884
        %928 = vmatprep.subr.bf16.mxu0 0
        %929 = vmatpush1.bf16.msra.mxu0 %v885
        %930 = vmatprep.subr.bf16.mxu0 0
        %931 = vmatpush1.bf16.msra.mxu0 %v886
        %932 = vmatprep.subr.bf16.mxu0 0
        %933 = vmatpush1.bf16.msra.mxu0 %v887
        %934 = vmatprep.subr.bf16.mxu0 0
        %935 = vmatpush1.bf16.msra.mxu0 %v888
        %936 = vmatprep.subr.bf16.mxu0 0
        %937 = vmatpush1.bf16.msra.mxu0 %v889
        %938 = vmatprep.mubr.bf16.mxu0 %v777
        %939 = vmatmul.mubr.bf16.gmra.mrb[0].mxu0 %v776
        %v940 = vpop.f32.mrb[0].mxu0
        %v941 = vadd.f32 0.0, %v940
        %v942 = vpop.f32.mrb[0].mxu0
        %v943 = vpop.f32.mrb[0].mxu0
        %v944 = vpop.f32.mrb[0].mxu0
        %945 = vdwg.mxu0
        %v946 = vld [vmem:[%s5] sm:$0xf]
        %v947 = vpack.c.bf16 %v941, %v941
        %v948 = vld [vmem:[%s6] sm:$0xff]
        %950 = vset.pattern.permute.xlu0 0
        %951 = vperm.xlu0 %950, %v948
        %v952 = vpop.permute.xlu0 %951
        %vm954 = vcmask 64512
        %v956 = vsel %vm954, %v946, 0
        %v959 = vsel %vm714, %v947, 0
        %961 = vmatprep.subr.bf16.mxu0 0
        %962 = vmatpush1.bf16.msra.mxu0 %v959
        %963 = vmatprep.subr.bf16.mxu0 0
        %964 = vmatpush1.bf16.msra.mxu0 0
        %965 = vmatprep.subr.bf16.mxu0 0
        %966 = vmatpush1.bf16.msra.mxu0 0
        %967 = vmatprep.subr.bf16.mxu0 0
        %968 = vmatpush1.bf16.msra.mxu0 0
        %969 = vmatprep.subr.bf16.mxu0 0
        %970 = vmatpush1.bf16.msra.mxu0 0
        %971 = vmatprep.subr.bf16.mxu0 0
        %972 = vmatpush1.bf16.msra.mxu0 0
        %973 = vmatprep.subr.bf16.mxu0 0
        %974 = vmatpush1.bf16.msra.mxu0 0
        %975 = vmatprep.subr.bf16.mxu0 0
        %976 = vmatpush1.bf16.msra.mxu0 0
        %977 = vmatprep.subr.bf16.mxu0 0
        %978 = vmatpush1.bf16.msra.mxu0 0
        %979 = vmatprep.subr.bf16.mxu0 0
        %980 = vmatpush1.bf16.msra.mxu0 0
        %981 = vmatprep.subr.bf16.mxu0 0
        %982 = vmatpush1.bf16.msra.mxu0 0
        %983 = vmatprep.subr.bf16.mxu0 0
        %984 = vmatpush1.bf16.msra.mxu0 0
        %985 = vmatprep.subr.bf16.mxu0 0
        %986 = vmatpush1.bf16.msra.mxu0 0
        %987 = vmatprep.subr.bf16.mxu0 0
        %988 = vmatpush1.bf16.msra.mxu0 0
        %989 = vmatprep.subr.bf16.mxu0 0
        %990 = vmatpush1.bf16.msra.mxu0 0
        %991 = vmatprep.subr.bf16.mxu0 0
        %992 = vmatpush1.bf16.msra.mxu0 0
        %993 = vmatprep.mubr.bf16.mxu0 0
        %994 = vmatmul.mubr.bf16.gmra.mrb[0].mxu0 %v956
        %v995 = vpop.f32.mrb[0].mxu0
        %v996 = vadd.f32 %v952, %v995
        %v997 = vpop.f32.mrb[0].mxu0
        %v998 = vpop.f32.mrb[0].mxu0
        %v999 = vpop.f32.mrb[0].mxu0
        %1000 = vdwg.mxu0
        %vm1001 = vcmask 523264
        %v1002 = vsel %vm1001, %v996, 0.0
        %v1003 = vrot.slane %v1002, 4
        %v1004 = vadd.f32 %v1002, %v1003
        %v1005 = vrot.slane %v1004, 2
        %v1006 = vadd.f32 %v1004, %v1005
        %v1007 = vrot.slane %v1006, 1
        %v1008 = vadd.f32 %v1006, %v1007
        %v1009 = vrcp.pop 8.0
        %v1010 = vmul.f32 %v1008, %v1009
        %v1011 = vsub.f32 %v996, %v1010
        %v1012 = vmul.f32 %v1011, %v1011
        %v1013 = vsel %vm1001, %v1012, 0.0
        %v1014 = vrot.slane %v1013, 4
        %v1015 = vadd.f32 %v1013, %v1014
        %v1016 = vrot.slane %v1015, 2
        %v1017 = vadd.f32 %v1015, %v1016
        %v1018 = vrot.slane %v1017, 1
        %v1019 = vadd.f32 %v1017, %v1018
        %v1020 = vmul.f32 %v1019, %v1009
        %v1021 = vadd.f32 %v1020, 1e-05
        %v1022 = vrsqrt.pop %v1021
        %v1023 = vmul.f32 %v1011, %v1022
        %v1024 = vld [vmem:[%s7] sm:$0xff]
        %1026 = vset.pattern.permute.xlu0 0
        %1027 = vperm.xlu0 %1026, %v1024
        %v1028 = vpop.permute.xlu0 %1027
        %v1030 = vmul.f32 %v1023, %v1028
        %v1031 = vld [vmem:[%s8] sm:$0xff]
        %1033 = vset.pattern.permute.xlu0 0
        %1034 = vperm.xlu0 %1033, %v1031
        %v1035 = vpop.permute.xlu0 %1034
        %v1037 = vadd.f32 %v1030, %v1035
        %v1038 = vmul.f32 %v1037, 0.5
        %v1039 = vmul.f32 %v1037, 0.70710677
        %vm1040 = vcmp.ge.f32.partialorder %v1039, 0.0
        %v1041 = vsel %vm1040, 1.0, -1.0
        %v1042 = vand.u32 2147483647, %v1039
        %v1043 = vmul.f32 %v1042, 0.3275911
        %v1044 = vadd.f32 %v1043, 1.0
        %v1045 = vrcp.pop %v1044
        %v1046 = vmul.f32 1.0, %v1045
        %v1047 = vmul.f32 %v1046, 1.0614054
        %v1048 = vadd.f32 %v1047, -1.4531521
        %v1049 = vmul.f32 %v1048, %v1046
        %v1050 = vadd.f32 %v1049, 1.4214138
        %v1051 = vmul.f32 %v1050, %v1046
        %v1052 = vadd.f32 %v1051, -0.28449672
        %v1053 = vmul.f32 %v1052, %v1046
        %v1054 = vadd.f32 %v1053, 0.2548296
        %v1055 = vmul.f32 %v1054, %v1046
        %v1056 = vsub.f32 0.0, %v1042
        %v1057 = vmul.f32 %v1056, %v1042
        %v1058 = vmul.f32 %v1057, 1.442695
        %v1059 = vpow.pop %v1058
        %v1060 = vmul.f32 %v1055, %v1059
        %v1061 = vsub.f32 1.0, %v1060
        %v1062 = vmul.f32 %v1041, %v1061
        %v1063 = vadd.f32 %v1062, 1.0
        %v1064 = vmul.f32 %v1038, %v1063
        %v1065 = vpack.c.bf16 %v1064, %v1064
        %v1066 = vld [vmem:[%s9] sm:$0xf]
        %v1068 = vsel %vm954, %v1066, 0
        %v1071 = vsel %vm714, %v776, 0
        %v1074 = vsel %vm714, %v777, 0
        %1076 = vmatprep.subr.bf16.mxu0 %v1074
        %1077 = vmatpush1.bf16.msra.mxu0 %v1071
        %1078 = vmatprep.subr.bf16.mxu0 0
        %1079 = vmatpush1.bf16.msra.mxu0 0
        %1080 = vmatprep.subr.bf16.mxu0 0
        %1081 = vmatpush1.bf16.msra.mxu0 0
        %1082 = vmatprep.subr.bf16.mxu0 0
        %1083 = vmatpush1.bf16.msra.mxu0 0
        %1084 = vmatprep.subr.bf16.mxu0 0
        %1085 = vmatpush1.bf16.msra.mxu0 0
        %1086 = vmatprep.subr.bf16.mxu0 0
        %1087 = vmatpush1.bf16.msra.mxu0 0
        %1088 = vmatprep.subr.bf16.mxu0 0
        %1089 = vmatpush1.bf16.msra.mxu0 0
        %1090 = vmatprep.subr.bf16.mxu0 0
        %1091 = vmatpush1.bf16.msra.mxu0 0
        %1092 = vmatprep.subr.bf16.mxu0 0
        %1093 = vmatpush1.bf16.msra.mxu0 0
        %1094 = vmatprep.subr.bf16.mxu0 0
        %1095 = vmatpush1.bf16.msra.mxu0 0
        %1096 = vmatprep.subr.bf16.mxu0 0
        %1097 = vmatpush1.bf16.msra.mxu0 0
        %1098 = vmatprep.subr.bf16.mxu0 0
        %1099 = vmatpush1.bf16.msra.mxu0 0
        %1100 = vmatprep.subr.bf16.mxu0 0
        %1101 = vmatpush1.bf16.msra.mxu0 0
        %1102 = vmatprep.subr.bf16.mxu0 0
        %1103 = vmatpush1.bf16.msra.mxu0 0
        %1104 = vmatprep.subr.bf16.mxu0 0
        %1105 = vmatpush1.bf16.msra.mxu0 0
        %1106 = vmatprep.subr.bf16.mxu0 0
        %1107 = vmatpush1.bf16.msra.mxu0 0
        %1108 = vmatprep.mubr.bf16.mxu0 0
        %1109 = vmatmul.mubr.bf16.gmra.mrb[0].mxu0 %v1068
        %v1110 = vpop.f32.mrb[0].mxu0
        %v1111 = vadd.f32 0.0, %v1110
        %v1112 = vpop.f32.mrb[0].mxu0
        %v1113 = vadd.f32 0.0, %v1112
        %v1114 = vpop.f32.mrb[0].mxu0
        %v1115 = vpop.f32.mrb[0].mxu0
        %1116 = vdwg.mxu0
        %v1117 = vld [vmem:[%s10] sm:$0xf]
        %v1119 = vsel %vm954, %v1117, 0
        %v1122 = vsel %vm714, %v1065, 0
        %1124 = vmatprep.subr.bf16.mxu0 0
        %1125 = vmatpush1.bf16.msra.mxu0 %v1122
        %1126 = vmatprep.subr.bf16.mxu0 0
        %1127 = vmatpush1.bf16.msra.mxu0 0
        %1128 = vmatprep.subr.bf16.mxu0 0
        %1129 = vmatpush1.bf16.msra.mxu0 0
        %1130 = vmatprep.subr.bf16.mxu0 0
        %1131 = vmatpush1.bf16.msra.mxu0 0
        %1132 = vmatprep.subr.bf16.mxu0 0
        %1133 = vmatpush1.bf16.msra.mxu0 0
        %1134 = vmatprep.subr.bf16.mxu0 0
        %1135 = vmatpush1.bf16.msra.mxu0 0
        %1136 = vmatprep.subr.bf16.mxu0 0
        %1137 = vmatpush1.bf16.msra.mxu0 0
        %1138 = vmatprep.subr.bf16.mxu0 0
        %1139 = vmatpush1.bf16.msra.mxu0 0
        %1140 = vmatprep.subr.bf16.mxu0 0
        %1141 = vmatpush1.bf16.msra.mxu0 0
        %1142 = vmatprep.subr.bf16.mxu0 0
        %1143 = vmatpush1.bf16.msra.mxu0 0
        %1144 = vmatprep.subr.bf16.mxu0 0
        %1145 = vmatpush1.bf16.msra.mxu0 0
        %1146 = vmatprep.subr.bf16.mxu0 0
        %1147 = vmatpush1.bf16.msra.mxu0 0
        %1148 = vmatprep.subr.bf16.mxu0 0
        %1149 = vmatpush1.bf16.msra.mxu0 0
        %1150 = vmatprep.subr.bf16.mxu0 0
        %1151 = vmatpush1.bf16.msra.mxu0 0
        %1152 = vmatprep.subr.bf16.mxu0 0
        %1153 = vmatpush1.bf16.msra.mxu0 0
        %1154 = vmatprep.subr.bf16.mxu0 0
        %1155 = vmatpush1.bf16.msra.mxu0 0
        %1156 = vmatprep.mubr.bf16.mxu0 0
        %1157 = vmatmul.mubr.bf16.gmra.mrb[0].mxu0 %v1119
        %v1158 = vpop.f32.mrb[0].mxu0
        %v1159 = vadd.f32 0.0, %v1158
        %v1160 = vpop.f32.mrb[0].mxu0
        %v1161 = vpop.f32.mrb[0].mxu0
        %v1162 = vpop.f32.mrb[0].mxu0
        %1163 = vdwg.mxu0
        %v1164 = vld [vmem:[%s11] sm:$0xf]
        %v1166 = vsel %vm954, %v1164, 0
        %1168 = vmatprep.subr.bf16.mxu0 0
        %1169 = vmatpush1.bf16.msra.mxu0 %v1122
        %1170 = vmatprep.subr.bf16.mxu0 0
        %1171 = vmatpush1.bf16.msra.mxu0 0
        %1172 = vmatprep.subr.bf16.mxu0 0
        %1173 = vmatpush1.bf16.msra.mxu0 0
        %1174 = vmatprep.subr.bf16.mxu0 0
        %1175 = vmatpush1.bf16.msra.mxu0 0
        %1176 = vmatprep.subr.bf16.mxu0 0
        %1177 = vmatpush1.bf16.msra.mxu0 0
        %1178 = vmatprep.subr.bf16.mxu0 0
        %1179 = vmatpush1.bf16.msra.mxu0 0
        %1180 = vmatprep.subr.bf16.mxu0 0
        %1181 = vmatpush1.bf16.msra.mxu0 0
        %1182 = vmatprep.subr.bf16.mxu0 0
        %1183 = vmatpush1.bf16.msra.mxu0 0
        %1184 = vmatprep.subr.bf16.mxu0 0
        %1185 = vmatpush1.bf16.msra.mxu0 0
        %1186 = vmatprep.subr.bf16.mxu0 0
        %1187 = vmatpush1.bf16.msra.mxu0 0
        %1188 = vmatprep.subr.bf16.mxu0 0
        %1189 = vmatpush1.bf16.msra.mxu0 0
        %1190 = vmatprep.subr.bf16.mxu0 0
        %1191 = vmatpush1.bf16.msra.mxu0 0
        %1192 = vmatprep.subr.bf16.mxu0 0
        %1193 = vmatpush1.bf16.msra.mxu0 0
        %1194 = vmatprep.subr.bf16.mxu0 0
        %1195 = vmatpush1.bf16.msra.mxu0 0
        %1196 = vmatprep.subr.bf16.mxu0 0
        %1197 = vmatpush1.bf16.msra.mxu0 0
        %1198 = vmatprep.subr.bf16.mxu0 0
        %1199 = vmatpush1.bf16.msra.mxu0 0
        %1200 = vmatprep.mubr.bf16.mxu0 0
        %1201 = vmatmul.mubr.bf16.gmra.mrb[0].mxu0 %v1166
        %v1202 = vpop.f32.mrb[0].mxu0
        %v1203 = vadd.f32 0.0, %v1202
        %v1204 = vpop.f32.mrb[0].mxu0
        %v1205 = vpop.f32.mrb[0].mxu0
        %v1206 = vpop.f32.mrb[0].mxu0
        %1207 = vdwg.mxu0
        %v1208 = vld [vmem:[%s15] sm:$0xf]
        %v1209 = vld [vmem:[%s15 + $0x4] sm:$0xf]
        %v1210 = vld [vmem:[%s15 + $0x8] sm:$0xf]
        %v1211 = vld [vmem:[%s15 + $0xc] sm:$0xf]
        %v1212 = vld [vmem:[%s15 + $0x10] sm:$0xf]
        %v1213 = vld [vmem:[%s15 + $0x14] sm:$0xf]
        %v1214 = vld [vmem:[%s15 + $0x18] sm:$0xf]
        %v1215 = vld [vmem:[%s15 + $0x1c] sm:$0xf]
        %v1216 = vld [vmem:[%s15 + $0x20] sm:$0xf]
        %v1217 = vld [vmem:[%s15 + $0x24] sm:$0xf]
        %v1218 = vld [vmem:[%s15 + $0x28] sm:$0xf]
        %v1219 = vld [vmem:[%s15 + $0x2c] sm:$0xf]
        %v1220 = vld [vmem:[%s15 + $0x30] sm:$0xf]
        %v1221 = vld [vmem:[%s15 + $0x34] sm:$0xf]
        %v1222 = vld [vmem:[%s15 + $0x38] sm:$0xf]
        %v1223 = vld [vmem:[%s15 + $0x3c] sm:$0xf]
        %v1224 = vld [vmem:[%s15 + $0x40] sm:$0xf]
        %v1225 = vld [vmem:[%s15 + $0x44] sm:$0xf]
        %v1226 = vld [vmem:[%s15 + $0x48] sm:$0xf]
        %v1227 = vld [vmem:[%s15 + $0x4c] sm:$0xf]
        %v1228 = vld [vmem:[%s15 + $0x50] sm:$0xf]
        %v1229 = vld [vmem:[%s15 + $0x54] sm:$0xf]
        %v1230 = vld [vmem:[%s15 + $0x58] sm:$0xf]
        %v1231 = vld [vmem:[%s15 + $0x5c] sm:$0xf]
        %v1232 = vld [vmem:[%s15 + $0x60] sm:$0xf]
        %v1233 = vld [vmem:[%s15 + $0x64] sm:$0xf]
        %v1234 = vld [vmem:[%s15 + $0x68] sm:$0xf]
        %v1235 = vld [vmem:[%s15 + $0x6c] sm:$0xf]
        %v1236 = vld [vmem:[%s15 + $0x70] sm:$0xf]
        %v1237 = vld [vmem:[%s15 + $0x74] sm:$0xf]
        %v1238 = vld [vmem:[%s15 + $0x78] sm:$0xf]
        %v1239 = vld [vmem:[%s15 + $0x7c] sm:$0xf]
        %v1240 = vld [vmem:[%s15 + $0x80] sm:$0xf]
        %v1241 = vld [vmem:[%s15 + $0x84] sm:$0xf]
        %v1242 = vld [vmem:[%s15 + $0x88] sm:$0xf]
        %v1243 = vld [vmem:[%s15 + $0x8c] sm:$0xf]
        %v1244 = vld [vmem:[%s15 + $0x90] sm:$0xf]
        %v1245 = vld [vmem:[%s15 + $0x94] sm:$0xf]
        %v1246 = vld [vmem:[%s15 + $0x98] sm:$0xf]
        %v1247 = vld [vmem:[%s15 + $0x9c] sm:$0xf]
        %v1248 = vld [vmem:[%s15 + $0xa0] sm:$0xf]
        %v1249 = vld [vmem:[%s15 + $0xa4] sm:$0xf]
        %v1250 = vld [vmem:[%s15 + $0xa8] sm:$0xf]
        %v1251 = vld [vmem:[%s15 + $0xac] sm:$0xf]
        %v1252 = vld [vmem:[%s15 + $0xb0] sm:$0xf]
        %v1253 = vld [vmem:[%s15 + $0xb4] sm:$0xf]
        %v1254 = vld [vmem:[%s15 + $0xb8] sm:$0xf]
        %v1255 = vld [vmem:[%s15 + $0xbc] sm:$0xf]
        %v1256 = vld [vmem:[%s15 + $0xc0] sm:$0xf]
        %v1257 = vld [vmem:[%s15 + $0xc4] sm:$0xf]
        %v1258 = vld [vmem:[%s15 + $0xc8] sm:$0xf]
        %v1259 = vld [vmem:[%s15 + $0xcc] sm:$0xf]
        %v1260 = vld [vmem:[%s15 + $0xd0] sm:$0xf]
        %v1261 = vld [vmem:[%s15 + $0xd4] sm:$0xf]
        %v1262 = vld [vmem:[%s15 + $0xd8] sm:$0xf]
        %v1263 = vld [vmem:[%s15 + $0xdc] sm:$0xf]
        %v1264 = vld [vmem:[%s15 + $0xe0] sm:$0xf]
        %v1265 = vld [vmem:[%s15 + $0xe4] sm:$0xf]
        %v1266 = vld [vmem:[%s15 + $0xe8] sm:$0xf]
        %v1267 = vld [vmem:[%s15 + $0xec] sm:$0xf]
        %v1268 = vld [vmem:[%s15 + $0xf0] sm:$0xf]
        %v1269 = vld [vmem:[%s15 + $0xf4] sm:$0xf]
        %v1270 = vld [vmem:[%s15 + $0xf8] sm:$0xf]
        %v1271 = vld [vmem:[%s15 + $0xfc] sm:$0xf]
        %v1272 = vpack.c.bf16 %v1111, %v1111
        %v1273 = vpack.c.bf16 %v1113, %v1113
        %v1338 = vunpack.c.l.b16 %v1208
        %v1339 = vunpack.c.l.b16 %v1209
        %v1340 = vunpack.c.l.b16 %v1210
        %v1341 = vunpack.c.l.b16 %v1211
        %v1342 = vunpack.c.l.b16 %v1212
        %v1343 = vunpack.c.l.b16 %v1213
        %v1344 = vunpack.c.l.b16 %v1214
        %v1345 = vunpack.c.l.b16 %v1215
        %v1346 = vunpack.c.l.b16 %v1216
        %v1347 = vunpack.c.l.b16 %v1217
        %v1348 = vunpack.c.l.b16 %v1218
        %v1349 = vunpack.c.l.b16 %v1219
        %v1350 = vunpack.c.l.b16 %v1220
        %v1351 = vunpack.c.l.b16 %v1221
        %v1352 = vunpack.c.l.b16 %v1222
        %v1353 = vunpack.c.l.b16 %v1223
        %v1354 = vunpack.c.l.b16 %v1224
        %v1355 = vunpack.c.l.b16 %v1225
        %v1356 = vunpack.c.l.b16 %v1226
        %v1357 = vunpack.c.l.b16 %v1227
        %v1358 = vunpack.c.l.b16 %v1228
        %v1359 = vunpack.c.l.b16 %v1229
        %v1360 = vunpack.c.l.b16 %v1230
        %v1361 = vunpack.c.l.b16 %v1231
        %v1362 = vunpack.c.l.b16 %v1232
        %v1363 = vunpack.c.l.b16 %v1233
        %v1364 = vunpack.c.l.b16 %v1234
        %v1365 = vunpack.c.l.b16 %v1235
        %v1366 = vunpack.c.l.b16 %v1236
        %v1367 = vunpack.c.l.b16 %v1237
        %v1368 = vunpack.c.l.b16 %v1238
        %v1369 = vunpack.c.l.b16 %v1239
        %v1370 = vunpack.c.l.b16 %v1240
        %v1371 = vunpack.c.l.b16 %v1241
        %v1372 = vunpack.c.l.b16 %v1242
        %v1373 = vunpack.c.l.b16 %v1243
        %v1374 = vunpack.c.l.b16 %v1244
        %v1375 = vunpack.c.l.b16 %v1245
        %v1376 = vunpack.c.l.b16 %v1246
        %v1377 = vunpack.c.l.b16 %v1247
        %v1378 = vunpack.c.l.b16 %v1248
        %v1379 = vunpack.c.l.b16 %v1249
        %v1380 = vunpack.c.l.b16 %v1250
        %v1381 = vunpack.c.l.b16 %v1251
        %v1382 = vunpack.c.l.b16 %v1252
        %v1383 = vunpack.c.l.b16 %v1253
        %v1384 = vunpack.c.l.b16 %v1254
        %v1385 = vunpack.c.l.b16 %v1255
        %v1386 = vunpack.c.l.b16 %v1256
        %v1387 = vunpack.c.l.b16 %v1257
        %v1388 = vunpack.c.l.b16 %v1258
        %v1389 = vunpack.c.l.b16 %v1259
        %v1390 = vunpack.c.l.b16 %v1260
        %v1391 = vunpack.c.l.b16 %v1261
        %v1392 = vunpack.c.l.b16 %v1262
        %v1393 = vunpack.c.l.b16 %v1263
        %v1394 = vunpack.c.l.b16 %v1264
        %v1395 = vunpack.c.l.b16 %v1265
        %v1396 = vunpack.c.l.b16 %v1266
        %v1397 = vunpack.c.l.b16 %v1267
        %v1398 = vunpack.c.l.b16 %v1268
        %v1399 = vunpack.c.l.b16 %v1269
        %v1400 = vunpack.c.l.b16 %v1270
        %v1401 = vunpack.c.l.b16 %v1271
        %v1402 = vpack.c.b16 %v1339, %v1338
        %v1403 = vpack.c.b16 %v1341, %v1340
        %v1404 = vpack.c.b16 %v1343, %v1342
        %v1405 = vpack.c.b16 %v1345, %v1344
        %v1406 = vpack.c.b16 %v1347, %v1346
        %v1407 = vpack.c.b16 %v1349, %v1348
        %v1408 = vpack.c.b16 %v1351, %v1350
        %v1409 = vpack.c.b16 %v1353, %v1352
        %v1410 = vpack.c.b16 %v1355, %v1354
        %v1411 = vpack.c.b16 %v1357, %v1356
        %v1412 = vpack.c.b16 %v1359, %v1358
        %v1413 = vpack.c.b16 %v1361, %v1360
        %v1414 = vpack.c.b16 %v1363, %v1362
        %v1415 = vpack.c.b16 %v1365, %v1364
        %v1416 = vpack.c.b16 %v1367, %v1366
        %v1417 = vpack.c.b16 %v1369, %v1368
        %v1418 = vpack.c.b16 %v1371, %v1370
        %v1419 = vpack.c.b16 %v1373, %v1372
        %v1420 = vpack.c.b16 %v1375, %v1374
        %v1421 = vpack.c.b16 %v1377, %v1376
        %v1422 = vpack.c.b16 %v1379, %v1378
        %v1423 = vpack.c.b16 %v1381, %v1380
        %v1424 = vpack.c.b16 %v1383, %v1382
        %v1425 = vpack.c.b16 %v1385, %v1384
        %v1426 = vpack.c.b16 %v1387, %v1386
        %v1427 = vpack.c.b16 %v1389, %v1388
        %v1428 = vpack.c.b16 %v1391, %v1390
        %v1429 = vpack.c.b16 %v1393, %v1392
        %v1430 = vpack.c.b16 %v1395, %v1394
        %v1431 = vpack.c.b16 %v1397, %v1396
        %v1432 = vpack.c.b16 %v1399, %v1398
        %v1433 = vpack.c.b16 %v1401, %v1400
        %v1435 = vsel %vm954, %v1402, 0
        %v1438 = vsel %vm954, %v1403, 0
        %v1441 = vsel %vm954, %v1404, 0
        %v1444 = vsel %vm954, %v1405, 0
        %v1447 = vsel %vm954, %v1406, 0
        %v1450 = vsel %vm954, %v1407, 0
        %v1453 = vsel %vm954, %v1408, 0
        %v1456 = vsel %vm954, %v1409, 0
        %v1459 = vsel %vm954, %v1410, 0
        %v1462 = vsel %vm954, %v1411, 0
        %v1465 = vsel %vm954, %v1412, 0
        %v1468 = vsel %vm954, %v1413, 0
        %v1471 = vsel %vm954, %v1414, 0
        %v1474 = vsel %vm954, %v1415, 0
        %v1477 = vsel %vm954, %v1416, 0
        %v1480 = vsel %vm954, %v1417, 0
        %v1483 = vsel %vm954, %v1418, 0
        %v1486 = vsel %vm954, %v1419, 0
        %v1489 = vsel %vm954, %v1420, 0
        %v1492 = vsel %vm954, %v1421, 0
        %v1495 = vsel %vm954, %v1422, 0
        %v1498 = vsel %vm954, %v1423, 0
        %v1501 = vsel %vm954, %v1424, 0
        %v1504 = vsel %vm954, %v1425, 0
        %v1507 = vsel %vm954, %v1426, 0
        %v1510 = vsel %vm954, %v1427, 0
        %v1513 = vsel %vm954, %v1428, 0
        %v1516 = vsel %vm954, %v1429, 0
        %v1519 = vsel %vm954, %v1430, 0
        %v1522 = vsel %vm954, %v1431, 0
        %v1525 = vsel %vm954, %v1432, 0
        %v1528 = vsel %vm954, %v1433, 0
        %v1531 = vsel %vm714, %v1272, 0
        %v1534 = vsel %vm714, %v1273, 0
        %1536 = vmatprep.subr.bf16.mxu0 %v1534
        %1537 = vmatpush1.bf16.msra.mxu0 %v1531
        %1538 = vmatprep.subr.bf16.mxu0 0
        %1539 = vmatpush1.bf16.msra.mxu0 0
        %1540 = vmatprep.subr.bf16.mxu0 0
        %1541 = vmatpush1.bf16.msra.mxu0 0
        %1542 = vmatprep.subr.bf16.mxu0 0
        %1543 = vmatpush1.bf16.msra.mxu0 0
        %1544 = vmatprep.subr.bf16.mxu0 0
        %1545 = vmatpush1.bf16.msra.mxu0 0
        %1546 = vmatprep.subr.bf16.mxu0 0
        %1547 = vmatpush1.bf16.msra.mxu0 0
        %1548 = vmatprep.subr.bf16.mxu0 0
        %1549 = vmatpush1.bf16.msra.mxu0 0
        %1550 = vmatprep.subr.bf16.mxu0 0
        %1551 = vmatpush1.bf16.msra.mxu0 0
        %1552 = vmatprep.subr.bf16.mxu0 0
        %1553 = vmatpush1.bf16.msra.mxu0 0
        %1554 = vmatprep.subr.bf16.mxu0 0
        %1555 = vmatpush1.bf16.msra.mxu0 0
        %1556 = vmatprep.subr.bf16.mxu0 0
        %1557 = vmatpush1.bf16.msra.mxu0 0
        %1558 = vmatprep.subr.bf16.mxu0 0
        %1559 = vmatpush1.bf16.msra.mxu0 0
        %1560 = vmatprep.subr.bf16.mxu0 0
        %1561 = vmatpush1.bf16.msra.mxu0 0
        %1562 = vmatprep.subr.bf16.mxu0 0
        %1563 = vmatpush1.bf16.msra.mxu0 0
        %1564 = vmatprep.subr.bf16.mxu0 0
        %1565 = vmatpush1.bf16.msra.mxu0 0
        %1566 = vmatprep.subr.bf16.mxu0 0
        %1567 = vmatpush1.bf16.msra.mxu0 0
        %1568 = vmatprep.mubr.bf16.mxu0 0
        %1569 = vmatmul.mubr.bf16.gmra.mrb[0].mxu0 %v1435
        %v1570 = vpop.f32.mrb[0].mxu0
        %v1571 = vadd.f32 0.0, %v1570
        %v1572 = vpop.f32.mrb[0].mxu0
        %v1573 = vadd.f32 0.0, %v1572
        %v1574 = vpop.f32.mrb[0].mxu0
        %v1575 = vadd.f32 0.0, %v1574
        %v1576 = vpop.f32.mrb[0].mxu0
        %v1577 = vadd.f32 0.0, %v1576
        %1578 = vmatprep.mubr.bf16.mxu0 0
        %1579 = vmatmul.mubr.bf16.gmra.mrb[0].mxu0 %v1438
        %v1580 = vpop.f32.mrb[0].mxu0
        %v1581 = vadd.f32 0.0, %v1580
        %v1582 = vpop.f32.mrb[0].mxu0
        %v1583 = vadd.f32 0.0, %v1582
        %v1584 = vpop.f32.mrb[0].mxu0
        %v1585 = vadd.f32 0.0, %v1584
        %v1586 = vpop.f32.mrb[0].mxu0
        %v1587 = vadd.f32 0.0, %v1586
        %1588 = vmatprep.mubr.bf16.mxu0 0
        %1589 = vmatmul.mubr.bf16.gmra.mrb[0].mxu0 %v1441
        %v1590 = vpop.f32.mrb[0].mxu0
        %v1591 = vadd.f32 0.0, %v1590
        %v1592 = vpop.f32.mrb[0].mxu0
        %v1593 = vadd.f32 0.0, %v1592
        %v1594 = vpop.f32.mrb[0].mxu0
        %v1595 = vadd.f32 0.0, %v1594
        %v1596 = vpop.f32.mrb[0].mxu0
        %v1597 = vadd.f32 0.0, %v1596
        %1598 = vmatprep.mubr.bf16.mxu0 0
        %1599 = vmatmul.mubr.bf16.gmra.mrb[0].mxu0 %v1444
        %v1600 = vpop.f32.mrb[0].mxu0
        %v1601 = vadd.f32 0.0, %v1600
        %v1602 = vpop.f32.mrb[0].mxu0
        %v1603 = vadd.f32 0.0, %v1602
        %v1604 = vpop.f32.mrb[0].mxu0
        %v1605 = vadd.f32 0.0, %v1604
        %v1606 = vpop.f32.mrb[0].mxu0
        %v1607 = vadd.f32 0.0, %v1606
        %1608 = vmatprep.mubr.bf16.mxu0 0
        %1609 = vmatmul.mubr.bf16.gmra.mrb[0].mxu0 %v1447
        %v1610 = vpop.f32.mrb[0].mxu0
        %v1611 = vadd.f32 0.0, %v1610
        %v1612 = vpop.f32.mrb[0].mxu0
        %v1613 = vadd.f32 0.0, %v1612
        %v1614 = vpop.f32.mrb[0].mxu0
        %v1615 = vadd.f32 0.0, %v1614
        %v1616 = vpop.f32.mrb[0].mxu0
        %v1617 = vadd.f32 0.0, %v1616
        %1618 = vmatprep.mubr.bf16.mxu0 0
        %1619 = vmatmul.mubr.bf16.gmra.mrb[0].mxu0 %v1450
        %v1620 = vpop.f32.mrb[0].mxu0
        %v1621 = vadd.f32 0.0, %v1620
        %v1622 = vpop.f32.mrb[0].mxu0
        %v1623 = vadd.f32 0.0, %v1622
        %v1624 = vpop.f32.mrb[0].mxu0
        %v1625 = vadd.f32 0.0, %v1624
        %v1626 = vpop.f32.mrb[0].mxu0
        %v1627 = vadd.f32 0.0, %v1626
        %1628 = vmatprep.mubr.bf16.mxu0 0
        %1629 = vmatmul.mubr.bf16.gmra.mrb[0].mxu0 %v1453
        %v1630 = vpop.f32.mrb[0].mxu0
        %v1631 = vadd.f32 0.0, %v1630
        %v1632 = vpop.f32.mrb[0].mxu0
        %v1633 = vadd.f32 0.0, %v1632
        %v1634 = vpop.f32.mrb[0].mxu0
        %v1635 = vadd.f32 0.0, %v1634
        %v1636 = vpop.f32.mrb[0].mxu0
        %v1637 = vadd.f32 0.0, %v1636
        %1638 = vmatprep.mubr.bf16.mxu0 0
        %1639 = vmatmul.mubr.bf16.gmra.mrb[0].mxu0 %v1456
        %v1640 = vpop.f32.mrb[0].mxu0
        %v1641 = vadd.f32 0.0, %v1640
        %v1642 = vpop.f32.mrb[0].mxu0
        %v1643 = vadd.f32 0.0, %v1642
        %v1644 = vpop.f32.mrb[0].mxu0
        %v1645 = vadd.f32 0.0, %v1644
        %v1646 = vpop.f32.mrb[0].mxu0
        %v1647 = vadd.f32 0.0, %v1646
        %1648 = vmatprep.mubr.bf16.mxu0 0
        %1649 = vmatmul.mubr.bf16.gmra.mrb[0].mxu0 %v1459
        %v1650 = vpop.f32.mrb[0].mxu0
        %v1651 = vadd.f32 0.0, %v1650
        %v1652 = vpop.f32.mrb[0].mxu0
        %v1653 = vadd.f32 0.0, %v1652
        %v1654 = vpop.f32.mrb[0].mxu0
        %v1655 = vadd.f32 0.0, %v1654
        %v1656 = vpop.f32.mrb[0].mxu0
        %v1657 = vadd.f32 0.0, %v1656
        %1658 = vmatprep.mubr.bf16.mxu0 0
        %1659 = vmatmul.mubr.bf16.gmra.mrb[0].mxu0 %v1462
        %v1660 = vpop.f32.mrb[0].mxu0
        %v1661 = vadd.f32 0.0, %v1660
        %v1662 = vpop.f32.mrb[0].mxu0
        %v1663 = vadd.f32 0.0, %v1662
        %v1664 = vpop.f32.mrb[0].mxu0
        %v1665 = vadd.f32 0.0, %v1664
        %v1666 = vpop.f32.mrb[0].mxu0
        %v1667 = vadd.f32 0.0, %v1666
        %1668 = vmatprep.mubr.bf16.mxu0 0
        %1669 = vmatmul.mubr.bf16.gmra.mrb[0].mxu0 %v1465
        %v1670 = vpop.f32.mrb[0].mxu0
        %v1671 = vadd.f32 0.0, %v1670
        %v1672 = vpop.f32.mrb[0].mxu0
        %v1673 = vadd.f32 0.0, %v1672
        %v1674 = vpop.f32.mrb[0].mxu0
        %v1675 = vadd.f32 0.0, %v1674
        %v1676 = vpop.f32.mrb[0].mxu0
        %v1677 = vadd.f32 0.0, %v1676
        %1678 = vmatprep.mubr.bf16.mxu0 0
        %1679 = vmatmul.mubr.bf16.gmra.mrb[0].mxu0 %v1468
        %v1680 = vpop.f32.mrb[0].mxu0
        %v1681 = vadd.f32 0.0, %v1680
        %v1682 = vpop.f32.mrb[0].mxu0
        %v1683 = vadd.f32 0.0, %v1682
        %v1684 = vpop.f32.mrb[0].mxu0
        %v1685 = vadd.f32 0.0, %v1684
        %v1686 = vpop.f32.mrb[0].mxu0
        %v1687 = vadd.f32 0.0, %v1686
        %1688 = vmatprep.mubr.bf16.mxu0 0
        %1689 = vmatmul.mubr.bf16.gmra.mrb[0].mxu0 %v1471
        %v1690 = vpop.f32.mrb[0].mxu0
        %v1691 = vadd.f32 0.0, %v1690
        %v1692 = vpop.f32.mrb[0].mxu0
        %v1693 = vadd.f32 0.0, %v1692
        %v1694 = vpop.f32.mrb[0].mxu0
        %v1695 = vadd.f32 0.0, %v1694
        %v1696 = vpop.f32.mrb[0].mxu0
        %v1697 = vadd.f32 0.0, %v1696
        %1698 = vmatprep.mubr.bf16.mxu0 0
        %1699 = vmatmul.mubr.bf16.gmra.mrb[0].mxu0 %v1474
        %v1700 = vpop.f32.mrb[0].mxu0
        %v1701 = vadd.f32 0.0, %v1700
        %v1702 = vpop.f32.mrb[0].mxu0
        %v1703 = vadd.f32 0.0, %v1702
        %v1704 = vpop.f32.mrb[0].mxu0
        %v1705 = vadd.f32 0.0, %v1704
        %v1706 = vpop.f32.mrb[0].mxu0
        %v1707 = vadd.f32 0.0, %v1706
        %1708 = vmatprep.mubr.bf16.mxu0 0
        %1709 = vmatmul.mubr.bf16.gmra.mrb[0].mxu0 %v1477
        %v1710 = vpop.f32.mrb[0].mxu0
        %v1711 = vadd.f32 0.0, %v1710
        %v1712 = vpop.f32.mrb[0].mxu0
        %v1713 = vadd.f32 0.0, %v1712
        %v1714 = vpop.f32.mrb[0].mxu0
        %v1715 = vadd.f32 0.0, %v1714
        %v1716 = vpop.f32.mrb[0].mxu0
        %v1717 = vadd.f32 0.0, %v1716
        %1718 = vmatprep.mubr.bf16.mxu0 0
        %1719 = vmatmul.mubr.bf16.gmra.mrb[0].mxu0 %v1480
        %v1720 = vpop.f32.mrb[0].mxu0
        %v1721 = vadd.f32 0.0, %v1720
        %v1722 = vpop.f32.mrb[0].mxu0
        %v1723 = vadd.f32 0.0, %v1722
        %v1724 = vpop.f32.mrb[0].mxu0
        %v1725 = vadd.f32 0.0, %v1724
        %v1726 = vpop.f32.mrb[0].mxu0
        %v1727 = vadd.f32 0.0, %v1726
        %1728 = vmatprep.mubr.bf16.mxu0 0
        %1729 = vmatmul.mubr.bf16.gmra.mrb[0].mxu0 %v1483
        %v1730 = vpop.f32.mrb[0].mxu0
        %v1731 = vadd.f32 0.0, %v1730
        %v1732 = vpop.f32.mrb[0].mxu0
        %v1733 = vadd.f32 0.0, %v1732
        %v1734 = vpop.f32.mrb[0].mxu0
        %v1735 = vadd.f32 0.0, %v1734
        %v1736 = vpop.f32.mrb[0].mxu0
        %v1737 = vadd.f32 0.0, %v1736
        %1738 = vmatprep.mubr.bf16.mxu0 0
        %1739 = vmatmul.mubr.bf16.gmra.mrb[0].mxu0 %v1486
        %v1740 = vpop.f32.mrb[0].mxu0
        %v1741 = vadd.f32 0.0, %v1740
        %v1742 = vpop.f32.mrb[0].mxu0
        %v1743 = vadd.f32 0.0, %v1742
        %v1744 = vpop.f32.mrb[0].mxu0
        %v1745 = vadd.f32 0.0, %v1744
        %v1746 = vpop.f32.mrb[0].mxu0
        %v1747 = vadd.f32 0.0, %v1746
        %1748 = vmatprep.mubr.bf16.mxu0 0
        %1749 = vmatmul.mubr.bf16.gmra.mrb[0].mxu0 %v1489
        %v1750 = vpop.f32.mrb[0].mxu0
        %v1751 = vadd.f32 0.0, %v1750
        %v1752 = vpop.f32.mrb[0].mxu0
        %v1753 = vadd.f32 0.0, %v1752
        %v1754 = vpop.f32.mrb[0].mxu0
        %v1755 = vadd.f32 0.0, %v1754
        %v1756 = vpop.f32.mrb[0].mxu0
        %v1757 = vadd.f32 0.0, %v1756
        %1758 = vmatprep.mubr.bf16.mxu0 0
        %1759 = vmatmul.mubr.bf16.gmra.mrb[0].mxu0 %v1492
        %v1760 = vpop.f32.mrb[0].mxu0
        %v1761 = vadd.f32 0.0, %v1760
        %v1762 = vpop.f32.mrb[0].mxu0
        %v1763 = vadd.f32 0.0, %v1762
        %v1764 = vpop.f32.mrb[0].mxu0
        %v1765 = vadd.f32 0.0, %v1764
        %v1766 = vpop.f32.mrb[0].mxu0
        %v1767 = vadd.f32 0.0, %v1766
        %1768 = vmatprep.mubr.bf16.mxu0 0
        %1769 = vmatmul.mubr.bf16.gmra.mrb[0].mxu0 %v1495
        %v1770 = vpop.f32.mrb[0].mxu0
        %v1771 = vadd.f32 0.0, %v1770
        %v1772 = vpop.f32.mrb[0].mxu0
        %v1773 = vadd.f32 0.0, %v1772
        %v1774 = vpop.f32.mrb[0].mxu0
        %v1775 = vadd.f32 0.0, %v1774
        %v1776 = vpop.f32.mrb[0].mxu0
        %v1777 = vadd.f32 0.0, %v1776
        %1778 = vmatprep.mubr.bf16.mxu0 0
        %1779 = vmatmul.mubr.bf16.gmra.mrb[0].mxu0 %v1498
        %v1780 = vpop.f32.mrb[0].mxu0
        %v1781 = vadd.f32 0.0, %v1780
        %v1782 = vpop.f32.mrb[0].mxu0
        %v1783 = vadd.f32 0.0, %v1782
        %v1784 = vpop.f32.mrb[0].mxu0
        %v1785 = vadd.f32 0.0, %v1784
        %v1786 = vpop.f32.mrb[0].mxu0
        %v1787 = vadd.f32 0.0, %v1786
        %1788 = vmatprep.mubr.bf16.mxu0 0
        %1789 = vmatmul.mubr.bf16.gmra.mrb[0].mxu0 %v1501
        %v1790 = vpop.f32.mrb[0].mxu0
        %v1791 = vadd.f32 0.0, %v1790
        %v1792 = vpop.f32.mrb[0].mxu0
        %v1793 = vadd.f32 0.0, %v1792
        %v1794 = vpop.f32.mrb[0].mxu0
        %v1795 = vadd.f32 0.0, %v1794
        %v1796 = vpop.f32.mrb[0].mxu0
        %v1797 = vadd.f32 0.0, %v1796
        %1798 = vmatprep.mubr.bf16.mxu0 0
        %1799 = vmatmul.mubr.bf16.gmra.mrb[0].mxu0 %v1504
        %v1800 = vpop.f32.mrb[0].mxu0
        %v1801 = vadd.f32 0.0, %v1800
        %v1802 = vpop.f32.mrb[0].mxu0
        %v1803 = vadd.f32 0.0, %v1802
        %v1804 = vpop.f32.mrb[0].mxu0
        %v1805 = vadd.f32 0.0, %v1804
        %v1806 = vpop.f32.mrb[0].mxu0
        %v1807 = vadd.f32 0.0, %v1806
        %1808 = vmatprep.mubr.bf16.mxu0 0
        %1809 = vmatmul.mubr.bf16.gmra.mrb[0].mxu0 %v1507
        %v1810 = vpop.f32.mrb[0].mxu0
        %v1811 = vadd.f32 0.0, %v1810
        %v1812 = vpop.f32.mrb[0].mxu0
        %v1813 = vadd.f32 0.0, %v1812
        %v1814 = vpop.f32.mrb[0].mxu0
        %v1815 = vadd.f32 0.0, %v1814
        %v1816 = vpop.f32.mrb[0].mxu0
        %v1817 = vadd.f32 0.0, %v1816
        %1818 = vmatprep.mubr.bf16.mxu0 0
        %1819 = vmatmul.mubr.bf16.gmra.mrb[0].mxu0 %v1510
        %v1820 = vpop.f32.mrb[0].mxu0
        %v1821 = vadd.f32 0.0, %v1820
        %v1822 = vpop.f32.mrb[0].mxu0
        %v1823 = vadd.f32 0.0, %v1822
        %v1824 = vpop.f32.mrb[0].mxu0
        %v1825 = vadd.f32 0.0, %v1824
        %v1826 = vpop.f32.mrb[0].mxu0
        %v1827 = vadd.f32 0.0, %v1826
        %1828 = vmatprep.mubr.bf16.mxu0 0
        %1829 = vmatmul.mubr.bf16.gmra.mrb[0].mxu0 %v1513
        %v1830 = vpop.f32.mrb[0].mxu0
        %v1831 = vadd.f32 0.0, %v1830
        %v1832 = vpop.f32.mrb[0].mxu0
        %v1833 = vadd.f32 0.0, %v1832
        %v1834 = vpop.f32.mrb[0].mxu0
        %v1835 = vadd.f32 0.0, %v1834
        %v1836 = vpop.f32.mrb[0].mxu0
        %v1837 = vadd.f32 0.0, %v1836
        %1838 = vmatprep.mubr.bf16.mxu0 0
        %1839 = vmatmul.mubr.bf16.gmra.mrb[0].mxu0 %v1516
        %v1840 = vpop.f32.mrb[0].mxu0
        %v1841 = vadd.f32 0.0, %v1840
        %v1842 = vpop.f32.mrb[0].mxu0
        %v1843 = vadd.f32 0.0, %v1842
        %v1844 = vpop.f32.mrb[0].mxu0
        %v1845 = vadd.f32 0.0, %v1844
        %v1846 = vpop.f32.mrb[0].mxu0
        %v1847 = vadd.f32 0.0, %v1846
        %1848 = vmatprep.mubr.bf16.mxu0 0
        %1849 = vmatmul.mubr.bf16.gmra.mrb[0].mxu0 %v1519
        %v1850 = vpop.f32.mrb[0].mxu0
        %v1851 = vadd.f32 0.0, %v1850
        %v1852 = vpop.f32.mrb[0].mxu0
        %v1853 = vadd.f32 0.0, %v1852
        %v1854 = vpop.f32.mrb[0].mxu0
        %v1855 = vadd.f32 0.0, %v1854
        %v1856 = vpop.f32.mrb[0].mxu0
        %v1857 = vadd.f32 0.0, %v1856
        %1858 = vmatprep.mubr.bf16.mxu0 0
        %1859 = vmatmul.mubr.bf16.gmra.mrb[0].mxu0 %v1522
        %v1860 = vpop.f32.mrb[0].mxu0
        %v1861 = vadd.f32 0.0, %v1860
        %v1862 = vpop.f32.mrb[0].mxu0
        %v1863 = vadd.f32 0.0, %v1862
        %v1864 = vpop.f32.mrb[0].mxu0
        %v1865 = vadd.f32 0.0, %v1864
        %v1866 = vpop.f32.mrb[0].mxu0
        %v1867 = vadd.f32 0.0, %v1866
        %1868 = vmatprep.mubr.bf16.mxu0 0
        %1869 = vmatmul.mubr.bf16.gmra.mrb[0].mxu0 %v1525
        %v1870 = vpop.f32.mrb[0].mxu0
        %v1871 = vadd.f32 0.0, %v1870
        %v1872 = vpop.f32.mrb[0].mxu0
        %v1873 = vadd.f32 0.0, %v1872
        %v1874 = vpop.f32.mrb[0].mxu0
        %v1875 = vadd.f32 0.0, %v1874
        %v1876 = vpop.f32.mrb[0].mxu0
        %v1877 = vadd.f32 0.0, %v1876
        %1878 = vmatprep.mubr.bf16.mxu0 0
        %1879 = vmatmul.mubr.bf16.gmra.mrb[0].mxu0 %v1528
        %v1880 = vpop.f32.mrb[0].mxu0
        %v1881 = vadd.f32 0.0, %v1880
        %v1882 = vpop.f32.mrb[0].mxu0
        %v1883 = vadd.f32 0.0, %v1882
        %v1884 = vpop.f32.mrb[0].mxu0
        %v1885 = vadd.f32 0.0, %v1884
        %v1886 = vpop.f32.mrb[0].mxu0
        %v1887 = vadd.f32 0.0, %v1886
        %1888 = vdwg.mxu0
        %v1889 = vpack.c.bf16 %v1159, %v1159
        %v1891 = vsel %vm714, %v1889, 0
        %1893 = vmatprep.subr.bf16.mxu0 0
        %1894 = vmatpush1.bf16.msra.mxu0 %v1891
        %1895 = vmatprep.subr.bf16.mxu0 0
        %1896 = vmatpush1.bf16.msra.mxu0 0
        %1897 = vmatprep.subr.bf16.mxu0 0
        %1898 = vmatpush1.bf16.msra.mxu0 0
        %1899 = vmatprep.subr.bf16.mxu0 0
        %1900 = vmatpush1.bf16.msra.mxu0 0
        %1901 = vmatprep.subr.bf16.mxu0 0
        %1902 = vmatpush1.bf16.msra.mxu0 0
        %1903 = vmatprep.subr.bf16.mxu0 0
        %1904 = vmatpush1.bf16.msra.mxu0 0
        %1905 = vmatprep.subr.bf16.mxu0 0
        %1906 = vmatpush1.bf16.msra.mxu0 0
        %1907 = vmatprep.subr.bf16.mxu0 0
        %1908 = vmatpush1.bf16.msra.mxu0 0
        %1909 = vmatprep.subr.bf16.mxu0 0
        %1910 = vmatpush1.bf16.msra.mxu0 0
        %1911 = vmatprep.subr.bf16.mxu0 0
        %1912 = vmatpush1.bf16.msra.mxu0 0
        %1913 = vmatprep.subr.bf16.mxu0 0
        %1914 = vmatpush1.bf16.msra.mxu0 0
        %1915 = vmatprep.subr.bf16.mxu0 0
        %1916 = vmatpush1.bf16.msra.mxu0 0
        %1917 = vmatprep.subr.bf16.mxu0 0
        %1918 = vmatpush1.bf16.msra.mxu0 0
        %1919 = vmatprep.subr.bf16.mxu0 0
        %1920 = vmatpush1.bf16.msra.mxu0 0
        %1921 = vmatprep.subr.bf16.mxu0 0
        %1922 = vmatpush1.bf16.msra.mxu0 0
        %1923 = vmatprep.subr.bf16.mxu0 0
        %1924 = vmatpush1.bf16.msra.mxu0 0
        %1925 = vmatprep.mubr.bf16.mxu0 0
        %1926 = vmatmul.mubr.bf16.gmra.mrb[0].mxu0 %v1435
        %v1927 = vpop.f32.mrb[0].mxu0
        %v1928 = vadd.f32 0.0, %v1927
        %v1929 = vpop.f32.mrb[0].mxu0
        %v1930 = vpop.f32.mrb[0].mxu0
        %v1931 = vadd.f32 0.0, %v1930
        %v1932 = vpop.f32.mrb[0].mxu0
        %1933 = vmatprep.mubr.bf16.mxu0 0
        %1934 = vmatmul.mubr.bf16.gmra.mrb[0].mxu0 %v1438
        %v1935 = vpop.f32.mrb[0].mxu0
        %v1936 = vadd.f32 0.0, %v1935
        %v1937 = vpop.f32.mrb[0].mxu0
        %v1938 = vpop.f32.mrb[0].mxu0
        %v1939 = vadd.f32 0.0, %v1938
        %v1940 = vpop.f32.mrb[0].mxu0
        %1941 = vmatprep.mubr.bf16.mxu0 0
        %1942 = vmatmul.mubr.bf16.gmra.mrb[0].mxu0 %v1441
        %v1943 = vpop.f32.mrb[0].mxu0
        %v1944 = vadd.f32 0.0, %v1943
        %v1945 = vpop.f32.mrb[0].mxu0
        %v1946 = vpop.f32.mrb[0].mxu0
        %v1947 = vadd.f32 0.0, %v1946
        %v1948 = vpop.f32.mrb[0].mxu0
        %1949 = vmatprep.mubr.bf16.mxu0 0
        %1950 = vmatmul.mubr.bf16.gmra.mrb[0].mxu0 %v1444
        %v1951 = vpop.f32.mrb[0].mxu0
        %v1952 = vadd.f32 0.0, %v1951
        %v1953 = vpop.f32.mrb[0].mxu0
        %v1954 = vpop.f32.mrb[0].mxu0
        %v1955 = vadd.f32 0.0, %v1954
        %v1956 = vpop.f32.mrb[0].mxu0
        %1957 = vmatprep.mubr.bf16.mxu0 0
        %1958 = vmatmul.mubr.bf16.gmra.mrb[0].mxu0 %v1447
        %v1959 = vpop.f32.mrb[0].mxu0
        %v1960 = vadd.f32 0.0, %v1959
        %v1961 = vpop.f32.mrb[0].mxu0
        %v1962 = vpop.f32.mrb[0].mxu0
        %v1963 = vadd.f32 0.0, %v1962
        %v1964 = vpop.f32.mrb[0].mxu0
        %1965 = vmatprep.mubr.bf16.mxu0 0
        %1966 = vmatmul.mubr.bf16.gmra.mrb[0].mxu0 %v1450
        %v1967 = vpop.f32.mrb[0].mxu0
        %v1968 = vadd.f32 0.0, %v1967
        %v1969 = vpop.f32.mrb[0].mxu0
        %v1970 = vpop.f32.mrb[0].mxu0
        %v1971 = vadd.f32 0.0, %v1970
        %v1972 = vpop.f32.mrb[0].mxu0
        %1973 = vmatprep.mubr.bf16.mxu0 0
        %1974 = vmatmul.mubr.bf16.gmra.mrb[0].mxu0 %v1453
        %v1975 = vpop.f32.mrb[0].mxu0
        %v1976 = vadd.f32 0.0, %v1975
        %v1977 = vpop.f32.mrb[0].mxu0
        %v1978 = vpop.f32.mrb[0].mxu0
        %v1979 = vadd.f32 0.0, %v1978
        %v1980 = vpop.f32.mrb[0].mxu0
        %1981 = vmatprep.mubr.bf16.mxu0 0
        %1982 = vmatmul.mubr.bf16.gmra.mrb[0].mxu0 %v1456
        %v1983 = vpop.f32.mrb[0].mxu0
        %v1984 = vadd.f32 0.0, %v1983
        %v1985 = vpop.f32.mrb[0].mxu0
        %v1986 = vpop.f32.mrb[0].mxu0
        %v1987 = vadd.f32 0.0, %v1986
        %v1988 = vpop.f32.mrb[0].mxu0
        %1989 = vmatprep.mubr.bf16.mxu0 0
        %1990 = vmatmul.mubr.bf16.gmra.mrb[0].mxu0 %v1459
        %v1991 = vpop.f32.mrb[0].mxu0
        %v1992 = vadd.f32 0.0, %v1991
        %v1993 = vpop.f32.mrb[0].mxu0
        %v1994 = vpop.f32.mrb[0].mxu0
        %v1995 = vadd.f32 0.0, %v1994
        %v1996 = vpop.f32.mrb[0].mxu0
        %1997 = vmatprep.mubr.bf16.mxu0 0
        %1998 = vmatmul.mubr.bf16.gmra.mrb[0].mxu0 %v1462
        %v1999 = vpop.f32.mrb[0].mxu0
        %v2000 = vadd.f32 0.0, %v1999
        %v2001 = vpop.f32.mrb[0].mxu0
        %v2002 = vpop.f32.mrb[0].mxu0
        %v2003 = vadd.f32 0.0, %v2002
        %v2004 = vpop.f32.mrb[0].mxu0
        %2005 = vmatprep.mubr.bf16.mxu0 0
        %2006 = vmatmul.mubr.bf16.gmra.mrb[0].mxu0 %v1465
        %v2007 = vpop.f32.mrb[0].mxu0
        %v2008 = vadd.f32 0.0, %v2007
        %v2009 = vpop.f32.mrb[0].mxu0
        %v2010 = vpop.f32.mrb[0].mxu0
        %v2011 = vadd.f32 0.0, %v2010
        %v2012 = vpop.f32.mrb[0].mxu0
        %2013 = vmatprep.mubr.bf16.mxu0 0
        %2014 = vmatmul.mubr.bf16.gmra.mrb[0].mxu0 %v1468
        %v2015 = vpop.f32.mrb[0].mxu0
        %v2016 = vadd.f32 0.0, %v2015
        %v2017 = vpop.f32.mrb[0].mxu0
        %v2018 = vpop.f32.mrb[0].mxu0
        %v2019 = vadd.f32 0.0, %v2018
        %v2020 = vpop.f32.mrb[0].mxu0
        %2021 = vmatprep.mubr.bf16.mxu0 0
        %2022 = vmatmul.mubr.bf16.gmra.mrb[0].mxu0 %v1471
        %v2023 = vpop.f32.mrb[0].mxu0
        %v2024 = vadd.f32 0.0, %v2023
        %v2025 = vpop.f32.mrb[0].mxu0
        %v2026 = vpop.f32.mrb[0].mxu0
        %v2027 = vadd.f32 0.0, %v2026
        %v2028 = vpop.f32.mrb[0].mxu0
        %2029 = vmatprep.mubr.bf16.mxu0 0
        %2030 = vmatmul.mubr.bf16.gmra.mrb[0].mxu0 %v1474
        %v2031 = vpop.f32.mrb[0].mxu0
        %v2032 = vadd.f32 0.0, %v2031
        %v2033 = vpop.f32.mrb[0].mxu0
        %v2034 = vpop.f32.mrb[0].mxu0
        %v2035 = vadd.f32 0.0, %v2034
        %v2036 = vpop.f32.mrb[0].mxu0
        %2037 = vmatprep.mubr.bf16.mxu0 0
        %2038 = vmatmul.mubr.bf16.gmra.mrb[0].mxu0 %v1477
        %v2039 = vpop.f32.mrb[0].mxu0
        %v2040 = vadd.f32 0.0, %v2039
        %v2041 = vpop.f32.mrb[0].mxu0
        %v2042 = vpop.f32.mrb[0].mxu0
        %v2043 = vadd.f32 0.0, %v2042
        %v2044 = vpop.f32.mrb[0].mxu0
        %2045 = vmatprep.mubr.bf16.mxu0 0
        %2046 = vmatmul.mubr.bf16.gmra.mrb[0].mxu0 %v1480
        %v2047 = vpop.f32.mrb[0].mxu0
        %v2048 = vadd.f32 0.0, %v2047
        %v2049 = vpop.f32.mrb[0].mxu0
        %v2050 = vpop.f32.mrb[0].mxu0
        %v2051 = vadd.f32 0.0, %v2050
        %v2052 = vpop.f32.mrb[0].mxu0
        %2053 = vmatprep.mubr.bf16.mxu0 0
        %2054 = vmatmul.mubr.bf16.gmra.mrb[0].mxu0 %v1483
        %v2055 = vpop.f32.mrb[0].mxu0
        %v2056 = vadd.f32 0.0, %v2055
        %v2057 = vpop.f32.mrb[0].mxu0
        %v2058 = vpop.f32.mrb[0].mxu0
        %v2059 = vadd.f32 0.0, %v2058
        %v2060 = vpop.f32.mrb[0].mxu0
        %2061 = vmatprep.mubr.bf16.mxu0 0
        %2062 = vmatmul.mubr.bf16.gmra.mrb[0].mxu0 %v1486
        %v2063 = vpop.f32.mrb[0].mxu0
        %v2064 = vadd.f32 0.0, %v2063
        %v2065 = vpop.f32.mrb[0].mxu0
        %v2066 = vpop.f32.mrb[0].mxu0
        %v2067 = vadd.f32 0.0, %v2066
        %v2068 = vpop.f32.mrb[0].mxu0
        %2069 = vmatprep.mubr.bf16.mxu0 0
        %2070 = vmatmul.mubr.bf16.gmra.mrb[0].mxu0 %v1489
        %v2071 = vpop.f32.mrb[0].mxu0
        %v2072 = vadd.f32 0.0, %v2071
        %v2073 = vpop.f32.mrb[0].mxu0
        %v2074 = vpop.f32.mrb[0].mxu0
        %v2075 = vadd.f32 0.0, %v2074
        %v2076 = vpop.f32.mrb[0].mxu0
        %2077 = vmatprep.mubr.bf16.mxu0 0
        %2078 = vmatmul.mubr.bf16.gmra.mrb[0].mxu0 %v1492
        %v2079 = vpop.f32.mrb[0].mxu0
        %v2080 = vadd.f32 0.0, %v2079
        %v2081 = vpop.f32.mrb[0].mxu0
        %v2082 = vpop.f32.mrb[0].mxu0
        %v2083 = vadd.f32 0.0, %v2082
        %v2084 = vpop.f32.mrb[0].mxu0
        %2085 = vmatprep.mubr.bf16.mxu0 0
        %2086 = vmatmul.mubr.bf16.gmra.mrb[0].mxu0 %v1495
        %v2087 = vpop.f32.mrb[0].mxu0
        %v2088 = vadd.f32 0.0, %v2087
        %v2089 = vpop.f32.mrb[0].mxu0
        %v2090 = vpop.f32.mrb[0].mxu0
        %v2091 = vadd.f32 0.0, %v2090
        %v2092 = vpop.f32.mrb[0].mxu0
        %2093 = vmatprep.mubr.bf16.mxu0 0
        %2094 = vmatmul.mubr.bf16.gmra.mrb[0].mxu0 %v1498
        %v2095 = vpop.f32.mrb[0].mxu0
        %v2096 = vadd.f32 0.0, %v2095
        %v2097 = vpop.f32.mrb[0].mxu0
        %v2098 = vpop.f32.mrb[0].mxu0
        %v2099 = vadd.f32 0.0, %v2098
        %v2100 = vpop.f32.mrb[0].mxu0
        %2101 = vmatprep.mubr.bf16.mxu0 0
        %2102 = vmatmul.mubr.bf16.gmra.mrb[0].mxu0 %v1501
        %v2103 = vpop.f32.mrb[0].mxu0
        %v2104 = vadd.f32 0.0, %v2103
        %v2105 = vpop.f32.mrb[0].mxu0
        %v2106 = vpop.f32.mrb[0].mxu0
        %v2107 = vadd.f32 0.0, %v2106
        %v2108 = vpop.f32.mrb[0].mxu0
        %2109 = vmatprep.mubr.bf16.mxu0 0
        %2110 = vmatmul.mubr.bf16.gmra.mrb[0].mxu0 %v1504
        %v2111 = vpop.f32.mrb[0].mxu0
        %v2112 = vadd.f32 0.0, %v2111
        %v2113 = vpop.f32.mrb[0].mxu0
        %v2114 = vpop.f32.mrb[0].mxu0
        %v2115 = vadd.f32 0.0, %v2114
        %v2116 = vpop.f32.mrb[0].mxu0
        %2117 = vmatprep.mubr.bf16.mxu0 0
        %2118 = vmatmul.mubr.bf16.gmra.mrb[0].mxu0 %v1507
        %v2119 = vpop.f32.mrb[0].mxu0
        %v2120 = vadd.f32 0.0, %v2119
        %v2121 = vpop.f32.mrb[0].mxu0
        %v2122 = vpop.f32.mrb[0].mxu0
        %v2123 = vadd.f32 0.0, %v2122
        %v2124 = vpop.f32.mrb[0].mxu0
        %2125 = vmatprep.mubr.bf16.mxu0 0
        %2126 = vmatmul.mubr.bf16.gmra.mrb[0].mxu0 %v1510
        %v2127 = vpop.f32.mrb[0].mxu0
        %v2128 = vadd.f32 0.0, %v2127
        %v2129 = vpop.f32.mrb[0].mxu0
        %v2130 = vpop.f32.mrb[0].mxu0
        %v2131 = vadd.f32 0.0, %v2130
        %v2132 = vpop.f32.mrb[0].mxu0
        %2133 = vmatprep.mubr.bf16.mxu0 0
        %2134 = vmatmul.mubr.bf16.gmra.mrb[0].mxu0 %v1513
        %v2135 = vpop.f32.mrb[0].mxu0
        %v2136 = vadd.f32 0.0, %v2135
        %v2137 = vpop.f32.mrb[0].mxu0
        %v2138 = vpop.f32.mrb[0].mxu0
        %v2139 = vadd.f32 0.0, %v2138
        %v2140 = vpop.f32.mrb[0].mxu0
        %2141 = vmatprep.mubr.bf16.mxu0 0
        %2142 = vmatmul.mubr.bf16.gmra.mrb[0].mxu0 %v1516
        %v2143 = vpop.f32.mrb[0].mxu0
        %v2144 = vadd.f32 0.0, %v2143
        %v2145 = vpop.f32.mrb[0].mxu0
        %v2146 = vpop.f32.mrb[0].mxu0
        %v2147 = vadd.f32 0.0, %v2146
        %v2148 = vpop.f32.mrb[0].mxu0
        %2149 = vmatprep.mubr.bf16.mxu0 0
        %2150 = vmatmul.mubr.bf16.gmra.mrb[0].mxu0 %v1519
        %v2151 = vpop.f32.mrb[0].mxu0
        %v2152 = vadd.f32 0.0, %v2151
        %v2153 = vpop.f32.mrb[0].mxu0
        %v2154 = vpop.f32.mrb[0].mxu0
        %v2155 = vadd.f32 0.0, %v2154
        %v2156 = vpop.f32.mrb[0].mxu0
        %2157 = vmatprep.mubr.bf16.mxu0 0
        %2158 = vmatmul.mubr.bf16.gmra.mrb[0].mxu0 %v1522
        %v2159 = vpop.f32.mrb[0].mxu0
        %v2160 = vadd.f32 0.0, %v2159
        %v2161 = vpop.f32.mrb[0].mxu0
        %v2162 = vpop.f32.mrb[0].mxu0
        %v2163 = vadd.f32 0.0, %v2162
        %v2164 = vpop.f32.mrb[0].mxu0
        %2165 = vmatprep.mubr.bf16.mxu0 0
        %2166 = vmatmul.mubr.bf16.gmra.mrb[0].mxu0 %v1525
        %v2167 = vpop.f32.mrb[0].mxu0
        %v2168 = vadd.f32 0.0, %v2167
        %v2169 = vpop.f32.mrb[0].mxu0
        %v2170 = vpop.f32.mrb[0].mxu0
        %v2171 = vadd.f32 0.0, %v2170
        %v2172 = vpop.f32.mrb[0].mxu0
        %2173 = vmatprep.mubr.bf16.mxu0 0
        %2174 = vmatmul.mubr.bf16.gmra.mrb[0].mxu0 %v1528
        %v2175 = vpop.f32.mrb[0].mxu0
        %v2176 = vadd.f32 0.0, %v2175
        %v2177 = vpop.f32.mrb[0].mxu0
        %v2178 = vpop.f32.mrb[0].mxu0
        %v2179 = vadd.f32 0.0, %v2178
        %v2180 = vpop.f32.mrb[0].mxu0
        %2181 = vdwg.mxu0
        %v2182 = vld [vmem:[%s16] sm:$0xff]
        %v2183 = vld [vmem:[%s16 + $0x8] sm:$0xff]
        %v2184 = vld [vmem:[%s16 + $0x10] sm:$0xff]
        %v2185 = vld [vmem:[%s16 + $0x18] sm:$0xff]
        %v2186 = vld [vmem:[%s16 + $0x20] sm:$0xff]
        %v2187 = vld [vmem:[%s16 + $0x28] sm:$0xff]
        %v2188 = vld [vmem:[%s16 + $0x30] sm:$0xff]
        %v2189 = vld [vmem:[%s16 + $0x38] sm:$0xff]
        %v2190 = vld [vmem:[%s16 + $0x40] sm:$0xff]
        %v2191 = vld [vmem:[%s16 + $0x48] sm:$0xff]
        %v2192 = vld [vmem:[%s16 + $0x50] sm:$0xff]
        %v2193 = vld [vmem:[%s16 + $0x58] sm:$0xff]
        %v2194 = vld [vmem:[%s16 + $0x60] sm:$0xff]
        %v2195 = vld [vmem:[%s16 + $0x68] sm:$0xff]
        %v2196 = vld [vmem:[%s16 + $0x70] sm:$0xff]
        %v2197 = vld [vmem:[%s16 + $0x78] sm:$0xff]
        %v2198 = vld [vmem:[%s16 + $0x80] sm:$0xff]
        %v2199 = vld [vmem:[%s16 + $0x88] sm:$0xff]
        %v2200 = vld [vmem:[%s16 + $0x90] sm:$0xff]
        %v2201 = vld [vmem:[%s16 + $0x98] sm:$0xff]
        %v2202 = vld [vmem:[%s16 + $0xa0] sm:$0xff]
        %v2203 = vld [vmem:[%s16 + $0xa8] sm:$0xff]
        %v2204 = vld [vmem:[%s16 + $0xb0] sm:$0xff]
        %v2205 = vld [vmem:[%s16 + $0xb8] sm:$0xff]
        %v2206 = vld [vmem:[%s16 + $0xc0] sm:$0xff]
        %v2207 = vld [vmem:[%s16 + $0xc8] sm:$0xff]
        %v2208 = vld [vmem:[%s16 + $0xd0] sm:$0xff]
        %v2209 = vld [vmem:[%s16 + $0xd8] sm:$0xff]
        %v2210 = vld [vmem:[%s16 + $0xe0] sm:$0xff]
        %v2211 = vld [vmem:[%s16 + $0xe8] sm:$0xff]
        %v2212 = vld [vmem:[%s16 + $0xf0] sm:$0xff]
        %v2213 = vld [vmem:[%s16 + $0xf8] sm:$0xff]
        %v2214 = vld [vmem:[%s16 + $0x100] sm:$0xff]
        %v2215 = vld [vmem:[%s16 + $0x108] sm:$0xff]
        %v2216 = vld [vmem:[%s16 + $0x110] sm:$0xff]
        %v2217 = vld [vmem:[%s16 + $0x118] sm:$0xff]
        %v2218 = vld [vmem:[%s16 + $0x120] sm:$0xff]
        %v2219 = vld [vmem:[%s16 + $0x128] sm:$0xff]
        %v2220 = vld [vmem:[%s16 + $0x130] sm:$0xff]
        %v2221 = vld [vmem:[%s16 + $0x138] sm:$0xff]
        %v2222 = vld [vmem:[%s16 + $0x140] sm:$0xff]
        %v2223 = vld [vmem:[%s16 + $0x148] sm:$0xff]
        %v2224 = vld [vmem:[%s16 + $0x150] sm:$0xff]
        %v2225 = vld [vmem:[%s16 + $0x158] sm:$0xff]
        %v2226 = vld [vmem:[%s16 + $0x160] sm:$0xff]
        %v2227 = vld [vmem:[%s16 + $0x168] sm:$0xff]
        %v2228 = vld [vmem:[%s16 + $0x170] sm:$0xff]
        %v2229 = vld [vmem:[%s16 + $0x178] sm:$0xff]
        %v2230 = vld [vmem:[%s16 + $0x180] sm:$0xff]
        %v2231 = vld [vmem:[%s16 + $0x188] sm:$0xff]
        %v2232 = vld [vmem:[%s16 + $0x190] sm:$0xff]
        %v2233 = vld [vmem:[%s16 + $0x198] sm:$0xff]
        %v2234 = vld [vmem:[%s16 + $0x1a0] sm:$0xff]
        %v2235 = vld [vmem:[%s16 + $0x1a8] sm:$0xff]
        %v2236 = vld [vmem:[%s16 + $0x1b0] sm:$0xff]
        %v2237 = vld [vmem:[%s16 + $0x1b8] sm:$0xff]
        %v2238 = vld [vmem:[%s16 + $0x1c0] sm:$0xff]
        %v2239 = vld [vmem:[%s16 + $0x1c8] sm:$0xff]
        %v2240 = vld [vmem:[%s16 + $0x1d0] sm:$0xff]
        %v2241 = vld [vmem:[%s16 + $0x1d8] sm:$0xff]
        %v2242 = vld [vmem:[%s16 + $0x1e0] sm:$0xff]
        %v2243 = vld [vmem:[%s16 + $0x1e8] sm:$0xff]
        %v2244 = vld [vmem:[%s16 + $0x1f0] sm:$0xff]
        %v2245 = vld [vmem:[%s16 + $0x1f8] sm:$0xff]
        %v2246 = vmul.f32 %v1928, %v2182
        %v2247 = vmul.f32 %v1931, %v2183
        %v2248 = vmul.f32 %v1936, %v2184
        %v2249 = vmul.f32 %v1939, %v2185
        %v2250 = vmul.f32 %v1944, %v2186
        %v2251 = vmul.f32 %v1947, %v2187
        %v2252 = vmul.f32 %v1952, %v2188
        %v2253 = vmul.f32 %v1955, %v2189
        %v2254 = vmul.f32 %v1960, %v2190
        %v2255 = vmul.f32 %v1963, %v2191
        %v2256 = vmul.f32 %v1968, %v2192
        %v2257 = vmul.f32 %v1971, %v2193
        %v2258 = vmul.f32 %v1976, %v2194
        %v2259 = vmul.f32 %v1979, %v2195
        %v2260 = vmul.f32 %v1984, %v2196
        %v2261 = vmul.f32 %v1987, %v2197
        %v2262 = vmul.f32 %v1992, %v2198
        %v2263 = vmul.f32 %v1995, %v2199
        %v2264 = vmul.f32 %v2000, %v2200
        %v2265 = vmul.f32 %v2003, %v2201
        %v2266 = vmul.f32 %v2008, %v2202
        %v2267 = vmul.f32 %v2011, %v2203
        %v2268 = vmul.f32 %v2016, %v2204
        %v2269 = vmul.f32 %v2019, %v2205
        %v2270 = vmul.f32 %v2024, %v2206
        %v2271 = vmul.f32 %v2027, %v2207
        %v2272 = vmul.f32 %v2032, %v2208
        %v2273 = vmul.f32 %v2035, %v2209
        %v2274 = vmul.f32 %v2040, %v2210
        %v2275 = vmul.f32 %v2043, %v2211
        %v2276 = vmul.f32 %v2048, %v2212
        %v2277 = vmul.f32 %v2051, %v2213
        %v2278 = vmul.f32 %v2056, %v2214
        %v2279 = vmul.f32 %v2059, %v2215
        %v2280 = vmul.f32 %v2064, %v2216
        %v2281 = vmul.f32 %v2067, %v2217
        %v2282 = vmul.f32 %v2072, %v2218
        %v2283 = vmul.f32 %v2075, %v2219
        %v2284 = vmul.f32 %v2080, %v2220
        %v2285 = vmul.f32 %v2083, %v2221
        %v2286 = vmul.f32 %v2088, %v2222
        %v2287 = vmul.f32 %v2091, %v2223
        %v2288 = vmul.f32 %v2096, %v2224
        %v2289 = vmul.f32 %v2099, %v2225
        %v2290 = vmul.f32 %v2104, %v2226
        %v2291 = vmul.f32 %v2107, %v2227
        %v2292 = vmul.f32 %v2112, %v2228
        %v2293 = vmul.f32 %v2115, %v2229
        %v2294 = vmul.f32 %v2120, %v2230
        %v2295 = vmul.f32 %v2123, %v2231
        %v2296 = vmul.f32 %v2128, %v2232
        %v2297 = vmul.f32 %v2131, %v2233
        %v2298 = vmul.f32 %v2136, %v2234
        %v2299 = vmul.f32 %v2139, %v2235
        %v2300 = vmul.f32 %v2144, %v2236
        %v2301 = vmul.f32 %v2147, %v2237
        %v2302 = vmul.f32 %v2152, %v2238
        %v2303 = vmul.f32 %v2155, %v2239
        %v2304 = vmul.f32 %v2160, %v2240
        %v2305 = vmul.f32 %v2163, %v2241
        %v2306 = vmul.f32 %v2168, %v2242
        %v2307 = vmul.f32 %v2171, %v2243
        %v2308 = vmul.f32 %v2176, %v2244
        %v2309 = vmul.f32 %v2179, %v2245
        %v2310 = vsel %vm1001, %v2246, 0.0
        %2311 = vadd.xlane.f32.xlu0 %v2310
        %v2312 = vpop.xlane.xlu0 %2311
        %v2313 = vsel %vm1001, %v2247, 0.0
        %2314 = vadd.xlane.f32.xlu0 %v2313
        %v2315 = vpop.xlane.xlu0 %2314
        %v2316 = vsel %vm1001, %v2248, 0.0
        %2317 = vadd.xlane.f32.xlu0 %v2316
        %v2318 = vpop.xlane.xlu0 %2317
        %v2319 = vsel %vm1001, %v2249, 0.0
        %2320 = vadd.xlane.f32.xlu0 %v2319
        %v2321 = vpop.xlane.xlu0 %2320
        %v2322 = vsel %vm1001, %v2250, 0.0
        %2323 = vadd.xlane.f32.xlu0 %v2322
        %v2324 = vpop.xlane.xlu0 %2323
        %v2325 = vsel %vm1001, %v2251, 0.0
        %2326 = vadd.xlane.f32.xlu0 %v2325
        %v2327 = vpop.xlane.xlu0 %2326
        %v2328 = vsel %vm1001, %v2252, 0.0
        %2329 = vadd.xlane.f32.xlu0 %v2328
        %v2330 = vpop.xlane.xlu0 %2329
        %v2331 = vsel %vm1001, %v2253, 0.0
        %2332 = vadd.xlane.f32.xlu0 %v2331
        %v2333 = vpop.xlane.xlu0 %2332
        %v2334 = vsel %vm1001, %v2254, 0.0
        %2335 = vadd.xlane.f32.xlu0 %v2334
        %v2336 = vpop.xlane.xlu0 %2335
        %v2337 = vsel %vm1001, %v2255, 0.0
        %2338 = vadd.xlane.f32.xlu0 %v2337
        %v2339 = vpop.xlane.xlu0 %2338
        %v2340 = vsel %vm1001, %v2256, 0.0
        %2341 = vadd.xlane.f32.xlu0 %v2340
        %v2342 = vpop.xlane.xlu0 %2341
        %v2343 = vsel %vm1001, %v2257, 0.0
        %2344 = vadd.xlane.f32.xlu0 %v2343
        %v2345 = vpop.xlane.xlu0 %2344
        %v2346 = vsel %vm1001, %v2258, 0.0
        %2347 = vadd.xlane.f32.xlu0 %v2346
        %v2348 = vpop.xlane.xlu0 %2347
        %v2349 = vsel %vm1001, %v2259, 0.0
        %2350 = vadd.xlane.f32.xlu0 %v2349
        %v2351 = vpop.xlane.xlu0 %2350
        %v2352 = vsel %vm1001, %v2260, 0.0
        %2353 = vadd.xlane.f32.xlu0 %v2352
        %v2354 = vpop.xlane.xlu0 %2353
        %v2355 = vsel %vm1001, %v2261, 0.0
        %2356 = vadd.xlane.f32.xlu0 %v2355
        %v2357 = vpop.xlane.xlu0 %2356
        %v2358 = vsel %vm1001, %v2262, 0.0
        %2359 = vadd.xlane.f32.xlu0 %v2358
        %v2360 = vpop.xlane.xlu0 %2359
        %v2361 = vsel %vm1001, %v2263, 0.0
        %2362 = vadd.xlane.f32.xlu0 %v2361
        %v2363 = vpop.xlane.xlu0 %2362
        %v2364 = vsel %vm1001, %v2264, 0.0
        %2365 = vadd.xlane.f32.xlu0 %v2364
        %v2366 = vpop.xlane.xlu0 %2365
        %v2367 = vsel %vm1001, %v2265, 0.0
        %2368 = vadd.xlane.f32.xlu0 %v2367
        %v2369 = vpop.xlane.xlu0 %2368
        %v2370 = vsel %vm1001, %v2266, 0.0
        %2371 = vadd.xlane.f32.xlu0 %v2370
        %v2372 = vpop.xlane.xlu0 %2371
        %v2373 = vsel %vm1001, %v2267, 0.0
        %2374 = vadd.xlane.f32.xlu0 %v2373
        %v2375 = vpop.xlane.xlu0 %2374
        %v2376 = vsel %vm1001, %v2268, 0.0
        %2377 = vadd.xlane.f32.xlu0 %v2376
        %v2378 = vpop.xlane.xlu0 %2377
        %v2379 = vsel %vm1001, %v2269, 0.0
        %2380 = vadd.xlane.f32.xlu0 %v2379
        %v2381 = vpop.xlane.xlu0 %2380
        %v2382 = vsel %vm1001, %v2270, 0.0
        %2383 = vadd.xlane.f32.xlu0 %v2382
        %v2384 = vpop.xlane.xlu0 %2383
        %v2385 = vsel %vm1001, %v2271, 0.0
        %2386 = vadd.xlane.f32.xlu0 %v2385
        %v2387 = vpop.xlane.xlu0 %2386
        %v2388 = vsel %vm1001, %v2272, 0.0
        %2389 = vadd.xlane.f32.xlu0 %v2388
        %v2390 = vpop.xlane.xlu0 %2389
        %v2391 = vsel %vm1001, %v2273, 0.0
        %2392 = vadd.xlane.f32.xlu0 %v2391
        %v2393 = vpop.xlane.xlu0 %2392
        %v2394 = vsel %vm1001, %v2274, 0.0
        %2395 = vadd.xlane.f32.xlu0 %v2394
        %v2396 = vpop.xlane.xlu0 %2395
        %v2397 = vsel %vm1001, %v2275, 0.0
        %2398 = vadd.xlane.f32.xlu0 %v2397
        %v2399 = vpop.xlane.xlu0 %2398
        %v2400 = vsel %vm1001, %v2276, 0.0
        %2401 = vadd.xlane.f32.xlu0 %v2400
        %v2402 = vpop.xlane.xlu0 %2401
        %v2403 = vsel %vm1001, %v2277, 0.0
        %2404 = vadd.xlane.f32.xlu0 %v2403
        %v2405 = vpop.xlane.xlu0 %2404
        %v2406 = vsel %vm1001, %v2278, 0.0
        %2407 = vadd.xlane.f32.xlu0 %v2406
        %v2408 = vpop.xlane.xlu0 %2407
        %v2409 = vsel %vm1001, %v2279, 0.0
        %2410 = vadd.xlane.f32.xlu0 %v2409
        %v2411 = vpop.xlane.xlu0 %2410
        %v2412 = vsel %vm1001, %v2280, 0.0
        %2413 = vadd.xlane.f32.xlu0 %v2412
        %v2414 = vpop.xlane.xlu0 %2413
        %v2415 = vsel %vm1001, %v2281, 0.0
        %2416 = vadd.xlane.f32.xlu0 %v2415
        %v2417 = vpop.xlane.xlu0 %2416
        %v2418 = vsel %vm1001, %v2282, 0.0
        %2419 = vadd.xlane.f32.xlu0 %v2418
        %v2420 = vpop.xlane.xlu0 %2419
        %v2421 = vsel %vm1001, %v2283, 0.0
        %2422 = vadd.xlane.f32.xlu0 %v2421
        %v2423 = vpop.xlane.xlu0 %2422
        %v2424 = vsel %vm1001, %v2284, 0.0
        %2425 = vadd.xlane.f32.xlu0 %v2424
        %v2426 = vpop.xlane.xlu0 %2425
        %v2427 = vsel %vm1001, %v2285, 0.0
        %2428 = vadd.xlane.f32.xlu0 %v2427
        %v2429 = vpop.xlane.xlu0 %2428
        %v2430 = vsel %vm1001, %v2286, 0.0
        %2431 = vadd.xlane.f32.xlu0 %v2430
        %v2432 = vpop.xlane.xlu0 %2431
        %v2433 = vsel %vm1001, %v2287, 0.0
        %2434 = vadd.xlane.f32.xlu0 %v2433
        %v2435 = vpop.xlane.xlu0 %2434
        %v2436 = vsel %vm1001, %v2288, 0.0
        %2437 = vadd.xlane.f32.xlu0 %v2436
        %v2438 = vpop.xlane.xlu0 %2437
        %v2439 = vsel %vm1001, %v2289, 0.0
        %2440 = vadd.xlane.f32.xlu0 %v2439
        %v2441 = vpop.xlane.xlu0 %2440
        %v2442 = vsel %vm1001, %v2290, 0.0
        %2443 = vadd.xlane.f32.xlu0 %v2442
        %v2444 = vpop.xlane.xlu0 %2443
        %v2445 = vsel %vm1001, %v2291, 0.0
        %2446 = vadd.xlane.f32.xlu0 %v2445
        %v2447 = vpop.xlane.xlu0 %2446
        %v2448 = vsel %vm1001, %v2292, 0.0
        %2449 = vadd.xlane.f32.xlu0 %v2448
        %v2450 = vpop.xlane.xlu0 %2449
        %v2451 = vsel %vm1001, %v2293, 0.0
        %2452 = vadd.xlane.f32.xlu0 %v2451
        %v2453 = vpop.xlane.xlu0 %2452
        %v2454 = vsel %vm1001, %v2294, 0.0
        %2455 = vadd.xlane.f32.xlu0 %v2454
        %v2456 = vpop.xlane.xlu0 %2455
        %v2457 = vsel %vm1001, %v2295, 0.0
        %2458 = vadd.xlane.f32.xlu0 %v2457
        %v2459 = vpop.xlane.xlu0 %2458
        %v2460 = vsel %vm1001, %v2296, 0.0
        %2461 = vadd.xlane.f32.xlu0 %v2460
        %v2462 = vpop.xlane.xlu0 %2461
        %v2463 = vsel %vm1001, %v2297, 0.0
        %2464 = vadd.xlane.f32.xlu0 %v2463
        %v2465 = vpop.xlane.xlu0 %2464
        %v2466 = vsel %vm1001, %v2298, 0.0
        %2467 = vadd.xlane.f32.xlu0 %v2466
        %v2468 = vpop.xlane.xlu0 %2467
        %v2469 = vsel %vm1001, %v2299, 0.0
        %2470 = vadd.xlane.f32.xlu0 %v2469
        %v2471 = vpop.xlane.xlu0 %2470
        %v2472 = vsel %vm1001, %v2300, 0.0
        %2473 = vadd.xlane.f32.xlu0 %v2472
        %v2474 = vpop.xlane.xlu0 %2473
        %v2475 = vsel %vm1001, %v2301, 0.0
        %2476 = vadd.xlane.f32.xlu0 %v2475
        %v2477 = vpop.xlane.xlu0 %2476
        %v2478 = vsel %vm1001, %v2302, 0.0
        %2479 = vadd.xlane.f32.xlu0 %v2478
        %v2480 = vpop.xlane.xlu0 %2479
        %v2481 = vsel %vm1001, %v2303, 0.0
        %2482 = vadd.xlane.f32.xlu0 %v2481
        %v2483 = vpop.xlane.xlu0 %2482
        %v2484 = vsel %vm1001, %v2304, 0.0
        %2485 = vadd.xlane.f32.xlu0 %v2484
        %v2486 = vpop.xlane.xlu0 %2485
        %v2487 = vsel %vm1001, %v2305, 0.0
        %2488 = vadd.xlane.f32.xlu0 %v2487
        %v2489 = vpop.xlane.xlu0 %2488
        %v2490 = vsel %vm1001, %v2306, 0.0
        %2491 = vadd.xlane.f32.xlu0 %v2490
        %v2492 = vpop.xlane.xlu0 %2491
        %v2493 = vsel %vm1001, %v2307, 0.0
        %2494 = vadd.xlane.f32.xlu0 %v2493
        %v2495 = vpop.xlane.xlu0 %2494
        %v2496 = vsel %vm1001, %v2308, 0.0
        %2497 = vadd.xlane.f32.xlu0 %v2496
        %v2498 = vpop.xlane.xlu0 %2497
        %v2499 = vsel %vm1001, %v2309, 0.0
        %2500 = vadd.xlane.f32.xlu0 %v2499
        %v2501 = vpop.xlane.xlu0 %2500
        %v2502 = vand.u32 2147483647, %v1159
        %v2503 = vsel %vm1001, %v2502, -inf
        %2504 = vmax.xlane.f32.xlu0 %v2503
        %v2505 = vpop.xlane.xlu0 %2504
        %v2506 = vand.u32 2147483647, %v1111
        %v2507 = vand.u32 2147483647, %v1113
        %v2508 = vmul.f32 %v2506, %v2505
        %v2509 = vmul.f32 %v2507, %v2505
        %v2510 = vpack.c.bf16 %v2508, %v2508
        %v2511 = vpack.c.bf16 %v2509, %v2509
        %v2513 = vsel %vm714, %v2510, 0
        %v2516 = vsel %vm714, %v2511, 0
        %2518 = vmatprep.subr.bf16.mxu0 %v2516
        %2519 = vmatpush1.bf16.msra.mxu0 %v2513
        %2520 = vmatprep.subr.bf16.mxu0 0
        %2521 = vmatpush1.bf16.msra.mxu0 0
        %2522 = vmatprep.subr.bf16.mxu0 0
        %2523 = vmatpush1.bf16.msra.mxu0 0
        %2524 = vmatprep.subr.bf16.mxu0 0
        %2525 = vmatpush1.bf16.msra.mxu0 0
        %2526 = vmatprep.subr.bf16.mxu0 0
        %2527 = vmatpush1.bf16.msra.mxu0 0
        %2528 = vmatprep.subr.bf16.mxu0 0
        %2529 = vmatpush1.bf16.msra.mxu0 0
        %2530 = vmatprep.subr.bf16.mxu0 0
        %2531 = vmatpush1.bf16.msra.mxu0 0
        %2532 = vmatprep.subr.bf16.mxu0 0
        %2533 = vmatpush1.bf16.msra.mxu0 0
        %2534 = vmatprep.subr.bf16.mxu0 0
        %2535 = vmatpush1.bf16.msra.mxu0 0
        %2536 = vmatprep.subr.bf16.mxu0 0
        %2537 = vmatpush1.bf16.msra.mxu0 0
        %2538 = vmatprep.subr.bf16.mxu0 0
        %2539 = vmatpush1.bf16.msra.mxu0 0
        %2540 = vmatprep.subr.bf16.mxu0 0
        %2541 = vmatpush1.bf16.msra.mxu0 0
        %2542 = vmatprep.subr.bf16.mxu0 0
        %2543 = vmatpush1.bf16.msra.mxu0 0
        %2544 = vmatprep.subr.bf16.mxu0 0
        %2545 = vmatpush1.bf16.msra.mxu0 0
        %2546 = vmatprep.subr.bf16.mxu0 0
        %2547 = vmatpush1.bf16.msra.mxu0 0
        %2548 = vmatprep.subr.bf16.mxu0 0
        %2549 = vmatpush1.bf16.msra.mxu0 0
        %2550 = vmatprep.mubr.bf16.mxu0 0
        %2551 = vmatmul.mubr.bf16.gmra.mrb[0].mxu0 %v1435
        %v2552 = vpop.f32.mrb[0].mxu0
        %v2553 = vadd.f32 0.0, %v2552
        %v2554 = vpop.f32.mrb[0].mxu0
        %v2555 = vadd.f32 0.0, %v2554
        %v2556 = vpop.f32.mrb[0].mxu0
        %v2557 = vadd.f32 0.0, %v2556
        %v2558 = vpop.f32.mrb[0].mxu0
        %v2559 = vadd.f32 0.0, %v2558
        %2560 = vmatprep.mubr.bf16.mxu0 0
        %2561 = vmatmul.mubr.bf16.gmra.mrb[0].mxu0 %v1438
        %v2562 = vpop.f32.mrb[0].mxu0
        %v2563 = vadd.f32 0.0, %v2562
        %v2564 = vpop.f32.mrb[0].mxu0
        %v2565 = vadd.f32 0.0, %v2564
        %v2566 = vpop.f32.mrb[0].mxu0
        %v2567 = vadd.f32 0.0, %v2566
        %v2568 = vpop.f32.mrb[0].mxu0
        %v2569 = vadd.f32 0.0, %v2568
        %2570 = vmatprep.mubr.bf16.mxu0 0
        %2571 = vmatmul.mubr.bf16.gmra.mrb[0].mxu0 %v1441
        %v2572 = vpop.f32.mrb[0].mxu0
        %v2573 = vadd.f32 0.0, %v2572
        %v2574 = vpop.f32.mrb[0].mxu0
        %v2575 = vadd.f32 0.0, %v2574
        %v2576 = vpop.f32.mrb[0].mxu0
        %v2577 = vadd.f32 0.0, %v2576
        %v2578 = vpop.f32.mrb[0].mxu0
        %v2579 = vadd.f32 0.0, %v2578
        %2580 = vmatprep.mubr.bf16.mxu0 0
        %2581 = vmatmul.mubr.bf16.gmra.mrb[0].mxu0 %v1444
        %v2582 = vpop.f32.mrb[0].mxu0
        %v2583 = vadd.f32 0.0, %v2582
        %v2584 = vpop.f32.mrb[0].mxu0
        %v2585 = vadd.f32 0.0, %v2584
        %v2586 = vpop.f32.mrb[0].mxu0
        %v2587 = vadd.f32 0.0, %v2586
        %v2588 = vpop.f32.mrb[0].mxu0
        %v2589 = vadd.f32 0.0, %v2588
        %2590 = vmatprep.mubr.bf16.mxu0 0
        %2591 = vmatmul.mubr.bf16.gmra.mrb[0].mxu0 %v1447
        %v2592 = vpop.f32.mrb[0].mxu0
        %v2593 = vadd.f32 0.0, %v2592
        %v2594 = vpop.f32.mrb[0].mxu0
        %v2595 = vadd.f32 0.0, %v2594
        %v2596 = vpop.f32.mrb[0].mxu0
        %v2597 = vadd.f32 0.0, %v2596
        %v2598 = vpop.f32.mrb[0].mxu0
        %v2599 = vadd.f32 0.0, %v2598
        %2600 = vmatprep.mubr.bf16.mxu0 0
        %2601 = vmatmul.mubr.bf16.gmra.mrb[0].mxu0 %v1450
        %v2602 = vpop.f32.mrb[0].mxu0
        %v2603 = vadd.f32 0.0, %v2602
        %v2604 = vpop.f32.mrb[0].mxu0
        %v2605 = vadd.f32 0.0, %v2604
        %v2606 = vpop.f32.mrb[0].mxu0
        %v2607 = vadd.f32 0.0, %v2606
        %v2608 = vpop.f32.mrb[0].mxu0
        %v2609 = vadd.f32 0.0, %v2608
        %2610 = vmatprep.mubr.bf16.mxu0 0
        %2611 = vmatmul.mubr.bf16.gmra.mrb[0].mxu0 %v1453
        %v2612 = vpop.f32.mrb[0].mxu0
        %v2613 = vadd.f32 0.0, %v2612
        %v2614 = vpop.f32.mrb[0].mxu0
        %v2615 = vadd.f32 0.0, %v2614
        %v2616 = vpop.f32.mrb[0].mxu0
        %v2617 = vadd.f32 0.0, %v2616
        %v2618 = vpop.f32.mrb[0].mxu0
        %v2619 = vadd.f32 0.0, %v2618
        %2620 = vmatprep.mubr.bf16.mxu0 0
        %2621 = vmatmul.mubr.bf16.gmra.mrb[0].mxu0 %v1456
        %v2622 = vpop.f32.mrb[0].mxu0
        %v2623 = vadd.f32 0.0, %v2622
        %v2624 = vpop.f32.mrb[0].mxu0
        %v2625 = vadd.f32 0.0, %v2624
        %v2626 = vpop.f32.mrb[0].mxu0
        %v2627 = vadd.f32 0.0, %v2626
        %v2628 = vpop.f32.mrb[0].mxu0
        %v2629 = vadd.f32 0.0, %v2628
        %2630 = vmatprep.mubr.bf16.mxu0 0
        %2631 = vmatmul.mubr.bf16.gmra.mrb[0].mxu0 %v1459
        %v2632 = vpop.f32.mrb[0].mxu0
        %v2633 = vadd.f32 0.0, %v2632
        %v2634 = vpop.f32.mrb[0].mxu0
        %v2635 = vadd.f32 0.0, %v2634
        %v2636 = vpop.f32.mrb[0].mxu0
        %v2637 = vadd.f32 0.0, %v2636
        %v2638 = vpop.f32.mrb[0].mxu0
        %v2639 = vadd.f32 0.0, %v2638
        %2640 = vmatprep.mubr.bf16.mxu0 0
        %2641 = vmatmul.mubr.bf16.gmra.mrb[0].mxu0 %v1462
        %v2642 = vpop.f32.mrb[0].mxu0
        %v2643 = vadd.f32 0.0, %v2642
        %v2644 = vpop.f32.mrb[0].mxu0
        %v2645 = vadd.f32 0.0, %v2644
        %v2646 = vpop.f32.mrb[0].mxu0
        %v2647 = vadd.f32 0.0, %v2646
        %v2648 = vpop.f32.mrb[0].mxu0
        %v2649 = vadd.f32 0.0, %v2648
        %2650 = vmatprep.mubr.bf16.mxu0 0
        %2651 = vmatmul.mubr.bf16.gmra.mrb[0].mxu0 %v1465
        %v2652 = vpop.f32.mrb[0].mxu0
        %v2653 = vadd.f32 0.0, %v2652
        %v2654 = vpop.f32.mrb[0].mxu0
        %v2655 = vadd.f32 0.0, %v2654
        %v2656 = vpop.f32.mrb[0].mxu0
        %v2657 = vadd.f32 0.0, %v2656
        %v2658 = vpop.f32.mrb[0].mxu0
        %v2659 = vadd.f32 0.0, %v2658
        %2660 = vmatprep.mubr.bf16.mxu0 0
        %2661 = vmatmul.mubr.bf16.gmra.mrb[0].mxu0 %v1468
        %v2662 = vpop.f32.mrb[0].mxu0
        %v2663 = vadd.f32 0.0, %v2662
        %v2664 = vpop.f32.mrb[0].mxu0
        %v2665 = vadd.f32 0.0, %v2664
        %v2666 = vpop.f32.mrb[0].mxu0
        %v2667 = vadd.f32 0.0, %v2666
        %v2668 = vpop.f32.mrb[0].mxu0
        %v2669 = vadd.f32 0.0, %v2668
        %2670 = vmatprep.mubr.bf16.mxu0 0
        %2671 = vmatmul.mubr.bf16.gmra.mrb[0].mxu0 %v1471
        %v2672 = vpop.f32.mrb[0].mxu0
        %v2673 = vadd.f32 0.0, %v2672
        %v2674 = vpop.f32.mrb[0].mxu0
        %v2675 = vadd.f32 0.0, %v2674
        %v2676 = vpop.f32.mrb[0].mxu0
        %v2677 = vadd.f32 0.0, %v2676
        %v2678 = vpop.f32.mrb[0].mxu0
        %v2679 = vadd.f32 0.0, %v2678
        %2680 = vmatprep.mubr.bf16.mxu0 0
        %2681 = vmatmul.mubr.bf16.gmra.mrb[0].mxu0 %v1474
        %v2682 = vpop.f32.mrb[0].mxu0
        %v2683 = vadd.f32 0.0, %v2682
        %v2684 = vpop.f32.mrb[0].mxu0
        %v2685 = vadd.f32 0.0, %v2684
        %v2686 = vpop.f32.mrb[0].mxu0
        %v2687 = vadd.f32 0.0, %v2686
        %v2688 = vpop.f32.mrb[0].mxu0
        %v2689 = vadd.f32 0.0, %v2688
        %2690 = vmatprep.mubr.bf16.mxu0 0
        %2691 = vmatmul.mubr.bf16.gmra.mrb[0].mxu0 %v1477
        %v2692 = vpop.f32.mrb[0].mxu0
        %v2693 = vadd.f32 0.0, %v2692
        %v2694 = vpop.f32.mrb[0].mxu0
        %v2695 = vadd.f32 0.0, %v2694
        %v2696 = vpop.f32.mrb[0].mxu0
        %v2697 = vadd.f32 0.0, %v2696
        %v2698 = vpop.f32.mrb[0].mxu0
        %v2699 = vadd.f32 0.0, %v2698
        %2700 = vmatprep.mubr.bf16.mxu0 0
        %2701 = vmatmul.mubr.bf16.gmra.mrb[0].mxu0 %v1480
        %v2702 = vpop.f32.mrb[0].mxu0
        %v2703 = vadd.f32 0.0, %v2702
        %v2704 = vpop.f32.mrb[0].mxu0
        %v2705 = vadd.f32 0.0, %v2704
        %v2706 = vpop.f32.mrb[0].mxu0
        %v2707 = vadd.f32 0.0, %v2706
        %v2708 = vpop.f32.mrb[0].mxu0
        %v2709 = vadd.f32 0.0, %v2708
        %2710 = vmatprep.mubr.bf16.mxu0 0
        %2711 = vmatmul.mubr.bf16.gmra.mrb[0].mxu0 %v1483
        %v2712 = vpop.f32.mrb[0].mxu0
        %v2713 = vadd.f32 0.0, %v2712
        %v2714 = vpop.f32.mrb[0].mxu0
        %v2715 = vadd.f32 0.0, %v2714
        %v2716 = vpop.f32.mrb[0].mxu0
        %v2717 = vadd.f32 0.0, %v2716
        %v2718 = vpop.f32.mrb[0].mxu0
        %v2719 = vadd.f32 0.0, %v2718
        %2720 = vmatprep.mubr.bf16.mxu0 0
        %2721 = vmatmul.mubr.bf16.gmra.mrb[0].mxu0 %v1486
        %v2722 = vpop.f32.mrb[0].mxu0
        %v2723 = vadd.f32 0.0, %v2722
        %v2724 = vpop.f32.mrb[0].mxu0
        %v2725 = vadd.f32 0.0, %v2724
        %v2726 = vpop.f32.mrb[0].mxu0
        %v2727 = vadd.f32 0.0, %v2726
        %v2728 = vpop.f32.mrb[0].mxu0
        %v2729 = vadd.f32 0.0, %v2728
        %2730 = vmatprep.mubr.bf16.mxu0 0
        %2731 = vmatmul.mubr.bf16.gmra.mrb[0].mxu0 %v1489
        %v2732 = vpop.f32.mrb[0].mxu0
        %v2733 = vadd.f32 0.0, %v2732
        %v2734 = vpop.f32.mrb[0].mxu0
        %v2735 = vadd.f32 0.0, %v2734
        %v2736 = vpop.f32.mrb[0].mxu0
        %v2737 = vadd.f32 0.0, %v2736
        %v2738 = vpop.f32.mrb[0].mxu0
        %v2739 = vadd.f32 0.0, %v2738
        %2740 = vmatprep.mubr.bf16.mxu0 0
        %2741 = vmatmul.mubr.bf16.gmra.mrb[0].mxu0 %v1492
        %v2742 = vpop.f32.mrb[0].mxu0
        %v2743 = vadd.f32 0.0, %v2742
        %v2744 = vpop.f32.mrb[0].mxu0
        %v2745 = vadd.f32 0.0, %v2744
        %v2746 = vpop.f32.mrb[0].mxu0
        %v2747 = vadd.f32 0.0, %v2746
        %v2748 = vpop.f32.mrb[0].mxu0
        %v2749 = vadd.f32 0.0, %v2748
        %2750 = vmatprep.mubr.bf16.mxu0 0
        %2751 = vmatmul.mubr.bf16.gmra.mrb[0].mxu0 %v1495
        %v2752 = vpop.f32.mrb[0].mxu0
        %v2753 = vadd.f32 0.0, %v2752
        %v2754 = vpop.f32.mrb[0].mxu0
        %v2755 = vadd.f32 0.0, %v2754
        %v2756 = vpop.f32.mrb[0].mxu0
        %v2757 = vadd.f32 0.0, %v2756
        %v2758 = vpop.f32.mrb[0].mxu0
        %v2759 = vadd.f32 0.0, %v2758
        %2760 = vmatprep.mubr.bf16.mxu0 0
        %2761 = vmatmul.mubr.bf16.gmra.mrb[0].mxu0 %v1498
        %v2762 = vpop.f32.mrb[0].mxu0
        %v2763 = vadd.f32 0.0, %v2762
        %v2764 = vpop.f32.mrb[0].mxu0
        %v2765 = vadd.f32 0.0, %v2764
        %v2766 = vpop.f32.mrb[0].mxu0
        %v2767 = vadd.f32 0.0, %v2766
        %v2768 = vpop.f32.mrb[0].mxu0
        %v2769 = vadd.f32 0.0, %v2768
        %2770 = vmatprep.mubr.bf16.mxu0 0
        %2771 = vmatmul.mubr.bf16.gmra.mrb[0].mxu0 %v1501
        %v2772 = vpop.f32.mrb[0].mxu0
        %v2773 = vadd.f32 0.0, %v2772
        %v2774 = vpop.f32.mrb[0].mxu0
        %v2775 = vadd.f32 0.0, %v2774
        %v2776 = vpop.f32.mrb[0].mxu0
        %v2777 = vadd.f32 0.0, %v2776
        %v2778 = vpop.f32.mrb[0].mxu0
        %v2779 = vadd.f32 0.0, %v2778
        %2780 = vmatprep.mubr.bf16.mxu0 0
        %2781 = vmatmul.mubr.bf16.gmra.mrb[0].mxu0 %v1504
        %v2782 = vpop.f32.mrb[0].mxu0
        %v2783 = vadd.f32 0.0, %v2782
        %v2784 = vpop.f32.mrb[0].mxu0
        %v2785 = vadd.f32 0.0, %v2784
        %v2786 = vpop.f32.mrb[0].mxu0
        %v2787 = vadd.f32 0.0, %v2786
        %v2788 = vpop.f32.mrb[0].mxu0
        %v2789 = vadd.f32 0.0, %v2788
        %2790 = vmatprep.mubr.bf16.mxu0 0
        %2791 = vmatmul.mubr.bf16.gmra.mrb[0].mxu0 %v1507
        %v2792 = vpop.f32.mrb[0].mxu0
        %v2793 = vadd.f32 0.0, %v2792
        %v2794 = vpop.f32.mrb[0].mxu0
        %v2795 = vadd.f32 0.0, %v2794
        %v2796 = vpop.f32.mrb[0].mxu0
        %v2797 = vadd.f32 0.0, %v2796
        %v2798 = vpop.f32.mrb[0].mxu0
        %v2799 = vadd.f32 0.0, %v2798
        %2800 = vmatprep.mubr.bf16.mxu0 0
        %2801 = vmatmul.mubr.bf16.gmra.mrb[0].mxu0 %v1510
        %v2802 = vpop.f32.mrb[0].mxu0
        %v2803 = vadd.f32 0.0, %v2802
        %v2804 = vpop.f32.mrb[0].mxu0
        %v2805 = vadd.f32 0.0, %v2804
        %v2806 = vpop.f32.mrb[0].mxu0
        %v2807 = vadd.f32 0.0, %v2806
        %v2808 = vpop.f32.mrb[0].mxu0
        %v2809 = vadd.f32 0.0, %v2808
        %2810 = vmatprep.mubr.bf16.mxu0 0
        %2811 = vmatmul.mubr.bf16.gmra.mrb[0].mxu0 %v1513
        %v2812 = vpop.f32.mrb[0].mxu0
        %v2813 = vadd.f32 0.0, %v2812
        %v2814 = vpop.f32.mrb[0].mxu0
        %v2815 = vadd.f32 0.0, %v2814
        %v2816 = vpop.f32.mrb[0].mxu0
        %v2817 = vadd.f32 0.0, %v2816
        %v2818 = vpop.f32.mrb[0].mxu0
        %v2819 = vadd.f32 0.0, %v2818
        %2820 = vmatprep.mubr.bf16.mxu0 0
        %2821 = vmatmul.mubr.bf16.gmra.mrb[0].mxu0 %v1516
        %v2822 = vpop.f32.mrb[0].mxu0
        %v2823 = vadd.f32 0.0, %v2822
        %v2824 = vpop.f32.mrb[0].mxu0
        %v2825 = vadd.f32 0.0, %v2824
        %v2826 = vpop.f32.mrb[0].mxu0
        %v2827 = vadd.f32 0.0, %v2826
        %v2828 = vpop.f32.mrb[0].mxu0
        %v2829 = vadd.f32 0.0, %v2828
        %2830 = vmatprep.mubr.bf16.mxu0 0
        %2831 = vmatmul.mubr.bf16.gmra.mrb[0].mxu0 %v1519
        %v2832 = vpop.f32.mrb[0].mxu0
        %v2833 = vadd.f32 0.0, %v2832
        %v2834 = vpop.f32.mrb[0].mxu0
        %v2835 = vadd.f32 0.0, %v2834
        %v2836 = vpop.f32.mrb[0].mxu0
        %v2837 = vadd.f32 0.0, %v2836
        %v2838 = vpop.f32.mrb[0].mxu0
        %v2839 = vadd.f32 0.0, %v2838
        %2840 = vmatprep.mubr.bf16.mxu0 0
        %2841 = vmatmul.mubr.bf16.gmra.mrb[0].mxu0 %v1522
        %v2842 = vpop.f32.mrb[0].mxu0
        %v2843 = vadd.f32 0.0, %v2842
        %v2844 = vpop.f32.mrb[0].mxu0
        %v2845 = vadd.f32 0.0, %v2844
        %v2846 = vpop.f32.mrb[0].mxu0
        %v2847 = vadd.f32 0.0, %v2846
        %v2848 = vpop.f32.mrb[0].mxu0
        %v2849 = vadd.f32 0.0, %v2848
        %2850 = vmatprep.mubr.bf16.mxu0 0
        %2851 = vmatmul.mubr.bf16.gmra.mrb[0].mxu0 %v1525
        %v2852 = vpop.f32.mrb[0].mxu0
        %v2853 = vadd.f32 0.0, %v2852
        %v2854 = vpop.f32.mrb[0].mxu0
        %v2855 = vadd.f32 0.0, %v2854
        %v2856 = vpop.f32.mrb[0].mxu0
        %v2857 = vadd.f32 0.0, %v2856
        %v2858 = vpop.f32.mrb[0].mxu0
        %v2859 = vadd.f32 0.0, %v2858
        %2860 = vmatprep.mubr.bf16.mxu0 0
        %2861 = vmatmul.mubr.bf16.gmra.mrb[0].mxu0 %v1528
        %v2862 = vpop.f32.mrb[0].mxu0
        %v2863 = vadd.f32 0.0, %v2862
        %v2864 = vpop.f32.mrb[0].mxu0
        %v2865 = vadd.f32 0.0, %v2864
        %v2866 = vpop.f32.mrb[0].mxu0
        %v2867 = vadd.f32 0.0, %v2866
        %v2868 = vpop.f32.mrb[0].mxu0
        %v2869 = vadd.f32 0.0, %v2868
        %2870 = vdwg.mxu0
        %v2871 = vmul.f32 %v2312, %v1571
        %v2872 = vmul.f32 %v2312, %v1573
        %v2873 = vmul.f32 %v2315, %v1575
        %v2874 = vmul.f32 %v2315, %v1577
        %v2875 = vmul.f32 %v2318, %v1581
        %v2876 = vmul.f32 %v2318, %v1583
        %v2877 = vmul.f32 %v2321, %v1585
        %v2878 = vmul.f32 %v2321, %v1587
        %v2879 = vmul.f32 %v2324, %v1591
        %v2880 = vmul.f32 %v2324, %v1593
        %v2881 = vmul.f32 %v2327, %v1595
        %v2882 = vmul.f32 %v2327, %v1597
        %v2883 = vmul.f32 %v2330, %v1601
        %v2884 = vmul.f32 %v2330, %v1603
        %v2885 = vmul.f32 %v2333, %v1605
        %v2886 = vmul.f32 %v2333, %v1607
        %v2887 = vmul.f32 %v2336, %v1611
        %v2888 = vmul.f32 %v2336, %v1613
        %v2889 = vmul.f32 %v2339, %v1615
        %v2890 = vmul.f32 %v2339, %v1617
        %v2891 = vmul.f32 %v2342, %v1621
        %v2892 = vmul.f32 %v2342, %v1623
        %v2893 = vmul.f32 %v2345, %v1625
        %v2894 = vmul.f32 %v2345, %v1627
        %v2895 = vmul.f32 %v2348, %v1631
        %v2896 = vmul.f32 %v2348, %v1633
        %v2897 = vmul.f32 %v2351, %v1635
        %v2898 = vmul.f32 %v2351, %v1637
        %v2899 = vmul.f32 %v2354, %v1641
        %v2900 = vmul.f32 %v2354, %v1643
        %v2901 = vmul.f32 %v2357, %v1645
        %v2902 = vmul.f32 %v2357, %v1647
        %v2903 = vmul.f32 %v2360, %v1651
        %v2904 = vmul.f32 %v2360, %v1653
        %v2905 = vmul.f32 %v2363, %v1655
        %v2906 = vmul.f32 %v2363, %v1657
        %v2907 = vmul.f32 %v2366, %v1661
        %v2908 = vmul.f32 %v2366, %v1663
        %v2909 = vmul.f32 %v2369, %v1665
        %v2910 = vmul.f32 %v2369, %v1667
        %v2911 = vmul.f32 %v2372, %v1671
        %v2912 = vmul.f32 %v2372, %v1673
        %v2913 = vmul.f32 %v2375, %v1675
        %v2914 = vmul.f32 %v2375, %v1677
        %v2915 = vmul.f32 %v2378, %v1681
        %v2916 = vmul.f32 %v2378, %v1683
        %v2917 = vmul.f32 %v2381, %v1685
        %v2918 = vmul.f32 %v2381, %v1687
        %v2919 = vmul.f32 %v2384, %v1691
        %v2920 = vmul.f32 %v2384, %v1693
        %v2921 = vmul.f32 %v2387, %v1695
        %v2922 = vmul.f32 %v2387, %v1697
        %v2923 = vmul.f32 %v2390, %v1701
        %v2924 = vmul.f32 %v2390, %v1703
        %v2925 = vmul.f32 %v2393, %v1705
        %v2926 = vmul.f32 %v2393, %v1707
        %v2927 = vmul.f32 %v2396, %v1711
        %v2928 = vmul.f32 %v2396, %v1713
        %v2929 = vmul.f32 %v2399, %v1715
        %v2930 = vmul.f32 %v2399, %v1717
        %v2931 = vmul.f32 %v2402, %v1721
        %v2932 = vmul.f32 %v2402, %v1723
        %v2933 = vmul.f32 %v2405, %v1725
        %v2934 = vmul.f32 %v2405, %v1727
        %v2935 = vmul.f32 %v2408, %v1731
        %v2936 = vmul.f32 %v2408, %v1733
        %v2937 = vmul.f32 %v2411, %v1735
        %v2938 = vmul.f32 %v2411, %v1737
        %v2939 = vmul.f32 %v2414, %v1741
        %v2940 = vmul.f32 %v2414, %v1743
        %v2941 = vmul.f32 %v2417, %v1745
        %v2942 = vmul.f32 %v2417, %v1747
        %v2943 = vmul.f32 %v2420, %v1751
        %v2944 = vmul.f32 %v2420, %v1753
        %v2945 = vmul.f32 %v2423, %v1755
        %v2946 = vmul.f32 %v2423, %v1757
        %v2947 = vmul.f32 %v2426, %v1761
        %v2948 = vmul.f32 %v2426, %v1763
        %v2949 = vmul.f32 %v2429, %v1765
        %v2950 = vmul.f32 %v2429, %v1767
        %v2951 = vmul.f32 %v2432, %v1771
        %v2952 = vmul.f32 %v2432, %v1773
        %v2953 = vmul.f32 %v2435, %v1775
        %v2954 = vmul.f32 %v2435, %v1777
        %v2955 = vmul.f32 %v2438, %v1781
        %v2956 = vmul.f32 %v2438, %v1783
        %v2957 = vmul.f32 %v2441, %v1785
        %v2958 = vmul.f32 %v2441, %v1787
        %v2959 = vmul.f32 %v2444, %v1791
        %v2960 = vmul.f32 %v2444, %v1793
        %v2961 = vmul.f32 %v2447, %v1795
        %v2962 = vmul.f32 %v2447, %v1797
        %v2963 = vmul.f32 %v2450, %v1801
        %v2964 = vmul.f32 %v2450, %v1803
        %v2965 = vmul.f32 %v2453, %v1805
        %v2966 = vmul.f32 %v2453, %v1807
        %v2967 = vmul.f32 %v2456, %v1811
        %v2968 = vmul.f32 %v2456, %v1813
        %v2969 = vmul.f32 %v2459, %v1815
        %v2970 = vmul.f32 %v2459, %v1817
        %v2971 = vmul.f32 %v2462, %v1821
        %v2972 = vmul.f32 %v2462, %v1823
        %v2973 = vmul.f32 %v2465, %v1825
        %v2974 = vmul.f32 %v2465, %v1827
        %v2975 = vmul.f32 %v2468, %v1831
        %v2976 = vmul.f32 %v2468, %v1833
        %v2977 = vmul.f32 %v2471, %v1835
        %v2978 = vmul.f32 %v2471, %v1837
        %v2979 = vmul.f32 %v2474, %v1841
        %v2980 = vmul.f32 %v2474, %v1843
        %v2981 = vmul.f32 %v2477, %v1845
        %v2982 = vmul.f32 %v2477, %v1847
        %v2983 = vmul.f32 %v2480, %v1851
        %v2984 = vmul.f32 %v2480, %v1853
        %v2985 = vmul.f32 %v2483, %v1855
        %v2986 = vmul.f32 %v2483, %v1857
        %v2987 = vmul.f32 %v2486, %v1861
        %v2988 = vmul.f32 %v2486, %v1863
        %v2989 = vmul.f32 %v2489, %v1865
        %v2990 = vmul.f32 %v2489, %v1867
        %v2991 = vmul.f32 %v2492, %v1871
        %v2992 = vmul.f32 %v2492, %v1873
        %v2993 = vmul.f32 %v2495, %v1875
        %v2994 = vmul.f32 %v2495, %v1877
        %v2995 = vmul.f32 %v2498, %v1881
        %v2996 = vmul.f32 %v2498, %v1883
        %v2997 = vmul.f32 %v2501, %v1885
        %v2998 = vmul.f32 %v2501, %v1887
        %v2999 = vsub.f32 %v2871, %v2553
        %v3000 = vsub.f32 %v2872, %v2555
        %v3001 = vsub.f32 %v2873, %v2557
        %v3002 = vsub.f32 %v2874, %v2559
        %v3003 = vsub.f32 %v2875, %v2563
        %v3004 = vsub.f32 %v2876, %v2565
        %v3005 = vsub.f32 %v2877, %v2567
        %v3006 = vsub.f32 %v2878, %v2569
        %v3007 = vsub.f32 %v2879, %v2573
        %v3008 = vsub.f32 %v2880, %v2575
        %v3009 = vsub.f32 %v2881, %v2577
        %v3010 = vsub.f32 %v2882, %v2579
        %v3011 = vsub.f32 %v2883, %v2583
        %v3012 = vsub.f32 %v2884, %v2585
        %v3013 = vsub.f32 %v2885, %v2587
        %v3014 = vsub.f32 %v2886, %v2589
        %v3015 = vsub.f32 %v2887, %v2593
        %v3016 = vsub.f32 %v2888, %v2595
        %v3017 = vsub.f32 %v2889, %v2597
        %v3018 = vsub.f32 %v2890, %v2599
        %v3019 = vsub.f32 %v2891, %v2603
        %v3020 = vsub.f32 %v2892, %v2605
        %v3021 = vsub.f32 %v2893, %v2607
        %v3022 = vsub.f32 %v2894, %v2609
        %v3023 = vsub.f32 %v2895, %v2613
        %v3024 = vsub.f32 %v2896, %v2615
        %v3025 = vsub.f32 %v2897, %v2617
        %v3026 = vsub.f32 %v2898, %v2619
        %v3027 = vsub.f32 %v2899, %v2623
        %v3028 = vsub.f32 %v2900, %v2625
        %v3029 = vsub.f32 %v2901, %v2627
        %v3030 = vsub.f32 %v2902, %v2629
        %v3031 = vsub.f32 %v2903, %v2633
        %v3032 = vsub.f32 %v2904, %v2635
        %v3033 = vsub.f32 %v2905, %v2637
        %v3034 = vsub.f32 %v2906, %v2639
        %v3035 = vsub.f32 %v2907, %v2643
        %v3036 = vsub.f32 %v2908, %v2645
        %v3037 = vsub.f32 %v2909, %v2647
        %v3038 = vsub.f32 %v2910, %v2649
        %v3039 = vsub.f32 %v2911, %v2653
        %v3040 = vsub.f32 %v2912, %v2655
        %v3041 = vsub.f32 %v2913, %v2657
        %v3042 = vsub.f32 %v2914, %v2659
        %v3043 = vsub.f32 %v2915, %v2663
        %v3044 = vsub.f32 %v2916, %v2665
        %v3045 = vsub.f32 %v2917, %v2667
        %v3046 = vsub.f32 %v2918, %v2669
        %v3047 = vsub.f32 %v2919, %v2673
        %v3048 = vsub.f32 %v2920, %v2675
        %v3049 = vsub.f32 %v2921, %v2677
        %v3050 = vsub.f32 %v2922, %v2679
        %v3051 = vsub.f32 %v2923, %v2683
        %v3052 = vsub.f32 %v2924, %v2685
        %v3053 = vsub.f32 %v2925, %v2687
        %v3054 = vsub.f32 %v2926, %v2689
        %v3055 = vsub.f32 %v2927, %v2693
        %v3056 = vsub.f32 %v2928, %v2695
        %v3057 = vsub.f32 %v2929, %v2697
        %v3058 = vsub.f32 %v2930, %v2699
        %v3059 = vsub.f32 %v2931, %v2703
        %v3060 = vsub.f32 %v2932, %v2705
        %v3061 = vsub.f32 %v2933, %v2707
        %v3062 = vsub.f32 %v2934, %v2709
        %v3063 = vsub.f32 %v2935, %v2713
        %v3064 = vsub.f32 %v2936, %v2715
        %v3065 = vsub.f32 %v2937, %v2717
        %v3066 = vsub.f32 %v2938, %v2719
        %v3067 = vsub.f32 %v2939, %v2723
        %v3068 = vsub.f32 %v2940, %v2725
        %v3069 = vsub.f32 %v2941, %v2727
        %v3070 = vsub.f32 %v2942, %v2729
        %v3071 = vsub.f32 %v2943, %v2733
        %v3072 = vsub.f32 %v2944, %v2735
        %v3073 = vsub.f32 %v2945, %v2737
        %v3074 = vsub.f32 %v2946, %v2739
        %v3075 = vsub.f32 %v2947, %v2743
        %v3076 = vsub.f32 %v2948, %v2745
        %v3077 = vsub.f32 %v2949, %v2747
        %v3078 = vsub.f32 %v2950, %v2749
        %v3079 = vsub.f32 %v2951, %v2753
        %v3080 = vsub.f32 %v2952, %v2755
        %v3081 = vsub.f32 %v2953, %v2757
        %v3082 = vsub.f32 %v2954, %v2759
        %v3083 = vsub.f32 %v2955, %v2763
        %v3084 = vsub.f32 %v2956, %v2765
        %v3085 = vsub.f32 %v2957, %v2767
        %v3086 = vsub.f32 %v2958, %v2769
        %v3087 = vsub.f32 %v2959, %v2773
        %v3088 = vsub.f32 %v2960, %v2775
        %v3089 = vsub.f32 %v2961, %v2777
        %v3090 = vsub.f32 %v2962, %v2779
        %v3091 = vsub.f32 %v2963, %v2783
        %v3092 = vsub.f32 %v2964, %v2785
        %v3093 = vsub.f32 %v2965, %v2787
        %v3094 = vsub.f32 %v2966, %v2789
        %v3095 = vsub.f32 %v2967, %v2793
        %v3096 = vsub.f32 %v2968, %v2795
        %v3097 = vsub.f32 %v2969, %v2797
        %v3098 = vsub.f32 %v2970, %v2799
        %v3099 = vsub.f32 %v2971, %v2803
        %v3100 = vsub.f32 %v2972, %v2805
        %v3101 = vsub.f32 %v2973, %v2807
        %v3102 = vsub.f32 %v2974, %v2809
        %v3103 = vsub.f32 %v2975, %v2813
        %v3104 = vsub.f32 %v2976, %v2815
        %v3105 = vsub.f32 %v2977, %v2817
        %v3106 = vsub.f32 %v2978, %v2819
        %v3107 = vsub.f32 %v2979, %v2823
        %v3108 = vsub.f32 %v2980, %v2825
        %v3109 = vsub.f32 %v2981, %v2827
        %v3110 = vsub.f32 %v2982, %v2829
        %v3111 = vsub.f32 %v2983, %v2833
        %v3112 = vsub.f32 %v2984, %v2835
        %v3113 = vsub.f32 %v2985, %v2837
        %v3114 = vsub.f32 %v2986, %v2839
        %v3115 = vsub.f32 %v2987, %v2843
        %v3116 = vsub.f32 %v2988, %v2845
        %v3117 = vsub.f32 %v2989, %v2847
        %v3118 = vsub.f32 %v2990, %v2849
        %v3119 = vsub.f32 %v2991, %v2853
        %v3120 = vsub.f32 %v2992, %v2855
        %v3121 = vsub.f32 %v2993, %v2857
        %v3122 = vsub.f32 %v2994, %v2859
        %v3123 = vsub.f32 %v2995, %v2863
        %v3124 = vsub.f32 %v2996, %v2865
        %v3125 = vsub.f32 %v2997, %v2867
        %v3126 = vsub.f32 %v2998, %v2869
        %v3127 = vmul.f32 %v2999, 1.442695
        %v3128 = vpow.pop %v3127
        %v3129 = vmul.f32 %v3000, 1.442695
        %v3130 = vpow.pop %v3129
        %v3131 = vmul.f32 %v3001, 1.442695
        %v3132 = vpow.pop %v3131
        %v3133 = vmul.f32 %v3002, 1.442695
        %v3134 = vpow.pop %v3133
        %v3135 = vmul.f32 %v3003, 1.442695
        %v3136 = vpow.pop %v3135
        %v3137 = vmul.f32 %v3004, 1.442695
        %v3138 = vpow.pop %v3137
        %v3139 = vmul.f32 %v3005, 1.442695
        %v3140 = vpow.pop %v3139
        %v3141 = vmul.f32 %v3006, 1.442695
        %v3142 = vpow.pop %v3141
        %v3143 = vmul.f32 %v3007, 1.442695
        %v3144 = vpow.pop %v3143
        %v3145 = vmul.f32 %v3008, 1.442695
        %v3146 = vpow.pop %v3145
        %v3147 = vmul.f32 %v3009, 1.442695
        %v3148 = vpow.pop %v3147
        %v3149 = vmul.f32 %v3010, 1.442695
        %v3150 = vpow.pop %v3149
        %v3151 = vmul.f32 %v3011, 1.442695
        %v3152 = vpow.pop %v3151
        %v3153 = vmul.f32 %v3012, 1.442695
        %v3154 = vpow.pop %v3153
        %v3155 = vmul.f32 %v3013, 1.442695
        %v3156 = vpow.pop %v3155
        %v3157 = vmul.f32 %v3014, 1.442695
        %v3158 = vpow.pop %v3157
        %v3159 = vmul.f32 %v3015, 1.442695
        %v3160 = vpow.pop %v3159
        %v3161 = vmul.f32 %v3016, 1.442695
        %v3162 = vpow.pop %v3161
        %v3163 = vmul.f32 %v3017, 1.442695
        %v3164 = vpow.pop %v3163
        %v3165 = vmul.f32 %v3018, 1.442695
        %v3166 = vpow.pop %v3165
        %v3167 = vmul.f32 %v3019, 1.442695
        %v3168 = vpow.pop %v3167
        %v3169 = vmul.f32 %v3020, 1.442695
        %v3170 = vpow.pop %v3169
        %v3171 = vmul.f32 %v3021, 1.442695
        %v3172 = vpow.pop %v3171
        %v3173 = vmul.f32 %v3022, 1.442695
        %v3174 = vpow.pop %v3173
        %v3175 = vmul.f32 %v3023, 1.442695
        %v3176 = vpow.pop %v3175
        %v3177 = vmul.f32 %v3024, 1.442695
        %v3178 = vpow.pop %v3177
        %v3179 = vmul.f32 %v3025, 1.442695
        %v3180 = vpow.pop %v3179
        %v3181 = vmul.f32 %v3026, 1.442695
        %v3182 = vpow.pop %v3181
        %v3183 = vmul.f32 %v3027, 1.442695
        %v3184 = vpow.pop %v3183
        %v3185 = vmul.f32 %v3028, 1.442695
        %v3186 = vpow.pop %v3185
        %v3187 = vmul.f32 %v3029, 1.442695
        %v3188 = vpow.pop %v3187
        %v3189 = vmul.f32 %v3030, 1.442695
        %v3190 = vpow.pop %v3189
        %v3191 = vmul.f32 %v3031, 1.442695
        %v3192 = vpow.pop %v3191
        %v3193 = vmul.f32 %v3032, 1.442695
        %v3194 = vpow.pop %v3193
        %v3195 = vmul.f32 %v3033, 1.442695
        %v3196 = vpow.pop %v3195
        %v3197 = vmul.f32 %v3034, 1.442695
        %v3198 = vpow.pop %v3197
        %v3199 = vmul.f32 %v3035, 1.442695
        %v3200 = vpow.pop %v3199
        %v3201 = vmul.f32 %v3036, 1.442695
        %v3202 = vpow.pop %v3201
        %v3203 = vmul.f32 %v3037, 1.442695
        %v3204 = vpow.pop %v3203
        %v3205 = vmul.f32 %v3038, 1.442695
        %v3206 = vpow.pop %v3205
        %v3207 = vmul.f32 %v3039, 1.442695
        %v3208 = vpow.pop %v3207
        %v3209 = vmul.f32 %v3040, 1.442695
        %v3210 = vpow.pop %v3209
        %v3211 = vmul.f32 %v3041, 1.442695
        %v3212 = vpow.pop %v3211
        %v3213 = vmul.f32 %v3042, 1.442695
        %v3214 = vpow.pop %v3213
        %v3215 = vmul.f32 %v3043, 1.442695
        %v3216 = vpow.pop %v3215
        %v3217 = vmul.f32 %v3044, 1.442695
        %v3218 = vpow.pop %v3217
        %v3219 = vmul.f32 %v3045, 1.442695
        %v3220 = vpow.pop %v3219
        %v3221 = vmul.f32 %v3046, 1.442695
        %v3222 = vpow.pop %v3221
        %v3223 = vmul.f32 %v3047, 1.442695
        %v3224 = vpow.pop %v3223
        %v3225 = vmul.f32 %v3048, 1.442695
        %v3226 = vpow.pop %v3225
        %v3227 = vmul.f32 %v3049, 1.442695
        %v3228 = vpow.pop %v3227
        %v3229 = vmul.f32 %v3050, 1.442695
        %v3230 = vpow.pop %v3229
        %v3231 = vmul.f32 %v3051, 1.442695
        %v3232 = vpow.pop %v3231
        %v3233 = vmul.f32 %v3052, 1.442695
        %v3234 = vpow.pop %v3233
        %v3235 = vmul.f32 %v3053, 1.442695
        %v3236 = vpow.pop %v3235
        %v3237 = vmul.f32 %v3054, 1.442695
        %v3238 = vpow.pop %v3237
        %v3239 = vmul.f32 %v3055, 1.442695
        %v3240 = vpow.pop %v3239
        %v3241 = vmul.f32 %v3056, 1.442695
        %v3242 = vpow.pop %v3241
        %v3243 = vmul.f32 %v3057, 1.442695
        %v3244 = vpow.pop %v3243
        %v3245 = vmul.f32 %v3058, 1.442695
        %v3246 = vpow.pop %v3245
        %v3247 = vmul.f32 %v3059, 1.442695
        %v3248 = vpow.pop %v3247
        %v3249 = vmul.f32 %v3060, 1.442695
        %v3250 = vpow.pop %v3249
        %v3251 = vmul.f32 %v3061, 1.442695
        %v3252 = vpow.pop %v3251
        %v3253 = vmul.f32 %v3062, 1.442695
        %v3254 = vpow.pop %v3253
        %v3255 = vmul.f32 %v3063, 1.442695
        %v3256 = vpow.pop %v3255
        %v3257 = vmul.f32 %v3064, 1.442695
        %v3258 = vpow.pop %v3257
        %v3259 = vmul.f32 %v3065, 1.442695
        %v3260 = vpow.pop %v3259
        %v3261 = vmul.f32 %v3066, 1.442695
        %v3262 = vpow.pop %v3261
        %v3263 = vmul.f32 %v3067, 1.442695
        %v3264 = vpow.pop %v3263
        %v3265 = vmul.f32 %v3068, 1.442695
        %v3266 = vpow.pop %v3265
        %v3267 = vmul.f32 %v3069, 1.442695
        %v3268 = vpow.pop %v3267
        %v3269 = vmul.f32 %v3070, 1.442695
        %v3270 = vpow.pop %v3269
        %v3271 = vmul.f32 %v3071, 1.442695
        %v3272 = vpow.pop %v3271
        %v3273 = vmul.f32 %v3072, 1.442695
        %v3274 = vpow.pop %v3273
        %v3275 = vmul.f32 %v3073, 1.442695
        %v3276 = vpow.pop %v3275
        %v3277 = vmul.f32 %v3074, 1.442695
        %v3278 = vpow.pop %v3277
        %v3279 = vmul.f32 %v3075, 1.442695
        %v3280 = vpow.pop %v3279
        %v3281 = vmul.f32 %v3076, 1.442695
        %v3282 = vpow.pop %v3281
        %v3283 = vmul.f32 %v3077, 1.442695
        %v3284 = vpow.pop %v3283
        %v3285 = vmul.f32 %v3078, 1.442695
        %v3286 = vpow.pop %v3285
        %v3287 = vmul.f32 %v3079, 1.442695
        %v3288 = vpow.pop %v3287
        %v3289 = vmul.f32 %v3080, 1.442695
        %v3290 = vpow.pop %v3289
        %v3291 = vmul.f32 %v3081, 1.442695
        %v3292 = vpow.pop %v3291
        %v3293 = vmul.f32 %v3082, 1.442695
        %v3294 = vpow.pop %v3293
        %v3295 = vmul.f32 %v3083, 1.442695
        %v3296 = vpow.pop %v3295
        %v3297 = vmul.f32 %v3084, 1.442695
        %v3298 = vpow.pop %v3297
        %v3299 = vmul.f32 %v3085, 1.442695
        %v3300 = vpow.pop %v3299
        %v3301 = vmul.f32 %v3086, 1.442695
        %v3302 = vpow.pop %v3301
        %v3303 = vmul.f32 %v3087, 1.442695
        %v3304 = vpow.pop %v3303
        %v3305 = vmul.f32 %v3088, 1.442695
        %v3306 = vpow.pop %v3305
        %v3307 = vmul.f32 %v3089, 1.442695
        %v3308 = vpow.pop %v3307
        %v3309 = vmul.f32 %v3090, 1.442695
        %v3310 = vpow.pop %v3309
        %v3311 = vmul.f32 %v3091, 1.442695
        %v3312 = vpow.pop %v3311
        %v3313 = vmul.f32 %v3092, 1.442695
        %v3314 = vpow.pop %v3313
        %v3315 = vmul.f32 %v3093, 1.442695
        %v3316 = vpow.pop %v3315
        %v3317 = vmul.f32 %v3094, 1.442695
        %v3318 = vpow.pop %v3317
        %v3319 = vmul.f32 %v3095, 1.442695
        %v3320 = vpow.pop %v3319
        %v3321 = vmul.f32 %v3096, 1.442695
        %v3322 = vpow.pop %v3321
        %v3323 = vmul.f32 %v3097, 1.442695
        %v3324 = vpow.pop %v3323
        %v3325 = vmul.f32 %v3098, 1.442695
        %v3326 = vpow.pop %v3325
        %v3327 = vmul.f32 %v3099, 1.442695
        %v3328 = vpow.pop %v3327
        %v3329 = vmul.f32 %v3100, 1.442695
        %v3330 = vpow.pop %v3329
        %v3331 = vmul.f32 %v3101, 1.442695
        %v3332 = vpow.pop %v3331
        %v3333 = vmul.f32 %v3102, 1.442695
        %v3334 = vpow.pop %v3333
        %v3335 = vmul.f32 %v3103, 1.442695
        %v3336 = vpow.pop %v3335
        %v3337 = vmul.f32 %v3104, 1.442695
        %v3338 = vpow.pop %v3337
        %v3339 = vmul.f32 %v3105, 1.442695
        %v3340 = vpow.pop %v3339
        %v3341 = vmul.f32 %v3106, 1.442695
        %v3342 = vpow.pop %v3341
        %v3343 = vmul.f32 %v3107, 1.442695
        %v3344 = vpow.pop %v3343
        %v3345 = vmul.f32 %v3108, 1.442695
        %v3346 = vpow.pop %v3345
        %v3347 = vmul.f32 %v3109, 1.442695
        %v3348 = vpow.pop %v3347
        %v3349 = vmul.f32 %v3110, 1.442695
        %v3350 = vpow.pop %v3349
        %v3351 = vmul.f32 %v3111, 1.442695
        %v3352 = vpow.pop %v3351
        %v3353 = vmul.f32 %v3112, 1.442695
        %v3354 = vpow.pop %v3353
        %v3355 = vmul.f32 %v3113, 1.442695
        %v3356 = vpow.pop %v3355
        %v3357 = vmul.f32 %v3114, 1.442695
        %v3358 = vpow.pop %v3357
        %v3359 = vmul.f32 %v3115, 1.442695
        %v3360 = vpow.pop %v3359
        %v3361 = vmul.f32 %v3116, 1.442695
        %v3362 = vpow.pop %v3361
        %v3363 = vmul.f32 %v3117, 1.442695
        %v3364 = vpow.pop %v3363
        %v3365 = vmul.f32 %v3118, 1.442695
        %v3366 = vpow.pop %v3365
        %v3367 = vmul.f32 %v3119, 1.442695
        %v3368 = vpow.pop %v3367
        %v3369 = vmul.f32 %v3120, 1.442695
        %v3370 = vpow.pop %v3369
        %v3371 = vmul.f32 %v3121, 1.442695
        %v3372 = vpow.pop %v3371
        %v3373 = vmul.f32 %v3122, 1.442695
        %v3374 = vpow.pop %v3373
        %v3375 = vmul.f32 %v3123, 1.442695
        %v3376 = vpow.pop %v3375
        %v3377 = vmul.f32 %v3124, 1.442695
        %v3378 = vpow.pop %v3377
        %v3379 = vmul.f32 %v3125, 1.442695
        %v3380 = vpow.pop %v3379
        %v3381 = vmul.f32 %v3126, 1.442695
        %v3382 = vpow.pop %v3381
        %v3383 = vpack.c.bf16 %v3132, %v3128
        %v3384 = vpack.c.bf16 %v3134, %v3130
        %v3385 = vpack.c.bf16 %v3140, %v3136
        %v3386 = vpack.c.bf16 %v3142, %v3138
        %v3387 = vpack.c.bf16 %v3148, %v3144
        %v3388 = vpack.c.bf16 %v3150, %v3146
        %v3389 = vpack.c.bf16 %v3156, %v3152
        %v3390 = vpack.c.bf16 %v3158, %v3154
        %v3391 = vpack.c.bf16 %v3164, %v3160
        %v3392 = vpack.c.bf16 %v3166, %v3162
        %v3393 = vpack.c.bf16 %v3172, %v3168
        %v3394 = vpack.c.bf16 %v3174, %v3170
        %v3395 = vpack.c.bf16 %v3180, %v3176
        %v3396 = vpack.c.bf16 %v3182, %v3178
        %v3397 = vpack.c.bf16 %v3188, %v3184
        %v3398 = vpack.c.bf16 %v3190, %v3186
        %v3399 = vpack.c.bf16 %v3196, %v3192
        %v3400 = vpack.c.bf16 %v3198, %v3194
        %v3401 = vpack.c.bf16 %v3204, %v3200
        %v3402 = vpack.c.bf16 %v3206, %v3202
        %v3403 = vpack.c.bf16 %v3212, %v3208
        %v3404 = vpack.c.bf16 %v3214, %v3210
        %v3405 = vpack.c.bf16 %v3220, %v3216
        %v3406 = vpack.c.bf16 %v3222, %v3218
        %v3407 = vpack.c.bf16 %v3228, %v3224
        %v3408 = vpack.c.bf16 %v3230, %v3226
        %v3409 = vpack.c.bf16 %v3236, %v3232
        %v3410 = vpack.c.bf16 %v3238, %v3234
        %v3411 = vpack.c.bf16 %v3244, %v3240
        %v3412 = vpack.c.bf16 %v3246, %v3242
        %v3413 = vpack.c.bf16 %v3252, %v3248
        %v3414 = vpack.c.bf16 %v3254, %v3250
        %v3415 = vpack.c.bf16 %v3260, %v3256
        %v3416 = vpack.c.bf16 %v3262, %v3258
        %v3417 = vpack.c.bf16 %v3268, %v3264
        %v3418 = vpack.c.bf16 %v3270, %v3266
        %v3419 = vpack.c.bf16 %v3276, %v3272
        %v3420 = vpack.c.bf16 %v3278, %v3274
        %v3421 = vpack.c.bf16 %v3284, %v3280
        %v3422 = vpack.c.bf16 %v3286, %v3282
        %v3423 = vpack.c.bf16 %v3292, %v3288
        %v3424 = vpack.c.bf16 %v3294, %v3290
        %v3425 = vpack.c.bf16 %v3300, %v3296
        %v3426 = vpack.c.bf16 %v3302, %v3298
        %v3427 = vpack.c.bf16 %v3308, %v3304
        %v3428 = vpack.c.bf16 %v3310, %v3306
        %v3429 = vpack.c.bf16 %v3316, %v3312
        %v3430 = vpack.c.bf16 %v3318, %v3314
        %v3431 = vpack.c.bf16 %v3324, %v3320
        %v3432 = vpack.c.bf16 %v3326, %v3322
        %v3433 = vpack.c.bf16 %v3332, %v3328
        %v3434 = vpack.c.bf16 %v3334, %v3330
        %v3435 = vpack.c.bf16 %v3340, %v3336
        %v3436 = vpack.c.bf16 %v3342, %v3338
        %v3437 = vpack.c.bf16 %v3348, %v3344
        %v3438 = vpack.c.bf16 %v3350, %v3346
        %v3439 = vpack.c.bf16 %v3356, %v3352
        %v3440 = vpack.c.bf16 %v3358, %v3354
        %v3441 = vpack.c.bf16 %v3364, %v3360
        %v3442 = vpack.c.bf16 %v3366, %v3362
        %v3443 = vpack.c.bf16 %v3372, %v3368
        %v3444 = vpack.c.bf16 %v3374, %v3370
        %v3445 = vpack.c.bf16 %v3380, %v3376
        %v3446 = vpack.c.bf16 %v3382, %v3378
        %v3447 = vld [vmem:[%s14] sm:$0xff]
        %v3448 = vld [vmem:[%s14 + $0x8] sm:$0xff]
        %v3451 = vunpack.c.l.b16 %v3447
        %v3452 = vunpack.c.h.b16 %v3447
        %v3453 = vunpack.c.l.b16 %v3448
        %v3454 = vunpack.c.h.b16 %v3448
        %v3455 = vpack.c.b16 %v3451, %v3451
        %v3456 = vpack.c.b16 %v3452, %v3452
        %v3457 = vpack.c.b16 %v3453, %v3453
        %v3458 = vpack.c.b16 %v3454, %v3454
        %3463 = vmatprep.subr.bf16.mxu0 %v3384
        %3464 = vmatpush1.bf16.msra.mxu0 %v3383
        %3465 = vmatprep.subr.bf16.mxu0 %v3386
        %3466 = vmatpush1.bf16.msra.mxu0 %v3385
        %3467 = vmatprep.subr.bf16.mxu0 %v3388
        %3468 = vmatpush1.bf16.msra.mxu0 %v3387
        %3469 = vmatprep.subr.bf16.mxu0 %v3390
        %3470 = vmatpush1.bf16.msra.mxu0 %v3389
        %3471 = vmatprep.subr.bf16.mxu0 %v3392
        %3472 = vmatpush1.bf16.msra.mxu0 %v3391
        %3473 = vmatprep.subr.bf16.mxu0 %v3394
        %3474 = vmatpush1.bf16.msra.mxu0 %v3393
        %3475 = vmatprep.subr.bf16.mxu0 %v3396
        %3476 = vmatpush1.bf16.msra.mxu0 %v3395
        %3477 = vmatprep.subr.bf16.mxu0 %v3398
        %3478 = vmatpush1.bf16.msra.mxu0 %v3397
        %3479 = vmatprep.subr.bf16.mxu0 %v3400
        %3480 = vmatpush1.bf16.msra.mxu0 %v3399
        %3481 = vmatprep.subr.bf16.mxu0 %v3402
        %3482 = vmatpush1.bf16.msra.mxu0 %v3401
        %3483 = vmatprep.subr.bf16.mxu0 %v3404
        %3484 = vmatpush1.bf16.msra.mxu0 %v3403
        %3485 = vmatprep.subr.bf16.mxu0 %v3406
        %3486 = vmatpush1.bf16.msra.mxu0 %v3405
        %3487 = vmatprep.subr.bf16.mxu0 %v3408
        %3488 = vmatpush1.bf16.msra.mxu0 %v3407
        %3489 = vmatprep.subr.bf16.mxu0 %v3410
        %3490 = vmatpush1.bf16.msra.mxu0 %v3409
        %3491 = vmatprep.subr.bf16.mxu0 %v3412
        %3492 = vmatpush1.bf16.msra.mxu0 %v3411
        %3493 = vmatprep.subr.bf16.mxu0 %v3414
        %3494 = vmatpush1.bf16.msra.mxu0 %v3413
        %3495 = vmatprep.mubr.bf16.mxu0 %v3456
        %3496 = vmatmul.mubr.bf16.gmra.mrb[0].mxu0 %v3455
        %v3497 = vpop.f32.mrb[0].mxu0
        %v3498 = vadd.f32 0.0, %v3497
        %v3499 = vpop.f32.mrb[0].mxu0
        %v3500 = vadd.f32 0.0, %v3499
        %v3501 = vpop.f32.mrb[0].mxu0
        %v3502 = vpop.f32.mrb[0].mxu0
        %3503 = vdwg.mxu0
        %3504 = vmatprep.subr.bf16.mxu0 %v3416
        %3505 = vmatpush1.bf16.msra.mxu0 %v3415
        %3506 = vmatprep.subr.bf16.mxu0 %v3418
        %3507 = vmatpush1.bf16.msra.mxu0 %v3417
        %3508 = vmatprep.subr.bf16.mxu0 %v3420
        %3509 = vmatpush1.bf16.msra.mxu0 %v3419
        %3510 = vmatprep.subr.bf16.mxu0 %v3422
        %3511 = vmatpush1.bf16.msra.mxu0 %v3421
        %3512 = vmatprep.subr.bf16.mxu0 %v3424
        %3513 = vmatpush1.bf16.msra.mxu0 %v3423
        %3514 = vmatprep.subr.bf16.mxu0 %v3426
        %3515 = vmatpush1.bf16.msra.mxu0 %v3425
        %3516 = vmatprep.subr.bf16.mxu0 %v3428
        %3517 = vmatpush1.bf16.msra.mxu0 %v3427
        %3518 = vmatprep.subr.bf16.mxu0 %v3430
        %3519 = vmatpush1.bf16.msra.mxu0 %v3429
        %3520 = vmatprep.subr.bf16.mxu0 %v3432
        %3521 = vmatpush1.bf16.msra.mxu0 %v3431
        %3522 = vmatprep.subr.bf16.mxu0 %v3434
        %3523 = vmatpush1.bf16.msra.mxu0 %v3433
        %3524 = vmatprep.subr.bf16.mxu0 %v3436
        %3525 = vmatpush1.bf16.msra.mxu0 %v3435
        %3526 = vmatprep.subr.bf16.mxu0 %v3438
        %3527 = vmatpush1.bf16.msra.mxu0 %v3437
        %3528 = vmatprep.subr.bf16.mxu0 %v3440
        %3529 = vmatpush1.bf16.msra.mxu0 %v3439
        %3530 = vmatprep.subr.bf16.mxu0 %v3442
        %3531 = vmatpush1.bf16.msra.mxu0 %v3441
        %3532 = vmatprep.subr.bf16.mxu0 %v3444
        %3533 = vmatpush1.bf16.msra.mxu0 %v3443
        %3534 = vmatprep.subr.bf16.mxu0 %v3446
        %3535 = vmatpush1.bf16.msra.mxu0 %v3445
        %3536 = vmatprep.mubr.bf16.mxu0 %v3458
        %3537 = vmatmul.mubr.bf16.gmra.mrb[0].mxu0 %v3457
        %v3538 = vpop.f32.mrb[0].mxu0
        %v3539 = vadd.f32 %v3498, %v3538
        %v3540 = vpop.f32.mrb[0].mxu0
        %v3541 = vadd.f32 %v3500, %v3540
        %v3542 = vpop.f32.mrb[0].mxu0
        %v3543 = vpop.f32.mrb[0].mxu0
        %3544 = vdwg.mxu0
        %v3545 = vrcp.pop %v3539
        %v3546 = vrcp.pop %v3541
        %v3547 = vld [vmem:[%s18] sm:$0xff]
        %v3548 = vld [vmem:[%s18 + $0x8] sm:$0xff]
        %v3549 = vld [vmem:[%s18 + $0x10] sm:$0xff]
        %v3550 = vld [vmem:[%s18 + $0x18] sm:$0xff]
        %v3551 = vld [vmem:[%s17] sm:$0xff]
        %v3552 = vld [vmem:[%s17 + $0x8] sm:$0xff]
        %v3553 = vld [vmem:[%s17 + $0x10] sm:$0xff]
        %v3554 = vld [vmem:[%s17 + $0x18] sm:$0xff]
        %v3555 = vld [vmem:[%s17 + $0x20] sm:$0xff]
        %v3556 = vld [vmem:[%s17 + $0x28] sm:$0xff]
        %v3557 = vld [vmem:[%s17 + $0x30] sm:$0xff]
        %v3558 = vld [vmem:[%s17 + $0x38] sm:$0xff]
        %v3559 = vld [vmem:[%s17 + $0x40] sm:$0xff]
        %v3560 = vld [vmem:[%s17 + $0x48] sm:$0xff]
        %v3561 = vld [vmem:[%s17 + $0x50] sm:$0xff]
        %v3562 = vld [vmem:[%s17 + $0x58] sm:$0xff]
        %v3563 = vld [vmem:[%s17 + $0x60] sm:$0xff]
        %v3564 = vld [vmem:[%s17 + $0x68] sm:$0xff]
        %v3565 = vld [vmem:[%s17 + $0x70] sm:$0xff]
        %v3566 = vld [vmem:[%s17 + $0x78] sm:$0xff]
        %v3567 = vpack.c.bf16 %v1203, %v1203
        %v3584 = vunpack.c.l.b16 %v3551
        %v3585 = vunpack.c.h.b16 %v3551
        %v3586 = vunpack.c.l.b16 %v3552
        %v3587 = vunpack.c.h.b16 %v3552
        %v3588 = vunpack.c.l.b16 %v3553
        %v3589 = vunpack.c.h.b16 %v3553
        %v3590 = vunpack.c.l.b16 %v3554
        %v3591 = vunpack.c.h.b16 %v3554
        %v3592 = vunpack.c.l.b16 %v3555
        %v3593 = vunpack.c.h.b16 %v3555
        %v3594 = vunpack.c.l.b16 %v3556
        %v3595 = vunpack.c.h.b16 %v3556
        %v3596 = vunpack.c.l.b16 %v3557
        %v3597 = vunpack.c.h.b16 %v3557
        %v3598 = vunpack.c.l.b16 %v3558
        %v3599 = vunpack.c.h.b16 %v3558
        %v3600 = vunpack.c.l.b16 %v3559
        %v3601 = vunpack.c.h.b16 %v3559
        %v3602 = vunpack.c.l.b16 %v3560
        %v3603 = vunpack.c.h.b16 %v3560
        %v3604 = vunpack.c.l.b16 %v3561
        %v3605 = vunpack.c.h.b16 %v3561
        %v3606 = vunpack.c.l.b16 %v3562
        %v3607 = vunpack.c.h.b16 %v3562
        %v3608 = vunpack.c.l.b16 %v3563
        %v3609 = vunpack.c.h.b16 %v3563
        %v3610 = vunpack.c.l.b16 %v3564
        %v3611 = vunpack.c.h.b16 %v3564
        %v3612 = vunpack.c.l.b16 %v3565
        %v3613 = vunpack.c.h.b16 %v3565
        %v3614 = vunpack.c.l.b16 %v3566
        %v3615 = vunpack.c.h.b16 %v3566
        %v3616 = vpack.c.b16 %v3588, %v3584
        %v3617 = vpack.c.b16 %v3589, %v3585
        %v3618 = vpack.c.b16 %v3590, %v3586
        %v3619 = vpack.c.b16 %v3591, %v3587
        %v3620 = vpack.c.b16 %v3596, %v3592
        %v3621 = vpack.c.b16 %v3597, %v3593
        %v3622 = vpack.c.b16 %v3598, %v3594
        %v3623 = vpack.c.b16 %v3599, %v3595
        %v3624 = vpack.c.b16 %v3604, %v3600
        %v3625 = vpack.c.b16 %v3605, %v3601
        %v3626 = vpack.c.b16 %v3606, %v3602
        %v3627 = vpack.c.b16 %v3607, %v3603
        %v3628 = vpack.c.b16 %v3612, %v3608
        %v3629 = vpack.c.b16 %v3613, %v3609
        %v3630 = vpack.c.b16 %v3614, %v3610
        %v3631 = vpack.c.b16 %v3615, %v3611
        %v3649 = vsel %vm1001, %v3567, 0
        %3651 = vmatprep.subr.bf16.mxu0 %v3617
        %3652 = vmatpush1.bf16.msra.mxu0 %v3616
        %3653 = vmatprep.subr.bf16.mxu0 %v3621
        %3654 = vmatpush1.bf16.msra.mxu0 %v3620
        %3655 = vmatprep.subr.bf16.mxu0 %v3625
        %3656 = vmatpush1.bf16.msra.mxu0 %v3624
        %3657 = vmatprep.subr.bf16.mxu0 %v3629
        %3658 = vmatpush1.bf16.msra.mxu0 %v3628
        %3659 = vmatprep.subr.bf16.mxu0 0
        %3660 = vmatpush1.bf16.msra.mxu0 0
        %3661 = vmatprep.subr.bf16.mxu0 0
        %3662 = vmatpush1.bf16.msra.mxu0 0
        %3663 = vmatprep.subr.bf16.mxu0 0
        %3664 = vmatpush1.bf16.msra.mxu0 0
        %3665 = vmatprep.subr.bf16.mxu0 0
        %3666 = vmatpush1.bf16.msra.mxu0 0
        %3667 = vmatprep.subr.bf16.mxu0 0
        %3668 = vmatpush1.bf16.msra.mxu0 0
        %3669 = vmatprep.subr.bf16.mxu0 0
        %3670 = vmatpush1.bf16.msra.mxu0 0
        %3671 = vmatprep.subr.bf16.mxu0 0
        %3672 = vmatpush1.bf16.msra.mxu0 0
        %3673 = vmatprep.subr.bf16.mxu0 0
        %3674 = vmatpush1.bf16.msra.mxu0 0
        %3675 = vmatprep.subr.bf16.mxu0 0
        %3676 = vmatpush1.bf16.msra.mxu0 0
        %3677 = vmatprep.subr.bf16.mxu0 0
        %3678 = vmatpush1.bf16.msra.mxu0 0
        %3679 = vmatprep.subr.bf16.mxu0 0
        %3680 = vmatpush1.bf16.msra.mxu0 0
        %3681 = vmatprep.subr.bf16.mxu0 0
        %3682 = vmatpush1.bf16.msra.mxu0 0
        %3683 = vmatprep.mubr.bf16.mxu0 0
        %3684 = vmatmul.mubr.bf16.gmra.mrb[0].mxu0 %v3649
        %v3685 = vpop.f32.mrb[0].mxu0
        %v3686 = vadd.f32 0.0, %v3685
        %v3687 = vpop.f32.mrb[0].mxu0
        %v3688 = vadd.f32 0.0, %v3687
        %v3689 = vpop.f32.mrb[0].mxu0
        %v3690 = vpop.f32.mrb[0].mxu0
        %3691 = vdwg.mxu0
        %3692 = vmatprep.subr.bf16.mxu0 %v3619
        %3693 = vmatpush1.bf16.msra.mxu0 %v3618
        %3694 = vmatprep.subr.bf16.mxu0 %v3623
        %3695 = vmatpush1.bf16.msra.mxu0 %v3622
        %3696 = vmatprep.subr.bf16.mxu0 %v3627
        %3697 = vmatpush1.bf16.msra.mxu0 %v3626
        %3698 = vmatprep.subr.bf16.mxu0 %v3631
        %3699 = vmatpush1.bf16.msra.mxu0 %v3630
        %3700 = vmatprep.subr.bf16.mxu0 0
        %3701 = vmatpush1.bf16.msra.mxu0 0
        %3702 = vmatprep.subr.bf16.mxu0 0
        %3703 = vmatpush1.bf16.msra.mxu0 0
        %3704 = vmatprep.subr.bf16.mxu0 0
        %3705 = vmatpush1.bf16.msra.mxu0 0
        %3706 = vmatprep.subr.bf16.mxu0 0
        %3707 = vmatpush1.bf16.msra.mxu0 0
        %3708 = vmatprep.subr.bf16.mxu0 0
        %3709 = vmatpush1.bf16.msra.mxu0 0
        %3710 = vmatprep.subr.bf16.mxu0 0
        %3711 = vmatpush1.bf16.msra.mxu0 0
        %3712 = vmatprep.subr.bf16.mxu0 0
        %3713 = vmatpush1.bf16.msra.mxu0 0
        %3714 = vmatprep.subr.bf16.mxu0 0
        %3715 = vmatpush1.bf16.msra.mxu0 0
        %3716 = vmatprep.subr.bf16.mxu0 0
        %3717 = vmatpush1.bf16.msra.mxu0 0
        %3718 = vmatprep.subr.bf16.mxu0 0
        %3719 = vmatpush1.bf16.msra.mxu0 0
        %3720 = vmatprep.subr.bf16.mxu0 0
        %3721 = vmatpush1.bf16.msra.mxu0 0
        %3722 = vmatprep.subr.bf16.mxu0 0
        %3723 = vmatpush1.bf16.msra.mxu0 0
        %3724 = vmatprep.mubr.bf16.mxu0 0
        %3725 = vmatmul.mubr.bf16.gmra.mrb[0].mxu0 %v3649
        %v3726 = vpop.f32.mrb[0].mxu0
        %v3727 = vadd.f32 0.0, %v3726
        %v3728 = vpop.f32.mrb[0].mxu0
        %v3729 = vadd.f32 0.0, %v3728
        %v3730 = vpop.f32.mrb[0].mxu0
        %v3731 = vpop.f32.mrb[0].mxu0
        %3732 = vdwg.mxu0
        %v3733 = vmul.f32 %v3547, %v3686
        %v3734 = vmul.f32 %v3548, %v3688
        %v3735 = vmul.f32 %v3549, %v3727
        %v3736 = vmul.f32 %v3550, %v3729
        %v3737 = vpack.c.bf16 %v3733, %v3733
        %v3738 = vpack.c.bf16 %v3734, %v3734
        %v3739 = vpack.c.bf16 %v3735, %v3735
        %v3740 = vpack.c.bf16 %v3736, %v3736
        %3741 = vmatprep.subr.bf16.mxu0 %v3384
        %3742 = vmatpush1.bf16.msra.mxu0 %v3383
        %3743 = vmatprep.subr.bf16.mxu0 %v3386
        %3744 = vmatpush1.bf16.msra.mxu0 %v3385
        %3745 = vmatprep.subr.bf16.mxu0 %v3388
        %3746 = vmatpush1.bf16.msra.mxu0 %v3387
        %3747 = vmatprep.subr.bf16.mxu0 %v3390
        %3748 = vmatpush1.bf16.msra.mxu0 %v3389
        %3749 = vmatprep.subr.bf16.mxu0 %v3392
        %3750 = vmatpush1.bf16.msra.mxu0 %v3391
        %3751 = vmatprep.subr.bf16.mxu0 %v3394
        %3752 = vmatpush1.bf16.msra.mxu0 %v3393
        %3753 = vmatprep.subr.bf16.mxu0 %v3396
        %3754 = vmatpush1.bf16.msra.mxu0 %v3395
        %3755 = vmatprep.subr.bf16.mxu0 %v3398
        %3756 = vmatpush1.bf16.msra.mxu0 %v3397
        %3757 = vmatprep.subr.bf16.mxu0 %v3400
        %3758 = vmatpush1.bf16.msra.mxu0 %v3399
        %3759 = vmatprep.subr.bf16.mxu0 %v3402
        %3760 = vmatpush1.bf16.msra.mxu0 %v3401
        %3761 = vmatprep.subr.bf16.mxu0 %v3404
        %3762 = vmatpush1.bf16.msra.mxu0 %v3403
        %3763 = vmatprep.subr.bf16.mxu0 %v3406
        %3764 = vmatpush1.bf16.msra.mxu0 %v3405
        %3765 = vmatprep.subr.bf16.mxu0 %v3408
        %3766 = vmatpush1.bf16.msra.mxu0 %v3407
        %3767 = vmatprep.subr.bf16.mxu0 %v3410
        %3768 = vmatpush1.bf16.msra.mxu0 %v3409
        %3769 = vmatprep.subr.bf16.mxu0 %v3412
        %3770 = vmatpush1.bf16.msra.mxu0 %v3411
        %3771 = vmatprep.subr.bf16.mxu0 %v3414
        %3772 = vmatpush1.bf16.msra.mxu0 %v3413
        %3773 = vmatprep.mubr.bf16.mxu0 %v3738
        %3774 = vmatmul.mubr.bf16.gmra.mrb[0].mxu0 %v3737
        %v3775 = vpop.f32.mrb[0].mxu0
        %v3776 = vadd.f32 0.0, %v3775
        %v3777 = vpop.f32.mrb[0].mxu0
        %v3778 = vadd.f32 0.0, %v3777
        %v3779 = vpop.f32.mrb[0].mxu0
        %v3780 = vpop.f32.mrb[0].mxu0
        %3781 = vdwg.mxu0
        %3782 = vmatprep.subr.bf16.mxu0 %v3416
        %3783 = vmatpush1.bf16.msra.mxu0 %v3415
        %3784 = vmatprep.subr.bf16.mxu0 %v3418
        %3785 = vmatpush1.bf16.msra.mxu0 %v3417
        %3786 = vmatprep.subr.bf16.mxu0 %v3420
        %3787 = vmatpush1.bf16.msra.mxu0 %v3419
        %3788 = vmatprep.subr.bf16.mxu0 %v3422
        %3789 = vmatpush1.bf16.msra.mxu0 %v3421
        %3790 = vmatprep.subr.bf16.mxu0 %v3424
        %3791 = vmatpush1.bf16.msra.mxu0 %v3423
        %3792 = vmatprep.subr.bf16.mxu0 %v3426
        %3793 = vmatpush1.bf16.msra.mxu0 %v3425
        %3794 = vmatprep.subr.bf16.mxu0 %v3428
        %3795 = vmatpush1.bf16.msra.mxu0 %v3427
        %3796 = vmatprep.subr.bf16.mxu0 %v3430
        %3797 = vmatpush1.bf16.msra.mxu0 %v3429
        %3798 = vmatprep.subr.bf16.mxu0 %v3432
        %3799 = vmatpush1.bf16.msra.mxu0 %v3431
        %3800 = vmatprep.subr.bf16.mxu0 %v3434
        %3801 = vmatpush1.bf16.msra.mxu0 %v3433
        %3802 = vmatprep.subr.bf16.mxu0 %v3436
        %3803 = vmatpush1.bf16.msra.mxu0 %v3435
        %3804 = vmatprep.subr.bf16.mxu0 %v3438
        %3805 = vmatpush1.bf16.msra.mxu0 %v3437
        %3806 = vmatprep.subr.bf16.mxu0 %v3440
        %3807 = vmatpush1.bf16.msra.mxu0 %v3439
        %3808 = vmatprep.subr.bf16.mxu0 %v3442
        %3809 = vmatpush1.bf16.msra.mxu0 %v3441
        %3810 = vmatprep.subr.bf16.mxu0 %v3444
        %3811 = vmatpush1.bf16.msra.mxu0 %v3443
        %3812 = vmatprep.subr.bf16.mxu0 %v3446
        %3813 = vmatpush1.bf16.msra.mxu0 %v3445
        %3814 = vmatprep.mubr.bf16.mxu0 %v3740
        %3815 = vmatmul.mubr.bf16.gmra.mrb[0].mxu0 %v3739
        %v3816 = vpop.f32.mrb[0].mxu0
        %v3817 = vadd.f32 %v3776, %v3816
        %v3818 = vpop.f32.mrb[0].mxu0
        %v3819 = vadd.f32 %v3778, %v3818
        %v3820 = vpop.f32.mrb[0].mxu0
        %v3821 = vpop.f32.mrb[0].mxu0
        %3822 = vdwg.mxu0
        %v3823 = vld [vmem:[%s19] sm:$0xff]
        %v3825 = vsel %vm954, %v3823, 0
        %3827 = vmatprep.subr.mxu0 %v3546
        %3828 = vmatpush1.msra.mxu0 %v3545
        %3829 = vmatprep.subr.mxu0 0.0
        %3830 = vmatpush1.msra.mxu0 0.0
        %3831 = vmatprep.subr.mxu0 0.0
        %3832 = vmatpush1.msra.mxu0 0.0
        %3833 = vmatprep.subr.mxu0 0.0
        %3834 = vmatpush1.msra.mxu0 0.0
        %3835 = vmatprep.subr.mxu0 0.0
        %3836 = vmatpush1.msra.mxu0 0.0
        %3837 = vmatprep.subr.mxu0 0.0
        %3838 = vmatpush1.msra.mxu0 0.0
        %3839 = vmatprep.subr.mxu0 0.0
        %3840 = vmatpush1.msra.mxu0 0.0
        %3841 = vmatprep.subr.mxu0 0.0
        %3842 = vmatpush1.msra.mxu0 0.0
        %3843 = vmatprep.subr.mxu0 0.0
        %3844 = vmatpush1.msra.mxu0 0.0
        %3845 = vmatprep.subr.mxu0 0.0
        %3846 = vmatpush1.msra.mxu0 0.0
        %3847 = vmatprep.subr.mxu0 0.0
        %3848 = vmatpush1.msra.mxu0 0.0
        %3849 = vmatprep.subr.mxu0 0.0
        %3850 = vmatpush1.msra.mxu0 0.0
        %3851 = vmatprep.subr.mxu0 0.0
        %3852 = vmatpush1.msra.mxu0 0.0
        %3853 = vmatprep.subr.mxu0 0.0
        %3854 = vmatpush1.msra.mxu0 0.0
        %3855 = vmatprep.subr.mxu0 0.0
        %3856 = vmatpush1.msra.mxu0 0.0
        %3857 = vmatprep.subr.mxu0 0.0
        %3858 = vmatpush1.msra.mxu0 0.0
        %3859 = vmatprep.subr.mxu0 0.0
        %3860 = vmatpush1.msra.mxu0 0.0
        %3861 = vmatprep.subr.mxu0 0.0
        %3862 = vmatpush1.msra.mxu0 0.0
        %3863 = vmatprep.subr.mxu0 0.0
        %3864 = vmatpush1.msra.mxu0 0.0
        %3865 = vmatprep.subr.mxu0 0.0
        %3866 = vmatpush1.msra.mxu0 0.0
        %3867 = vmatprep.subr.mxu0 0.0
        %3868 = vmatpush1.msra.mxu0 0.0
        %3869 = vmatprep.subr.mxu0 0.0
        %3870 = vmatpush1.msra.mxu0 0.0
        %3871 = vmatprep.subr.mxu0 0.0
        %3872 = vmatpush1.msra.mxu0 0.0
        %3873 = vmatprep.subr.mxu0 0.0
        %3874 = vmatpush1.msra.mxu0 0.0
        %3875 = vmatprep.subr.mxu0 0.0
        %3876 = vmatpush1.msra.mxu0 0.0
        %3877 = vmatprep.subr.mxu0 0.0
        %3878 = vmatpush1.msra.mxu0 0.0
        %3879 = vmatprep.subr.mxu0 0.0
        %3880 = vmatpush1.msra.mxu0 0.0
        %3881 = vmatprep.subr.mxu0 0.0
        %3882 = vmatpush1.msra.mxu0 0.0
        %3883 = vmatprep.subr.mxu0 0.0
        %3884 = vmatpush1.msra.mxu0 0.0
        %3885 = vmatprep.subr.mxu0 0.0
        %3886 = vmatpush1.msra.mxu0 0.0
        %3887 = vmatprep.subr.mxu0 0.0
        %3888 = vmatpush1.msra.mxu0 0.0
        %3889 = vmatprep.subr.mxu0 0.0
        %3890 = vmatpush1.msra.mxu0 0.0
        %3891 = vmatprep.mubr.f32.mxu0 0.0
        %3892 = vmatmul.mubr.f32.gmra.mrb[0].mxu0 %v3825
        %v3893 = vpop.f32.mrb[0].mxu0
        %v3894 = vadd.f32 0.0, %v3893
        %v3895 = vpop.f32.mrb[0].mxu0
        %v3896 = vadd.f32 0.0, %v3895
        %3897 = vdwg.mxu0
        %v3898 = vmul.f32 %v3817, %v3894
        %v3899 = vmul.f32 %v3819, %v3896
        %v3900 = vld [vmem:[%s12] sm:$0xf]
        %v3901 = vpack.c.bf16 %v3898, %v3898
        %v3902 = vpack.c.bf16 %v3899, %v3899
        %v3903 = vld [vmem:[%s13] sm:$0xff]
        %3905 = vset.pattern.permute.xlu0 0
        %3906 = vperm.xlu0 %3905, %v3903
        %v3907 = vpop.permute.xlu0 %3906
        %v3910 = vsel %vm954, %v3900, 0
        %v3913 = vsel %vm714, %v3901, 0
        %v3916 = vsel %vm714, %v3902, 0
        %3918 = vmatprep.subr.bf16.mxu0 %v3916
        %3919 = vmatpush1.bf16.msra.mxu0 %v3913
        %3920 = vmatprep.subr.bf16.mxu0 0
        %3921 = vmatpush1.bf16.msra.mxu0 0
        %3922 = vmatprep.subr.bf16.mxu0 0
        %3923 = vmatpush1.bf16.msra.mxu0 0
        %3924 = vmatprep.subr.bf16.mxu0 0
        %3925 = vmatpush1.bf16.msra.mxu0 0
        %3926 = vmatprep.subr.bf16.mxu0 0
        %3927 = vmatpush1.bf16.msra.mxu0 0
        %3928 = vmatprep.subr.bf16.mxu0 0
        %3929 = vmatpush1.bf16.msra.mxu0 0
        %3930 = vmatprep.subr.bf16.mxu0 0
        %3931 = vmatpush1.bf16.msra.mxu0 0
        %3932 = vmatprep.subr.bf16.mxu0 0
        %3933 = vmatpush1.bf16.msra.mxu0 0
        %3934 = vmatprep.subr.bf16.mxu0 0
        %3935 = vmatpush1.bf16.msra.mxu0 0
        %3936 = vmatprep.subr.bf16.mxu0 0
        %3937 = vmatpush1.bf16.msra.mxu0 0
        %3938 = vmatprep.subr.bf16.mxu0 0
        %3939 = vmatpush1.bf16.msra.mxu0 0
        %3940 = vmatprep.subr.bf16.mxu0 0
        %3941 = vmatpush1.bf16.msra.mxu0 0
        %3942 = vmatprep.subr.bf16.mxu0 0
        %3943 = vmatpush1.bf16.msra.mxu0 0
        %3944 = vmatprep.subr.bf16.mxu0 0
        %3945 = vmatpush1.bf16.msra.mxu0 0
        %3946 = vmatprep.subr.bf16.mxu0 0
        %3947 = vmatpush1.bf16.msra.mxu0 0
        %3948 = vmatprep.subr.bf16.mxu0 0
        %3949 = vmatpush1.bf16.msra.mxu0 0
        %3950 = vmatprep.mubr.bf16.mxu0 0
        %3951 = vmatmul.mubr.bf16.gmra.mrb[0].mxu0 %v3910
        %v3952 = vpop.f32.mrb[0].mxu0
        %v3953 = vadd.f32 %v3907, %v3952
        %v3954 = vpop.f32.mrb[0].mxu0
        %v3955 = vadd.f32 %v3907, %v3954
        %v3956 = vpop.f32.mrb[0].mxu0
        %v3957 = vpop.f32.mrb[0].mxu0
        %3958 = vdwg.mxu0
        %v3959 = vld [vmem:[%s647] sm:$0xff]
        %v3960 = vld [vmem:[%s647 + $0x8] sm:$0xff]
        %v3961 = vadd.f32 %v3953, %v3959
        %v3962 = vadd.f32 %v3955, %v3960
        %3963 = vst [vmem:[%s637] sm:$0xff] %v3961
        %3964 = vst [vmem:[%s637 + $0x8] sm:$0xff] %v3962
        %s3965 = sand.u32 %s472, 1
        %s3966 = scalar_lea.sflag [#allocation3], %s3965
        %s3967 = sand.u32 %s472, 1
        %s3968 = smul.addr %s3967, 16
        %s3969 = scalar_lea.vmem [#allocation2], %s3968
        // Predicated region
        $region101: #{tpu_custom_call.1} parent=99 // pred_check
          %p3970 = pneg %p482
        $region102: #{tpu_custom_call.1} parent=99 // pred_check_branch
          %3972 = sbr.rel (%p3970) target = $region104
        $region103: #{tpu_custom_call.1} parent=99 // pred_region
          %s3974 = ssub.s32 256, 256
          %3975 = vsyncadd %s3966, %s3974
          %s3976 = smul.addr %s34, 2
          %s3977 = smul.addr %s3976, 128
          %s3978 = scalar_lea.hbm %s20, %s3977
          %s3980 = sshll.u32 %s3969, 4
          %s3981 = int_to_ptr.vmem [resolvable:$true] %s3980
          %3983 = dma.vmem_to_hbm [thread:$0]  %s3981, 256, %s3978, %s3966
        $region104: #{tpu_custom_call.1} parent=99 // pred_fallthru
          _
      $region100: #{tpu_custom_call.1} parent=5 // pred_fallthru
        _
      %p3984 = scmp.le.s32.totalorder 2, %s29
      // Predicated region
      $region105: #{tpu_custom_call.1} parent=5 // pred_check
        %p3985 = pneg %p3984
      $region106: #{tpu_custom_call.1} parent=5 // pred_check_branch
        %3987 = sbr.rel (%p3985) target = $region108
      $region107: #{tpu_custom_call.1} parent=5 // pred_region
        %s3988 = ssub.s32 %s29, 2
        // Predicated region
        $region109: #{tpu_custom_call.1} parent=107 // pred_check
          %p3989 = pneg %p488
        $region110: #{tpu_custom_call.1} parent=107 // pred_check_branch
          %3991 = sbr.rel (%p3989) target = $region112
        $region111: #{tpu_custom_call.1} parent=107 // pred_region
          %s3992 = sand.u32 %s473, 1
          %s3993 = scalar_lea.sflag [#allocation3], %s3992
          %s3994 = sand.u32 %s473, 1
          %s3995 = smul.addr %s3994, 16
          %s3996 = scalar_lea.vmem [#allocation2], %s3995
          %3997 = dma.done %s3993, 256
        $region112: #{tpu_custom_call.1} parent=107 // pred_fallthru
          _
      $region108: #{tpu_custom_call.1} parent=5 // pred_fallthru
        _
    $region6: #{tpu_custom_call.1} parent=1 // loop_footer
      %s33 = sadd.s32 1, %s29
    $region7: #{tpu_custom_call.1} parent=1 // loop_footer_branch
      %28 = sbr.rel target = $region3
    $region8: #{tpu_custom_call.1} parent=1 // loop_exit
      _
    %3998 = vsyncpa [#allocation3], 1
    %s3999 = scalar_lea.sflag [#allocation3], 1
    %4000 = vsyncpa %s3999, 1

</llo_original>
